<compile_context>
chip_gen: v7x
topology: tpu7x:2x2x1
jax: 0.10.0
libtpu: 0.0.40
codegen_flags: <defaults>
</compile_context>

<pallas_src>
import functools

import jax
import jax.numpy as jnp
from jax.experimental import pallas as pl
from jax.experimental.pallas import tpu as pltpu

C_IN = 4      # input channels
C_OUT = 32    # real conv output channels
EMB = 16      # real embedding dim
CP = 128      # conv output channels zero-padded to a full lane width
DP = 128      # embedding zero-padded to a full lane width


# ----------------------------- Pallas kernel -------------------------------


def _fused_backbone_kernel(xp_ref, w1_ref, b1_ref, w2_ref, b2_ref, out_ref, acc_ref):
    """One sample per grid step.

    xp_ref : (1, H+2, W+2, C)  zero-padded NHWC input block
    w1_ref : (9, C, CP)        conv weight, one (C, CP) slab per 3x3 offset
    b1_ref : (1, CP)           conv bias (zero beyond C_OUT)
    w2_ref : (CP, DP)          FC weight (zero beyond C_OUT/EMB)
    b2_ref : (1, DP)           FC bias (zero beyond EMB)
    out_ref: (1, 1, DP)        lane-dense embedding output
    acc_ref: (H*W, CP) f32     VMEM scratch holding conv activations
    """
    Hp = xp_ref.shape[1]
    Wp = xp_ref.shape[2]
    C = xp_ref.shape[3]
    H, W = Hp - 2, Wp - 2
    HW = H * W

    # conv-as-9-accumulating-matmuls: in-kernel im2col, activations in VMEM.
    acc_ref[...] = jnp.zeros_like(acc_ref)
    for idx in range(9):
        ki, kj = idx // 3, idx % 3
        win = xp_ref[0, ki:ki + H, kj:kj + W, :]      # (H, W, C) static window
        win2d = win.reshape(HW, C)                    # layout-preserving collapse
        acc_ref[...] += jnp.dot(win2d, w1_ref[idx],
                                preferred_element_type=jnp.float32)

    feat = jnp.maximum(acc_ref[...] + b1_ref[...], 0.0)            # bias + ReLU
    # Global average pool on the MXU: (1, HW) @ (HW, CP), 1/HW folded in.
    pool_vec = jnp.full((1, HW), 1.0 / HW, dtype=jnp.float32)
    pooled = jnp.dot(pool_vec, feat, preferred_element_type=jnp.float32)  # (1, CP)
    emb = jnp.dot(pooled, w2_ref[...],
                  preferred_element_type=jnp.float32) + b2_ref[...]       # (1, DP)
    out_ref[0] = emb


# ------------------------------ wrappers ------------------------------------


def _backbone_embed(x, params, emb_dim):
    """Fused Pallas backbone: conv3x3(pad=1)+ReLU -> GAP -> Linear."""
    w1p, b1p, w2p, b2p = params
    Bn, C, H, W = x.shape
    cp = w1p.shape[-1]
    dp = w2p.shape[-1]

    # Cheap glue (fuses under jit): NCHW -> NHWC + spatial zero-pad.
    # The 9x im2col expansion happens inside the kernel, not in HBM.
    x_nhwc = jnp.transpose(x, (0, 2, 3, 1)).astype(jnp.float32)
    xp = jnp.pad(x_nhwc, ((0, 0), (1, 1), (1, 1), (0, 0)))

    out = pl.pallas_call(
        _fused_backbone_kernel,
        out_shape=jax.ShapeDtypeStruct((Bn, 1, dp), jnp.float32),
        grid=(Bn,),
        in_specs=[
            pl.BlockSpec((1, H + 2, W + 2, C), lambda b: (b, 0, 0, 0)),
            pl.BlockSpec(w1p.shape, lambda b: (0, 0, 0)),
            pl.BlockSpec(b1p.shape, lambda b: (0, 0)),
            pl.BlockSpec(w2p.shape, lambda b: (0, 0)),
            pl.BlockSpec(b2p.shape, lambda b: (0, 0)),
        ],
        out_specs=pl.BlockSpec((1, 1, dp), lambda b: (b, 0, 0)),
        scratch_shapes=[pltpu.VMEM((H * W, cp), jnp.float32)],
        compiler_params=pltpu.CompilerParams(dimension_semantics=("parallel",)),
    )(xp, w1p, b1p, w2p, b2p)
    return out[:, 0, :emb_dim]


@functools.partial(jax.jit, static_argnames=("emb_dim",))
def backbone_forward(x, params, emb_dim=EMB):
    return _backbone_embed(x, params, emb_dim)


@functools.partial(jax.jit, static_argnames=("emb_dim",))
def triplet_forward(anchor, positive, negative, params, emb_dim=EMB):
    # One fused backbone launch over the stacked 3B batch, then split.
    B = anchor.shape[0]
    stacked = jnp.concatenate([anchor, positive, negative], axis=0)
    emb = _backbone_embed(stacked, params, emb_dim)
    a, p, n = emb[:B], emb[B:2 * B], emb[2 * B:]
    # Pairwise distance is a ~100-FLOP epilogue: plain JAX (XLA fuses it) is
    # cheaper than its own pallas_call launch (per perf review).
    eps = 1e-6  # matches torch.nn.functional.pairwise_distance default
    dist_pos = jnp.sqrt(jnp.sum(jnp.square(a - p + eps), axis=-1))
    dist_neg = jnp.sqrt(jnp.sum(jnp.square(a - n + eps), axis=-1))
    return a, p, n, dist_pos, dist_neg


def init_backbone_params(key):
    """Synthetic conv/FC weights, zero-padded to lane-dense (128-wide) shapes."""
    k_w1, k_b1, k_w2, k_b2 = jax.random.split(key, 4)
    w1 = jax.random.normal(k_w1, (9, C_IN, C_OUT), jnp.float32) * 0.1
    b1 = jax.random.normal(k_b1, (1, C_OUT), jnp.float32) * 0.1
    w2 = jax.random.normal(k_w2, (C_OUT, EMB), jnp.float32) * 0.1
    b2 = jax.random.normal(k_b2, (1, EMB), jnp.float32) * 0.1
    w1p = jnp.zeros((9, C_IN, CP), jnp.float32).at[:, :, :C_OUT].set(w1)
    b1p = jnp.zeros((1, CP), jnp.float32).at[:, :C_OUT].set(b1)
    w2p = jnp.zeros((CP, DP), jnp.float32).at[:C_OUT, :EMB].set(w2)
    b2p = jnp.zeros((1, DP), jnp.float32).at[:, :EMB].set(b2)
    return (w1p, b1p, w2p, b2p)


def _backbone_ref(x, params, emb_dim):
    """Plain-JAX reference of the same backbone (for a correctness check)."""
    w1p, b1p, w2p, b2p = params
    Bn, C, H, W = x.shape
    x_nhwc = jnp.transpose(x, (0, 2, 3, 1)).astype(jnp.float32)
    xp = jnp.pad(x_nhwc, ((0, 0), (1, 1), (1, 1), (0, 0)))
    acc = jnp.zeros((Bn, H, W, w1p.shape[-1]), jnp.float32)
    for idx in range(9):
        ki, kj = idx // 3, idx % 3
        win = xp[:, ki:ki + H, kj:kj + W, :]
        acc = acc + jnp.einsum("bhwc,cn->bhwn", win, w1p[idx])
    feat = jnp.maximum(acc + b1p[0], 0.0)
    pooled = jnp.mean(feat, axis=(1, 2))
    emb = pooled @ w2p + b2p
    return emb[:, :emb_dim]


class TripletNetModel:
    """JAX/Pallas port of the PyTorch TripletNetModel wrapper."""

    def __init__(self, params, emb_dim=EMB):
        self.params = params
        self.emb_dim = emb_dim

    def forward(self, x):
        return backbone_forward(x, self.params, emb_dim=self.emb_dim)

    def forward_triplet(self, anchor, positive, negative):
        a, p, n, dist_pos, dist_neg = triplet_forward(
            anchor, positive, negative, self.params, emb_dim=self.emb_dim)
        return {
            "anchor_map": a,
            "pos_map": p,
            "neg_map": n,
            "dist_pos": dist_pos,
            "dist_neg": dist_neg,
        }


# --------------------------------- main --------------------------------------

if __name__ == "__main__":
    B, C, H, W = 2, C_IN, 16, 16

    key = jax.random.PRNGKey(0)
    k_params, k_x, k_p, k_n = jax.random.split(key, 4)
    params = init_backbone_params(k_params)

    model = TripletNetModel(params)

    x = jax.random.normal(k_x, (B, C, H, W), jnp.float32)
    pos = jax.random.normal(k_p, (B, C, H, W), jnp.float32)
    neg = jax.random.normal(k_n, (B, C, H, W), jnp.float32)

    # forward(x) == backbone(x)
    out = jax.block_until_ready(model.forward(x))
    assert out.shape == (B, EMB)

    # Correctness check against a plain-JAX reference.
    ref = _backbone_ref(x, params, EMB)
    assert jnp.allclose(out, ref, atol=1e-3, rtol=1e-2), "backbone mismatch vs reference"

    # forward_triplet: single fused backbone launch over the stacked 3B batch.
    trip = model.forward_triplet(x, pos, neg)
    jax.block_until_ready(trip["dist_pos"])
    jax.block_until_ready(trip["dist_neg"])

    assert trip["anchor_map"].shape == (B, EMB)
    assert trip["pos_map"].shape == (B, EMB)
    assert trip["neg_map"].shape == (B, EMB)
    assert trip["dist_pos"].shape == (B,)
    assert trip["dist_neg"].shape == (B,)

    print("KERNEL_OK")
</pallas_src>

<mosaic_0001>
module attributes {stable_mosaic.version = 11 : i64} {
  func.func @_fused_backbone_kernel(%arg0: i32, %arg1: memref<1x18x18x4xf32, #tpu.memory_space<vmem>>, %arg2: memref<9x4x128xf32, #tpu.memory_space<vmem>>, %arg3: memref<1x128xf32, #tpu.memory_space<vmem>>, %arg4: memref<128x128xf32, #tpu.memory_space<vmem>>, %arg5: memref<1x128xf32, #tpu.memory_space<vmem>>, %arg6: memref<1x1x128xf32, #tpu.memory_space<vmem>>, %arg7: memref<256x128xf32, #tpu.memory_space<vmem>>) attributes {dimension_semantics = [#tpu.dimension_semantics<parallel>], iteration_bounds = array<i64: 2>, scalar_prefetch = 0 : i64, scratch_operands = 1 : i64, tpu.core_type = #tpu.core_type<tc>, window_params = [{transform_indices = @transform_0, window_bounds = array<i64: 1, 18, 18, 4>}, {pipeline_mode = #tpu.pipeline_mode<synchronous>, transform_indices = @transform_1, window_bounds = array<i64: 9, 4, 128>}, {pipeline_mode = #tpu.pipeline_mode<synchronous>, transform_indices = @transform_2, window_bounds = array<i64: 1, 128>}, {pipeline_mode = #tpu.pipeline_mode<synchronous>, transform_indices = @transform_3, window_bounds = array<i64: 128, 128>}, {pipeline_mode = #tpu.pipeline_mode<synchronous>, transform_indices = @transform_4, window_bounds = array<i64: 1, 128>}, {transform_indices = @transform_5, window_bounds = array<i64: 1, 1, 128>}]} {
    %cst = arith.constant 0.000000e+00 : f32
    %0 = vector.broadcast %cst : f32 to vector<256x128xf32>
    %c0 = arith.constant 0 : index
    %c0_0 = arith.constant 0 : index
    %1 = vector.load %arg7[%c0, %c0_0] : memref<256x128xf32, #tpu.memory_space<vmem>>, vector<256x128xf32>
    tpu.vector_store %arg7[%c0, %c0_0], %0 {strides = array<i32>} : memref<256x128xf32, #tpu.memory_space<vmem>>, vector<256x128xf32>,
    %c0_1 = arith.constant 0 : index
    %c0_2 = arith.constant 0 : index
    %c0_3 = arith.constant 0 : index
    %c0_4 = arith.constant 0 : index
    %2 = vector.load %arg1[%c0_1, %c0_2, %c0_3, %c0_4] : memref<1x18x18x4xf32, #tpu.memory_space<vmem>>, vector<1x16x16x4xf32>
    %3 = vector.shape_cast %2 : vector<1x16x16x4xf32> to vector<16x16x4xf32>
    %4 = vector.shape_cast %3 : vector<16x16x4xf32> to vector<256x4xf32>
    %c0_5 = arith.constant 0 : index
    %c0_6 = arith.constant 0 : index
    %5 = vector.load %arg7[%c0_5, %c0_6] : memref<256x128xf32, #tpu.memory_space<vmem>>, vector<256x128xf32>
    %c0_7 = arith.constant 0 : index
    %c0_8 = arith.constant 0 : index
    %c0_9 = arith.constant 0 : index
    %6 = vector.load %arg2[%c0_7, %c0_8, %c0_9] : memref<9x4x128xf32, #tpu.memory_space<vmem>>, vector<1x4x128xf32>
    %7 = vector.shape_cast %6 : vector<1x4x128xf32> to vector<4x128xf32>
    %cst_10 = arith.constant dense<0.000000e+00> : vector<256x128xf32>
    %8 = tpu.matmul %4, %7, %cst_10 {dimension_numbers = #tpu.dot_dimension_numbers<[1], [0], [0], [1], [0, 0, 1, 1], [], []>} : vector<256x4xf32>, vector<4x128xf32>, vector<256x128xf32> -> vector<256x128xf32>
    %9 = arith.addf %5, %8 : vector<256x128xf32>
    %c0_11 = arith.constant 0 : index
    %c0_12 = arith.constant 0 : index
    %10 = vector.load %arg7[%c0_11, %c0_12] : memref<256x128xf32, #tpu.memory_space<vmem>>, vector<256x128xf32>
    tpu.vector_store %arg7[%c0_11, %c0_12], %9 {strides = array<i32>} : memref<256x128xf32, #tpu.memory_space<vmem>>, vector<256x128xf32>,
    %c0_13 = arith.constant 0 : index
    %c0_14 = arith.constant 0 : index
    %c1 = arith.constant 1 : index
    %c0_15 = arith.constant 0 : index
    %11 = vector.load %arg1[%c0_13, %c0_14, %c1, %c0_15] : memref<1x18x18x4xf32, #tpu.memory_space<vmem>>, vector<1x16x16x4xf32>
    %12 = vector.shape_cast %11 : vector<1x16x16x4xf32> to vector<16x16x4xf32>
    %13 = vector.shape_cast %12 : vector<16x16x4xf32> to vector<256x4xf32>
    %c0_16 = arith.constant 0 : index
    %c0_17 = arith.constant 0 : index
    %14 = vector.load %arg7[%c0_16, %c0_17] : memref<256x128xf32, #tpu.memory_space<vmem>>, vector<256x128xf32>
    %c1_18 = arith.constant 1 : index
    %c0_19 = arith.constant 0 : index
    %c0_20 = arith.constant 0 : index
    %15 = vector.load %arg2[%c1_18, %c0_19, %c0_20] : memref<9x4x128xf32, #tpu.memory_space<vmem>>, vector<1x4x128xf32>
    %16 = vector.shape_cast %15 : vector<1x4x128xf32> to vector<4x128xf32>
    %cst_21 = arith.constant dense<0.000000e+00> : vector<256x128xf32>
    %17 = tpu.matmul %13, %16, %cst_21 {dimension_numbers = #tpu.dot_dimension_numbers<[1], [0], [0], [1], [0, 0, 1, 1], [], []>} : vector<256x4xf32>, vector<4x128xf32>, vector<256x128xf32> -> vector<256x128xf32>
    %18 = arith.addf %14, %17 : vector<256x128xf32>
    %c0_22 = arith.constant 0 : index
    %c0_23 = arith.constant 0 : index
    %19 = vector.load %arg7[%c0_22, %c0_23] : memref<256x128xf32, #tpu.memory_space<vmem>>, vector<256x128xf32>
    tpu.vector_store %arg7[%c0_22, %c0_23], %18 {strides = array<i32>} : memref<256x128xf32, #tpu.memory_space<vmem>>, vector<256x128xf32>,
    %c0_24 = arith.constant 0 : index
    %c0_25 = arith.constant 0 : index
    %c2 = arith.constant 2 : index
    %c0_26 = arith.constant 0 : index
    %20 = vector.load %arg1[%c0_24, %c0_25, %c2, %c0_26] : memref<1x18x18x4xf32, #tpu.memory_space<vmem>>, vector<1x16x16x4xf32>
    %21 = vector.shape_cast %20 : vector<1x16x16x4xf32> to vector<16x16x4xf32>
    %22 = vector.shape_cast %21 : vector<16x16x4xf32> to vector<256x4xf32>
    %c0_27 = arith.constant 0 : index
    %c0_28 = arith.constant 0 : index
    %23 = vector.load %arg7[%c0_27, %c0_28] : memref<256x128xf32, #tpu.memory_space<vmem>>, vector<256x128xf32>
    %c2_29 = arith.constant 2 : index
    %c0_30 = arith.constant 0 : index
    %c0_31 = arith.constant 0 : index
    %24 = vector.load %arg2[%c2_29, %c0_30, %c0_31] : memref<9x4x128xf32, #tpu.memory_space<vmem>>, vector<1x4x128xf32>
    %25 = vector.shape_cast %24 : vector<1x4x128xf32> to vector<4x128xf32>
    %cst_32 = arith.constant dense<0.000000e+00> : vector<256x128xf32>
    %26 = tpu.matmul %22, %25, %cst_32 {dimension_numbers = #tpu.dot_dimension_numbers<[1], [0], [0], [1], [0, 0, 1, 1], [], []>} : vector<256x4xf32>, vector<4x128xf32>, vector<256x128xf32> -> vector<256x128xf32>
    %27 = arith.addf %23, %26 : vector<256x128xf32>
    %c0_33 = arith.constant 0 : index
    %c0_34 = arith.constant 0 : index
    %28 = vector.load %arg7[%c0_33, %c0_34] : memref<256x128xf32, #tpu.memory_space<vmem>>, vector<256x128xf32>
    tpu.vector_store %arg7[%c0_33, %c0_34], %27 {strides = array<i32>} : memref<256x128xf32, #tpu.memory_space<vmem>>, vector<256x128xf32>,
    %c0_35 = arith.constant 0 : index
    %c1_36 = arith.constant 1 : index
    %c0_37 = arith.constant 0 : index
    %c0_38 = arith.constant 0 : index
    %29 = vector.load %arg1[%c0_35, %c1_36, %c0_37, %c0_38] : memref<1x18x18x4xf32, #tpu.memory_space<vmem>>, vector<1x16x16x4xf32>
    %30 = vector.shape_cast %29 : vector<1x16x16x4xf32> to vector<16x16x4xf32>
    %31 = vector.shape_cast %30 : vector<16x16x4xf32> to vector<256x4xf32>
    %c0_39 = arith.constant 0 : index
    %c0_40 = arith.constant 0 : index
    %32 = vector.load %arg7[%c0_39, %c0_40] : memref<256x128xf32, #tpu.memory_space<vmem>>, vector<256x128xf32>
    %c3 = arith.constant 3 : index
    %c0_41 = arith.constant 0 : index
    %c0_42 = arith.constant 0 : index
    %33 = vector.load %arg2[%c3, %c0_41, %c0_42] : memref<9x4x128xf32, #tpu.memory_space<vmem>>, vector<1x4x128xf32>
    %34 = vector.shape_cast %33 : vector<1x4x128xf32> to vector<4x128xf32>
    %cst_43 = arith.constant dense<0.000000e+00> : vector<256x128xf32>
    %35 = tpu.matmul %31, %34, %cst_43 {dimension_numbers = #tpu.dot_dimension_numbers<[1], [0], [0], [1], [0, 0, 1, 1], [], []>} : vector<256x4xf32>, vector<4x128xf32>, vector<256x128xf32> -> vector<256x128xf32>
    %36 = arith.addf %32, %35 : vector<256x128xf32>
    %c0_44 = arith.constant 0 : index
    %c0_45 = arith.constant 0 : index
    %37 = vector.load %arg7[%c0_44, %c0_45] : memref<256x128xf32, #tpu.memory_space<vmem>>, vector<256x128xf32>
    tpu.vector_store %arg7[%c0_44, %c0_45], %36 {strides = array<i32>} : memref<256x128xf32, #tpu.memory_space<vmem>>, vector<256x128xf32>,
    %c0_46 = arith.constant 0 : index
    %c1_47 = arith.constant 1 : index
    %c1_48 = arith.constant 1 : index
    %c0_49 = arith.constant 0 : index
    %38 = vector.load %arg1[%c0_46, %c1_47, %c1_48, %c0_49] : memref<1x18x18x4xf32, #tpu.memory_space<vmem>>, vector<1x16x16x4xf32>
    %39 = vector.shape_cast %38 : vector<1x16x16x4xf32> to vector<16x16x4xf32>
    %40 = vector.shape_cast %39 : vector<16x16x4xf32> to vector<256x4xf32>
    %c0_50 = arith.constant 0 : index
    %c0_51 = arith.constant 0 : index
    %41 = vector.load %arg7[%c0_50, %c0_51] : memref<256x128xf32, #tpu.memory_space<vmem>>, vector<256x128xf32>
    %c4 = arith.constant 4 : index
    %c0_52 = arith.constant 0 : index
    %c0_53 = arith.constant 0 : index
    %42 = vector.load %arg2[%c4, %c0_52, %c0_53] : memref<9x4x128xf32, #tpu.memory_space<vmem>>, vector<1x4x128xf32>
    %43 = vector.shape_cast %42 : vector<1x4x128xf32> to vector<4x128xf32>
    %cst_54 = arith.constant dense<0.000000e+00> : vector<256x128xf32>
    %44 = tpu.matmul %40, %43, %cst_54 {dimension_numbers = #tpu.dot_dimension_numbers<[1], [0], [0], [1], [0, 0, 1, 1], [], []>} : vector<256x4xf32>, vector<4x128xf32>, vector<256x128xf32> -> vector<256x128xf32>
    %45 = arith.addf %41, %44 : vector<256x128xf32>
    %c0_55 = arith.constant 0 : index
    %c0_56 = arith.constant 0 : index
    %46 = vector.load %arg7[%c0_55, %c0_56] : memref<256x128xf32, #tpu.memory_space<vmem>>, vector<256x128xf32>
    tpu.vector_store %arg7[%c0_55, %c0_56], %45 {strides = array<i32>} : memref<256x128xf32, #tpu.memory_space<vmem>>, vector<256x128xf32>,
    %c0_57 = arith.constant 0 : index
    %c1_58 = arith.constant 1 : index
    %c2_59 = arith.constant 2 : index
    %c0_60 = arith.constant 0 : index
    %47 = vector.load %arg1[%c0_57, %c1_58, %c2_59, %c0_60] : memref<1x18x18x4xf32, #tpu.memory_space<vmem>>, vector<1x16x16x4xf32>
    %48 = vector.shape_cast %47 : vector<1x16x16x4xf32> to vector<16x16x4xf32>
    %49 = vector.shape_cast %48 : vector<16x16x4xf32> to vector<256x4xf32>
    %c0_61 = arith.constant 0 : index
    %c0_62 = arith.constant 0 : index
    %50 = vector.load %arg7[%c0_61, %c0_62] : memref<256x128xf32, #tpu.memory_space<vmem>>, vector<256x128xf32>
    %c5 = arith.constant 5 : index
    %c0_63 = arith.constant 0 : index
    %c0_64 = arith.constant 0 : index
    %51 = vector.load %arg2[%c5, %c0_63, %c0_64] : memref<9x4x128xf32, #tpu.memory_space<vmem>>, vector<1x4x128xf32>
    %52 = vector.shape_cast %51 : vector<1x4x128xf32> to vector<4x128xf32>
    %cst_65 = arith.constant dense<0.000000e+00> : vector<256x128xf32>
    %53 = tpu.matmul %49, %52, %cst_65 {dimension_numbers = #tpu.dot_dimension_numbers<[1], [0], [0], [1], [0, 0, 1, 1], [], []>} : vector<256x4xf32>, vector<4x128xf32>, vector<256x128xf32> -> vector<256x128xf32>
    %54 = arith.addf %50, %53 : vector<256x128xf32>
    %c0_66 = arith.constant 0 : index
    %c0_67 = arith.constant 0 : index
    %55 = vector.load %arg7[%c0_66, %c0_67] : memref<256x128xf32, #tpu.memory_space<vmem>>, vector<256x128xf32>
    tpu.vector_store %arg7[%c0_66, %c0_67], %54 {strides = array<i32>} : memref<256x128xf32, #tpu.memory_space<vmem>>, vector<256x128xf32>,
    %c0_68 = arith.constant 0 : index
    %c2_69 = arith.constant 2 : index
    %c0_70 = arith.constant 0 : index
    %c0_71 = arith.constant 0 : index
    %56 = vector.load %arg1[%c0_68, %c2_69, %c0_70, %c0_71] : memref<1x18x18x4xf32, #tpu.memory_space<vmem>>, vector<1x16x16x4xf32>
    %57 = vector.shape_cast %56 : vector<1x16x16x4xf32> to vector<16x16x4xf32>
    %58 = vector.shape_cast %57 : vector<16x16x4xf32> to vector<256x4xf32>
    %c0_72 = arith.constant 0 : index
    %c0_73 = arith.constant 0 : index
    %59 = vector.load %arg7[%c0_72, %c0_73] : memref<256x128xf32, #tpu.memory_space<vmem>>, vector<256x128xf32>
    %c6 = arith.constant 6 : index
    %c0_74 = arith.constant 0 : index
    %c0_75 = arith.constant 0 : index
    %60 = vector.load %arg2[%c6, %c0_74, %c0_75] : memref<9x4x128xf32, #tpu.memory_space<vmem>>, vector<1x4x128xf32>
    %61 = vector.shape_cast %60 : vector<1x4x128xf32> to vector<4x128xf32>
    %cst_76 = arith.constant dense<0.000000e+00> : vector<256x128xf32>
    %62 = tpu.matmul %58, %61, %cst_76 {dimension_numbers = #tpu.dot_dimension_numbers<[1], [0], [0], [1], [0, 0, 1, 1], [], []>} : vector<256x4xf32>, vector<4x128xf32>, vector<256x128xf32> -> vector<256x128xf32>
    %63 = arith.addf %59, %62 : vector<256x128xf32>
    %c0_77 = arith.constant 0 : index
    %c0_78 = arith.constant 0 : index
    %64 = vector.load %arg7[%c0_77, %c0_78] : memref<256x128xf32, #tpu.memory_space<vmem>>, vector<256x128xf32>
    tpu.vector_store %arg7[%c0_77, %c0_78], %63 {strides = array<i32>} : memref<256x128xf32, #tpu.memory_space<vmem>>, vector<256x128xf32>,
    %c0_79 = arith.constant 0 : index
    %c2_80 = arith.constant 2 : index
    %c1_81 = arith.constant 1 : index
    %c0_82 = arith.constant 0 : index
    %65 = vector.load %arg1[%c0_79, %c2_80, %c1_81, %c0_82] : memref<1x18x18x4xf32, #tpu.memory_space<vmem>>, vector<1x16x16x4xf32>
    %66 = vector.shape_cast %65 : vector<1x16x16x4xf32> to vector<16x16x4xf32>
    %67 = vector.shape_cast %66 : vector<16x16x4xf32> to vector<256x4xf32>
    %c0_83 = arith.constant 0 : index
    %c0_84 = arith.constant 0 : index
    %68 = vector.load %arg7[%c0_83, %c0_84] : memref<256x128xf32, #tpu.memory_space<vmem>>, vector<256x128xf32>
    %c7 = arith.constant 7 : index
    %c0_85 = arith.constant 0 : index
    %c0_86 = arith.constant 0 : index
    %69 = vector.load %arg2[%c7, %c0_85, %c0_86] : memref<9x4x128xf32, #tpu.memory_space<vmem>>, vector<1x4x128xf32>
    %70 = vector.shape_cast %69 : vector<1x4x128xf32> to vector<4x128xf32>
    %cst_87 = arith.constant dense<0.000000e+00> : vector<256x128xf32>
    %71 = tpu.matmul %67, %70, %cst_87 {dimension_numbers = #tpu.dot_dimension_numbers<[1], [0], [0], [1], [0, 0, 1, 1], [], []>} : vector<256x4xf32>, vector<4x128xf32>, vector<256x128xf32> -> vector<256x128xf32>
    %72 = arith.addf %68, %71 : vector<256x128xf32>
    %c0_88 = arith.constant 0 : index
    %c0_89 = arith.constant 0 : index
    %73 = vector.load %arg7[%c0_88, %c0_89] : memref<256x128xf32, #tpu.memory_space<vmem>>, vector<256x128xf32>
    tpu.vector_store %arg7[%c0_88, %c0_89], %72 {strides = array<i32>} : memref<256x128xf32, #tpu.memory_space<vmem>>, vector<256x128xf32>,
    %c0_90 = arith.constant 0 : index
    %c2_91 = arith.constant 2 : index
    %c2_92 = arith.constant 2 : index
    %c0_93 = arith.constant 0 : index
    %74 = vector.load %arg1[%c0_90, %c2_91, %c2_92, %c0_93] : memref<1x18x18x4xf32, #tpu.memory_space<vmem>>, vector<1x16x16x4xf32>
    %75 = vector.shape_cast %74 : vector<1x16x16x4xf32> to vector<16x16x4xf32>
    %76 = vector.shape_cast %75 : vector<16x16x4xf32> to vector<256x4xf32>
    %c0_94 = arith.constant 0 : index
    %c0_95 = arith.constant 0 : index
    %77 = vector.load %arg7[%c0_94, %c0_95] : memref<256x128xf32, #tpu.memory_space<vmem>>, vector<256x128xf32>
    %c8 = arith.constant 8 : index
    %c0_96 = arith.constant 0 : index
    %c0_97 = arith.constant 0 : index
    %78 = vector.load %arg2[%c8, %c0_96, %c0_97] : memref<9x4x128xf32, #tpu.memory_space<vmem>>, vector<1x4x128xf32>
    %79 = vector.shape_cast %78 : vector<1x4x128xf32> to vector<4x128xf32>
    %cst_98 = arith.constant dense<0.000000e+00> : vector<256x128xf32>
    %80 = tpu.matmul %76, %79, %cst_98 {dimension_numbers = #tpu.dot_dimension_numbers<[1], [0], [0], [1], [0, 0, 1, 1], [], []>} : vector<256x4xf32>, vector<4x128xf32>, vector<256x128xf32> -> vector<256x128xf32>
    %81 = arith.addf %77, %80 : vector<256x128xf32>
    %c0_99 = arith.constant 0 : index
    %c0_100 = arith.constant 0 : index
    %82 = vector.load %arg7[%c0_99, %c0_100] : memref<256x128xf32, #tpu.memory_space<vmem>>, vector<256x128xf32>
    tpu.vector_store %arg7[%c0_99, %c0_100], %81 {strides = array<i32>} : memref<256x128xf32, #tpu.memory_space<vmem>>, vector<256x128xf32>,
    %c0_101 = arith.constant 0 : index
    %c0_102 = arith.constant 0 : index
    %83 = vector.load %arg7[%c0_101, %c0_102] : memref<256x128xf32, #tpu.memory_space<vmem>>, vector<256x128xf32>
    %c0_103 = arith.constant 0 : index
    %c0_104 = arith.constant 0 : index
    %84 = vector.load %arg3[%c0_103, %c0_104] : memref<1x128xf32, #tpu.memory_space<vmem>>, vector<1x128xf32>
    %85 = vector.broadcast %84 : vector<1x128xf32> to vector<256x128xf32>
    %86 = arith.addf %83, %85 : vector<256x128xf32>
    %cst_105 = arith.constant 0.000000e+00 : f32
    %87 = vector.broadcast %cst_105 : f32 to vector<256x128xf32>
    %88 = arith.maximumf %86, %87 : vector<256x128xf32>
    %cst_106 = arith.constant 3.906250e-03 : f32
    %89 = vector.broadcast %cst_106 : f32 to vector<1x256xf32>
    %cst_107 = arith.constant dense<0.000000e+00> : vector<1x128xf32>
    %90 = tpu.matmul %89, %88, %cst_107 {dimension_numbers = #tpu.dot_dimension_numbers<[1], [0], [0], [1], [0, 0, 1, 1], [], []>} : vector<1x256xf32>, vector<256x128xf32>, vector<1x128xf32> -> vector<1x128xf32>
    %c0_108 = arith.constant 0 : index
    %c0_109 = arith.constant 0 : index
    %91 = vector.load %arg4[%c0_108, %c0_109] : memref<128x128xf32, #tpu.memory_space<vmem>>, vector<128x128xf32>
    %cst_110 = arith.constant dense<0.000000e+00> : vector<1x128xf32>
    %92 = tpu.matmul %90, %91, %cst_110 {dimension_numbers = #tpu.dot_dimension_numbers<[1], [0], [0], [1], [0, 0, 1, 1], [], []>} : vector<1x128xf32>, vector<128x128xf32>, vector<1x128xf32> -> vector<1x128xf32>
    %c0_111 = arith.constant 0 : index
    %c0_112 = arith.constant 0 : index
    %93 = vector.load %arg5[%c0_111, %c0_112] : memref<1x128xf32, #tpu.memory_space<vmem>>, vector<1x128xf32>
    %94 = arith.addf %92, %93 : vector<1x128xf32>
    %c0_113 = arith.constant 0 : index
    %c0_114 = arith.constant 0 : index
    %c0_115 = arith.constant 0 : index
    %95 = vector.load %arg6[%c0_113, %c0_114, %c0_115] : memref<1x1x128xf32, #tpu.memory_space<vmem>>, vector<1x1x128xf32>
    %96 = vector.shape_cast %95 : vector<1x1x128xf32> to vector<1x128xf32>
    %97 = vector.shape_cast %94 : vector<1x128xf32> to vector<1x1x128xf32>
    tpu.vector_store %arg6[%c0_113, %c0_114, %c0_115], %97 {strides = array<i32>} : memref<1x1x128xf32, #tpu.memory_space<vmem>>, vector<1x1x128xf32>,
    return
  }
  func.func @transform_0(%arg0: i32) -> (i32, i32, i32, i32) {
    %c0_i32 = arith.constant 0 : i32
    %c0_i32_0 = arith.constant 0 : i32
    %c0_i32_1 = arith.constant 0 : i32
    %c0_i32_2 = arith.constant 0 : i32
    return %arg0, %c0_i32, %c0_i32_0, %c0_i32_1 : i32, i32, i32, i32
  }
  func.func @transform_1(%arg0: i32) -> (i32, i32, i32) {
    %c0_i32 = arith.constant 0 : i32
    %c0_i32_0 = arith.constant 0 : i32
    %c0_i32_1 = arith.constant 0 : i32
    %c0_i32_2 = arith.constant 0 : i32
    return %c0_i32, %c0_i32_0, %c0_i32_1 : i32, i32, i32
  }
  func.func @transform_2(%arg0: i32) -> (i32, i32) {
    %c0_i32 = arith.constant 0 : i32
    %c0_i32_0 = arith.constant 0 : i32
    %c0_i32_1 = arith.constant 0 : i32
    return %c0_i32, %c0_i32_0 : i32, i32
  }
  func.func @transform_3(%arg0: i32) -> (i32, i32) {
    %c0_i32 = arith.constant 0 : i32
    %c0_i32_0 = arith.constant 0 : i32
    %c0_i32_1 = arith.constant 0 : i32
    return %c0_i32, %c0_i32_0 : i32, i32
  }
  func.func @transform_4(%arg0: i32) -> (i32, i32) {
    %c0_i32 = arith.constant 0 : i32
    %c0_i32_0 = arith.constant 0 : i32
    %c0_i32_1 = arith.constant 0 : i32
    return %c0_i32, %c0_i32_0 : i32, i32
  }
  func.func @transform_5(%arg0: i32) -> (i32, i32, i32) {
    %c0_i32 = arith.constant 0 : i32
    %c0_i32_0 = arith.constant 0 : i32
    %c0_i32_1 = arith.constant 0 : i32
    return %arg0, %c0_i32, %c0_i32_0 : i32, i32, i32
  }
}

</mosaic_0001>

<llo_original>
// kernel: backbone_forward.1
$region0: #{backbone_forward.1}
  #allocation0 [shape = 'u32[]', space=smem, size = 0x4, offset = 0x4, fixed_abs, tag = 'smem constant byte address 0x4 - core index']
  #allocation1 [shape = 'u32[144,128]{1,0:T(1,128)}', space=vmem, size = 0x12000, scoped, tag = 'internal scratch']
  #allocation2 [shape = 'f32[256,128]{1,0:T(8,128)}', space=vmem, size = 0x20000, scoped, tag = 'scratch operand']
  %s0 = inlined_call_operand.vmem [shape: f32[2,18,18,4], index: 0, kind: input, shape index: {}]
  %s1 = inlined_call_operand.vmem [shape: f32[9,4,128], index: 1, kind: input, shape index: {}]
  %s2 = inlined_call_operand.vmem [shape: f32[1,128], index: 2, kind: input, shape index: {}]
  %s3 = inlined_call_operand.vmem [shape: f32[128,128], index: 3, kind: input, shape index: {}]
  %s4 = inlined_call_operand.vmem [shape: f32[1,128], index: 4, kind: input, shape index: {}]
  %s5 = inlined_call_operand.hbm [shape: f32[2,1,128], index: 5, kind: output, shape index: {}]
  %s6 = sld [smem:[#allocation0]]
  $region53: #{backbone_forward.1} parent=0
    _
  %s8 = ssub.s32 1, %s6
  %s9 = scalar_select 0, %s8, %s6
  $region1: #{backbone_forward.1} parent=0
    #allocation3 [shape = 'u8[1024]{0}', space=vmem, size = 0x400, scoped, tag = 'output window, operand 0']
    #allocation4 [shape = 's32[2]{0}', space=sflag, size = 0x8, scoped, tag = 'scoped memory for backbone_forward.1']
    %10 = vsyncpa [#allocation4], 0
    %s11 = scalar_lea.sflag [#allocation4], 1
    %12 = vsyncpa %s11, 0
    loop: start=0, step=1, limit=4
    $region2: #{backbone_forward.1} parent=1 // loop_pre_header
      _
    $region3: #{backbone_forward.1} parent=1 // loop_header
      %s14 = sphi 0, %s18
      %p15 = scmp.ge.s32.totalorder %s14, 4
      %s24 = sphi 0, %s26
      %s27 = sphi 0, %s24
      %s28 = sphi 0, %s27
      %s44 = sphi 0, %s28
      %s48 = sphi 0, %s48
      %s50 = sphi 0, %s48
      %s51 = sphi 0, %s50
      %s65 = sphi 0, %s51
      %s69 = sphi 0, %s69
      %s71 = sphi 0, %s69
      %s72 = sphi 0, %s71
      %s86 = sphi 0, %s72
      %s90 = sphi 0, %s90
      %s92 = sphi 0, %s90
      %s93 = sphi 0, %s92
      %s107 = sphi 0, %s93
      %s111 = sphi 0, %s111
      %s113 = sphi 0, %s111
      %s114 = sphi 0, %s113
      %s128 = sphi 0, %s114
      %s134 = sphi 0, %s136
      %s137 = sphi 0, %s134
      %s138 = sphi 0, %s137
      %s154 = sphi 0, %s138
    $region4: #{backbone_forward.1} parent=1 // loop_header_branch
      %17 = sbr.rel (%p15) target = $region8
    $region5: #{backbone_forward.1} parent=1 // loop_body
      %s19 = ssub.s32 %s14, 1
      %s20 = ssub.s32 %s14, 2
      %s21 = sadd.s32 %s14, 1
      %s22 = ssub.s32 %s14, %s21
      %p23 = scmp.eq.s32.totalorder %s22, 0
      %s25 = sadd.s32 %s24, 1
      %s26 = scalar_select %p23, %s24, %s25
      %p29 = pneg %p23
      %p30 = scmp.eq.s32.totalorder %s14, 1
      %p31 = por %p29, %p30
      %p32 = scmp.ne.s32.totalorder %s24, %s27
      %p33 = scmp.eq.s32.totalorder %s14, 0
      %p34 = por %p32, %p33
      %p35 = scmp.ne.s32.totalorder %s24, %s27
      %p36 = scmp.eq.s32.totalorder %s19, 1
      %p37 = por %p35, %p36
      %p38 = scmp.ne.s32.totalorder %s27, %s28
      %p39 = scmp.eq.s32.totalorder %s19, 0
      %p40 = por %p38, %p39
      %p41 = scmp.ne.s32.totalorder %s27, %s28
      %p42 = scmp.eq.s32.totalorder %s20, 1
      %p43 = por %p41, %p42
      %p45 = scmp.ne.s32.totalorder %s28, %s44
      %p46 = scmp.eq.s32.totalorder %s20, 0
      %p47 = por %p45, %p46
      %s49 = sadd.s32 %s48, 1
      %p52 = scmp.eq.s32.totalorder %s14, 1
      %p53 = scmp.ne.s32.totalorder %s48, %s50
      %p54 = scmp.eq.s32.totalorder %s14, 0
      %p55 = por %p53, %p54
      %p56 = scmp.ne.s32.totalorder %s48, %s50
      %p57 = scmp.eq.s32.totalorder %s19, 1
      %p58 = por %p56, %p57
      %p59 = scmp.ne.s32.totalorder %s50, %s51
      %p60 = scmp.eq.s32.totalorder %s19, 0
      %p61 = por %p59, %p60
      %p62 = scmp.ne.s32.totalorder %s50, %s51
      %p63 = scmp.eq.s32.totalorder %s20, 1
      %p64 = por %p62, %p63
      %p66 = scmp.ne.s32.totalorder %s51, %s65
      %p67 = scmp.eq.s32.totalorder %s20, 0
      %p68 = por %p66, %p67
      %s70 = sadd.s32 %s69, 1
      %p73 = scmp.eq.s32.totalorder %s14, 1
      %p74 = scmp.ne.s32.totalorder %s69, %s71
      %p75 = scmp.eq.s32.totalorder %s14, 0
      %p76 = por %p74, %p75
      %p77 = scmp.ne.s32.totalorder %s69, %s71
      %p78 = scmp.eq.s32.totalorder %s19, 1
      %p79 = por %p77, %p78
      %p80 = scmp.ne.s32.totalorder %s71, %s72
      %p81 = scmp.eq.s32.totalorder %s19, 0
      %p82 = por %p80, %p81
      %p83 = scmp.ne.s32.totalorder %s71, %s72
      %p84 = scmp.eq.s32.totalorder %s20, 1
      %p85 = por %p83, %p84
      %p87 = scmp.ne.s32.totalorder %s72, %s86
      %p88 = scmp.eq.s32.totalorder %s20, 0
      %p89 = por %p87, %p88
      %s91 = sadd.s32 %s90, 1
      %p94 = scmp.eq.s32.totalorder %s14, 1
      %p95 = scmp.ne.s32.totalorder %s90, %s92
      %p96 = scmp.eq.s32.totalorder %s14, 0
      %p97 = por %p95, %p96
      %p98 = scmp.ne.s32.totalorder %s90, %s92
      %p99 = scmp.eq.s32.totalorder %s19, 1
      %p100 = por %p98, %p99
      %p101 = scmp.ne.s32.totalorder %s92, %s93
      %p102 = scmp.eq.s32.totalorder %s19, 0
      %p103 = por %p101, %p102
      %p104 = scmp.ne.s32.totalorder %s92, %s93
      %p105 = scmp.eq.s32.totalorder %s20, 1
      %p106 = por %p104, %p105
      %p108 = scmp.ne.s32.totalorder %s93, %s107
      %p109 = scmp.eq.s32.totalorder %s20, 0
      %p110 = por %p108, %p109
      %s112 = sadd.s32 %s111, 1
      %p115 = scmp.eq.s32.totalorder %s14, 1
      %p116 = scmp.ne.s32.totalorder %s111, %s113
      %p117 = scmp.eq.s32.totalorder %s14, 0
      %p118 = por %p116, %p117
      %p119 = scmp.ne.s32.totalorder %s111, %s113
      %p120 = scmp.eq.s32.totalorder %s19, 1
      %p121 = por %p119, %p120
      %p122 = scmp.ne.s32.totalorder %s113, %s114
      %p123 = scmp.eq.s32.totalorder %s19, 0
      %p124 = por %p122, %p123
      %p125 = scmp.ne.s32.totalorder %s113, %s114
      %p126 = scmp.eq.s32.totalorder %s20, 1
      %p127 = por %p125, %p126
      %p129 = scmp.ne.s32.totalorder %s114, %s128
      %p130 = scmp.eq.s32.totalorder %s20, 0
      %p131 = por %p129, %p130
      %s132 = ssub.s32 %s14, %s21
      %p133 = scmp.eq.s32.totalorder %s132, 0
      %s135 = sadd.s32 %s134, 1
      %s136 = scalar_select %p133, %s134, %s135
      %p139 = pneg %p133
      %p140 = scmp.eq.s32.totalorder %s14, 1
      %p141 = por %p139, %p140
      %p142 = scmp.ne.s32.totalorder %s134, %s137
      %p143 = scmp.eq.s32.totalorder %s14, 0
      %p144 = por %p142, %p143
      %p145 = scmp.ne.s32.totalorder %s134, %s137
      %p146 = scmp.eq.s32.totalorder %s19, 1
      %p147 = por %p145, %p146
      %p148 = scmp.ne.s32.totalorder %s137, %s138
      %p149 = scmp.eq.s32.totalorder %s19, 0
      %p150 = por %p148, %p149
      %p151 = scmp.ne.s32.totalorder %s137, %s138
      %p152 = scmp.eq.s32.totalorder %s20, 1
      %p153 = por %p151, %p152
      %p155 = scmp.ne.s32.totalorder %s138, %s154
      %p156 = scmp.eq.s32.totalorder %s20, 0
      %p157 = por %p155, %p156
      %p158 = scmp.le.s32.totalorder 1, %s14
      %p159 = scmp.lt.s32.totalorder %s14, 3
      %p160 = pnand %p158, %p159
      %p161 = pneg %p160
      // Predicated region
      $region9: #{backbone_forward.1} parent=5 // pred_check
        _
      $region10: #{backbone_forward.1} parent=5 // pred_check_branch
        %163 = sbr.rel (%p160) target = $region12
      $region11: #{backbone_forward.1} parent=5 // pred_region
        %s164 = ssub.s32 %s14, 1
        // Predicated region
        $region13: #{backbone_forward.1} parent=11 // pred_check
          %p165 = pneg %p61
        $region14: #{backbone_forward.1} parent=11 // pred_check_branch
          %167 = sbr.rel (%p165) target = $region16
        $region15: #{backbone_forward.1} parent=11 // pred_region
          _
        $region16: #{backbone_forward.1} parent=11 // pred_fallthru
          _
        // Predicated region
        $region17: #{backbone_forward.1} parent=11 // pred_check
          %p168 = pneg %p82
        $region18: #{backbone_forward.1} parent=11 // pred_check_branch
          %170 = sbr.rel (%p168) target = $region20
        $region19: #{backbone_forward.1} parent=11 // pred_region
          _
        $region20: #{backbone_forward.1} parent=11 // pred_fallthru
          _
        // Predicated region
        $region21: #{backbone_forward.1} parent=11 // pred_check
          %p171 = pneg %p103
        $region22: #{backbone_forward.1} parent=11 // pred_check_branch
          %173 = sbr.rel (%p171) target = $region24
        $region23: #{backbone_forward.1} parent=11 // pred_region
          _
        $region24: #{backbone_forward.1} parent=11 // pred_fallthru
          _
        // Predicated region
        $region25: #{backbone_forward.1} parent=11 // pred_check
          %p174 = pneg %p124
        $region26: #{backbone_forward.1} parent=11 // pred_check_branch
          %176 = sbr.rel (%p174) target = $region28
        $region27: #{backbone_forward.1} parent=11 // pred_region
          _
        $region28: #{backbone_forward.1} parent=11 // pred_fallthru
          _
      $region12: #{backbone_forward.1} parent=5 // pred_fallthru
        _
      %p177 = scmp.lt.s32.totalorder %s14, 2
      // Predicated region
      $region29: #{backbone_forward.1} parent=5 // pred_check
        %p178 = pneg %p177
      $region30: #{backbone_forward.1} parent=5 // pred_check_branch
        %180 = sbr.rel (%p178) target = $region32
      $region31: #{backbone_forward.1} parent=5 // pred_region
        // Predicated region
        $region33: #{backbone_forward.1} parent=31 // pred_check
          %p181 = pneg %p34
        $region34: #{backbone_forward.1} parent=31 // pred_check_branch
          %183 = sbr.rel (%p181) target = $region36
        $region35: #{backbone_forward.1} parent=31 // pred_region
          %p184 = scmp.lt.s32.totalorder %s14, 1
          %s185 = scalar_select %p184, %s14, 1
          %s186 = smul.addr %s185, 54
          %s187 = smul.addr %s186, 8
          %s188 = scalar_lea.vmem %s0, %s187
        $region36: #{backbone_forward.1} parent=31 // pred_fallthru
          _
      $region32: #{backbone_forward.1} parent=5 // pred_fallthru
        _
      %p189 = scmp.le.s32.totalorder 1, %s14
      %p190 = scmp.lt.s32.totalorder %s14, 3
      %p191 = pnand %p189, %p190
      %p192 = pneg %p191
      // Predicated region
      $region37: #{backbone_forward.1} parent=5 // pred_check
        _
      $region38: #{backbone_forward.1} parent=5 // pred_check_branch
        %194 = sbr.rel (%p191) target = $region40
      $region39: #{backbone_forward.1} parent=5 // pred_region
        %s195 = ssub.s32 %s14, 1
        %p196 = scmp.lt.s32.totalorder %s19, 1
        %s197 = scalar_select %p196, %s19, 1
        %s198 = smul.addr %s197, 54
        %s199 = smul.addr %s198, 8
        %s200 = scalar_lea.vmem %s0, %s199
        %p201 = pneg %p40
        %p202 = pneg %p37
        %p203 = pneg %p61
        %p204 = pneg %p58
        %p205 = pneg %p82
        %p206 = pneg %p79
        %p207 = pneg %p103
        %p208 = pneg %p100
        %p209 = pneg %p124
        %p210 = pneg %p121
        %p211 = pneg %p150
        %p212 = pneg %p147
        %s213 = sand.u32 %s137, 1
        %s214 = scalar_lea.sflag [#allocation4], %s213
        %s215 = sand.u32 %s137, 1
        %s216 = scalar_lea.vmem [#allocation3], %s215
        %p217 = scmp.lt.s32.totalorder %s19, 1
        %s218 = scalar_select %p217, %s19, 1
        %s219 = smul.addr %s218, 54
        %s220 = smul.addr %s219, 8
        %s221 = scalar_lea.vmem %s0, %s220
        %222 = vst [vmem:[#allocation2] sm:$0xff] 0.0
        %223 = vst [vmem:[#allocation2 + $0x8] sm:$0xff] 0.0
        %224 = vst [vmem:[#allocation2 + $0x10] sm:$0xff] 0.0
        %225 = vst [vmem:[#allocation2 + $0x18] sm:$0xff] 0.0
        %226 = vst [vmem:[#allocation2 + $0x20] sm:$0xff] 0.0
        %227 = vst [vmem:[#allocation2 + $0x28] sm:$0xff] 0.0
        %228 = vst [vmem:[#allocation2 + $0x30] sm:$0xff] 0.0
        %229 = vst [vmem:[#allocation2 + $0x38] sm:$0xff] 0.0
        %230 = vst [vmem:[#allocation2 + $0x40] sm:$0xff] 0.0
        %231 = vst [vmem:[#allocation2 + $0x48] sm:$0xff] 0.0
        %232 = vst [vmem:[#allocation2 + $0x50] sm:$0xff] 0.0
        %233 = vst [vmem:[#allocation2 + $0x58] sm:$0xff] 0.0
        %234 = vst [vmem:[#allocation2 + $0x60] sm:$0xff] 0.0
        %235 = vst [vmem:[#allocation2 + $0x68] sm:$0xff] 0.0
        %236 = vst [vmem:[#allocation2 + $0x70] sm:$0xff] 0.0
        %237 = vst [vmem:[#allocation2 + $0x78] sm:$0xff] 0.0
        %238 = vst [vmem:[#allocation2 + $0x80] sm:$0xff] 0.0
        %239 = vst [vmem:[#allocation2 + $0x88] sm:$0xff] 0.0
        %240 = vst [vmem:[#allocation2 + $0x90] sm:$0xff] 0.0
        %241 = vst [vmem:[#allocation2 + $0x98] sm:$0xff] 0.0
        %242 = vst [vmem:[#allocation2 + $0xa0] sm:$0xff] 0.0
        %243 = vst [vmem:[#allocation2 + $0xa8] sm:$0xff] 0.0
        %244 = vst [vmem:[#allocation2 + $0xb0] sm:$0xff] 0.0
        %245 = vst [vmem:[#allocation2 + $0xb8] sm:$0xff] 0.0
        %246 = vst [vmem:[#allocation2 + $0xc0] sm:$0xff] 0.0
        %247 = vst [vmem:[#allocation2 + $0xc8] sm:$0xff] 0.0
        %248 = vst [vmem:[#allocation2 + $0xd0] sm:$0xff] 0.0
        %249 = vst [vmem:[#allocation2 + $0xd8] sm:$0xff] 0.0
        %250 = vst [vmem:[#allocation2 + $0xe0] sm:$0xff] 0.0
        %251 = vst [vmem:[#allocation2 + $0xe8] sm:$0xff] 0.0
        %252 = vst [vmem:[#allocation2 + $0xf0] sm:$0xff] 0.0
        %253 = vst [vmem:[#allocation2 + $0xf8] sm:$0xff] 0.0
        %v254 = vld [vmem:[%s221] sm:$0xff]
        %v255 = vld [vmem:[%s221 + $0x8] sm:$0xff]
        %v256 = vld [vmem:[%s221 + $0x18] sm:$0xff]
        %v257 = vld [vmem:[%s221 + $0x20] sm:$0xff]
        %v258 = vld [vmem:[%s221 + $0x30] sm:$0xff]
        %v259 = vld [vmem:[%s221 + $0x38] sm:$0xff]
        %v260 = vld [vmem:[%s221 + $0x48] sm:$0xff]
        %v261 = vld [vmem:[%s221 + $0x50] sm:$0xff]
        %v262 = vld [vmem:[%s221 + $0x60] sm:$0xff]
        %v263 = vld [vmem:[%s221 + $0x68] sm:$0xff]
        %v264 = vld [vmem:[%s221 + $0x78] sm:$0xff]
        %v265 = vld [vmem:[%s221 + $0x80] sm:$0xff]
        %v266 = vld [vmem:[%s221 + $0x90] sm:$0xff]
        %v267 = vld [vmem:[%s221 + $0x98] sm:$0xff]
        %v268 = vld [vmem:[%s221 + $0xa8] sm:$0xff]
        %v269 = vld [vmem:[%s221 + $0xb0] sm:$0xff]
        %v270 = vld [vmem:[%s221 + $0xc0] sm:$0xff]
        %v271 = vld [vmem:[%s221 + $0xc8] sm:$0xff]
        %v272 = vld [vmem:[%s221 + $0xd8] sm:$0xff]
        %v273 = vld [vmem:[%s221 + $0xe0] sm:$0xff]
        %v274 = vld [vmem:[%s221 + $0xf0] sm:$0xff]
        %v275 = vld [vmem:[%s221 + $0xf8] sm:$0xff]
        %v276 = vld [vmem:[%s221 + $0x108] sm:$0xff]
        %v277 = vld [vmem:[%s221 + $0x110] sm:$0xff]
        %v278 = vld [vmem:[%s221 + $0x120] sm:$0xff]
        %v279 = vld [vmem:[%s221 + $0x128] sm:$0xff]
        %v280 = vld [vmem:[%s221 + $0x138] sm:$0xff]
        %v281 = vld [vmem:[%s221 + $0x140] sm:$0xff]
        %v282 = vld [vmem:[%s221 + $0x150] sm:$0xff]
        %v283 = vld [vmem:[%s221 + $0x158] sm:$0xff]
        %v284 = vld [vmem:[%s221 + $0x168] sm:$0xff]
        %v285 = vld [vmem:[%s221 + $0x170] sm:$0xff]
        %v286 = vld [vmem:[#allocation2] sm:$0xff]
        %v287 = vld [vmem:[#allocation2 + $0x8] sm:$0xff]
        %v288 = vld [vmem:[#allocation2 + $0x10] sm:$0xff]
        %v289 = vld [vmem:[#allocation2 + $0x18] sm:$0xff]
        %v290 = vld [vmem:[#allocation2 + $0x20] sm:$0xff]
        %v291 = vld [vmem:[#allocation2 + $0x28] sm:$0xff]
        %v292 = vld [vmem:[#allocation2 + $0x30] sm:$0xff]
        %v293 = vld [vmem:[#allocation2 + $0x38] sm:$0xff]
        %v294 = vld [vmem:[#allocation2 + $0x40] sm:$0xff]
        %v295 = vld [vmem:[#allocation2 + $0x48] sm:$0xff]
        %v296 = vld [vmem:[#allocation2 + $0x50] sm:$0xff]
        %v297 = vld [vmem:[#allocation2 + $0x58] sm:$0xff]
        %v298 = vld [vmem:[#allocation2 + $0x60] sm:$0xff]
        %v299 = vld [vmem:[#allocation2 + $0x68] sm:$0xff]
        %v300 = vld [vmem:[#allocation2 + $0x70] sm:$0xff]
        %v301 = vld [vmem:[#allocation2 + $0x78] sm:$0xff]
        %v302 = vld [vmem:[#allocation2 + $0x80] sm:$0xff]
        %v303 = vld [vmem:[#allocation2 + $0x88] sm:$0xff]
        %v304 = vld [vmem:[#allocation2 + $0x90] sm:$0xff]
        %v305 = vld [vmem:[#allocation2 + $0x98] sm:$0xff]
        %v306 = vld [vmem:[#allocation2 + $0xa0] sm:$0xff]
        %v307 = vld [vmem:[#allocation2 + $0xa8] sm:$0xff]
        %v308 = vld [vmem:[#allocation2 + $0xb0] sm:$0xff]
        %v309 = vld [vmem:[#allocation2 + $0xb8] sm:$0xff]
        %v310 = vld [vmem:[#allocation2 + $0xc0] sm:$0xff]
        %v311 = vld [vmem:[#allocation2 + $0xc8] sm:$0xff]
        %v312 = vld [vmem:[#allocation2 + $0xd0] sm:$0xff]
        %v313 = vld [vmem:[#allocation2 + $0xd8] sm:$0xff]
        %v314 = vld [vmem:[#allocation2 + $0xe0] sm:$0xff]
        %v315 = vld [vmem:[#allocation2 + $0xe8] sm:$0xff]
        %v316 = vld [vmem:[#allocation2 + $0xf0] sm:$0xff]
        %v317 = vld [vmem:[#allocation2 + $0xf8] sm:$0xff]
        %v318 = vld [vmem:[%s1] sm:$0xf]
        %vm319 = vcmask 31744
        %v321 = vsel %vm319, %v254, 0
        %v324 = vsel %vm319, %v255, 0
        %v327 = vsel %vm319, %v256, 0
        %v330 = vsel %vm319, %v257, 0
        %v333 = vsel %vm319, %v258, 0
        %v336 = vsel %vm319, %v259, 0
        %v339 = vsel %vm319, %v260, 0
        %v342 = vsel %vm319, %v261, 0
        %v345 = vsel %vm319, %v262, 0
        %v348 = vsel %vm319, %v263, 0
        %v351 = vsel %vm319, %v264, 0
        %v354 = vsel %vm319, %v265, 0
        %v357 = vsel %vm319, %v266, 0
        %v360 = vsel %vm319, %v267, 0
        %v363 = vsel %vm319, %v268, 0
        %v366 = vsel %vm319, %v269, 0
        %v369 = vsel %vm319, %v270, 0
        %v372 = vsel %vm319, %v271, 0
        %v375 = vsel %vm319, %v272, 0
        %v378 = vsel %vm319, %v273, 0
        %v381 = vsel %vm319, %v274, 0
        %v384 = vsel %vm319, %v275, 0
        %v387 = vsel %vm319, %v276, 0
        %v390 = vsel %vm319, %v277, 0
        %v393 = vsel %vm319, %v278, 0
        %v396 = vsel %vm319, %v279, 0
        %v399 = vsel %vm319, %v280, 0
        %v402 = vsel %vm319, %v281, 0
        %v405 = vsel %vm319, %v282, 0
        %v408 = vsel %vm319, %v283, 0
        %v411 = vsel %vm319, %v284, 0
        %v414 = vsel %vm319, %v285, 0
        %vm416 = vcmask 1043456
        %v418 = vsel %vm416, %v318, 0
        %420 = vmatprep.subr.mxu0 0.0
        %421 = vmatpush1.msra.mxu0 %v418
        %422 = vmatprep.subr.mxu0 0.0
        %423 = vmatpush1.msra.mxu0 0.0
        %424 = vmatprep.subr.mxu0 0.0
        %425 = vmatpush1.msra.mxu0 0.0
        %426 = vmatprep.subr.mxu0 0.0
        %427 = vmatpush1.msra.mxu0 0.0
        %428 = vmatprep.subr.mxu0 0.0
        %429 = vmatpush1.msra.mxu0 0.0
        %430 = vmatprep.subr.mxu0 0.0
        %431 = vmatpush1.msra.mxu0 0.0
        %432 = vmatprep.subr.mxu0 0.0
        %433 = vmatpush1.msra.mxu0 0.0
        %434 = vmatprep.subr.mxu0 0.0
        %435 = vmatpush1.msra.mxu0 0.0
        %436 = vmatprep.subr.mxu0 0.0
        %437 = vmatpush1.msra.mxu0 0.0
        %438 = vmatprep.subr.mxu0 0.0
        %439 = vmatpush1.msra.mxu0 0.0
        %440 = vmatprep.subr.mxu0 0.0
        %441 = vmatpush1.msra.mxu0 0.0
        %442 = vmatprep.subr.mxu0 0.0
        %443 = vmatpush1.msra.mxu0 0.0
        %444 = vmatprep.subr.mxu0 0.0
        %445 = vmatpush1.msra.mxu0 0.0
        %446 = vmatprep.subr.mxu0 0.0
        %447 = vmatpush1.msra.mxu0 0.0
        %448 = vmatprep.subr.mxu0 0.0
        %449 = vmatpush1.msra.mxu0 0.0
        %450 = vmatprep.subr.mxu0 0.0
        %451 = vmatpush1.msra.mxu0 0.0
        %452 = vmatprep.subr.mxu0 0.0
        %453 = vmatpush1.msra.mxu0 0.0
        %454 = vmatprep.subr.mxu0 0.0
        %455 = vmatpush1.msra.mxu0 0.0
        %456 = vmatprep.subr.mxu0 0.0
        %457 = vmatpush1.msra.mxu0 0.0
        %458 = vmatprep.subr.mxu0 0.0
        %459 = vmatpush1.msra.mxu0 0.0
        %460 = vmatprep.subr.mxu0 0.0
        %461 = vmatpush1.msra.mxu0 0.0
        %462 = vmatprep.subr.mxu0 0.0
        %463 = vmatpush1.msra.mxu0 0.0
        %464 = vmatprep.subr.mxu0 0.0
        %465 = vmatpush1.msra.mxu0 0.0
        %466 = vmatprep.subr.mxu0 0.0
        %467 = vmatpush1.msra.mxu0 0.0
        %468 = vmatprep.subr.mxu0 0.0
        %469 = vmatpush1.msra.mxu0 0.0
        %470 = vmatprep.subr.mxu0 0.0
        %471 = vmatpush1.msra.mxu0 0.0
        %472 = vmatprep.subr.mxu0 0.0
        %473 = vmatpush1.msra.mxu0 0.0
        %474 = vmatprep.subr.mxu0 0.0
        %475 = vmatpush1.msra.mxu0 0.0
        %476 = vmatprep.subr.mxu0 0.0
        %477 = vmatpush1.msra.mxu0 0.0
        %478 = vmatprep.subr.mxu0 0.0
        %479 = vmatpush1.msra.mxu0 0.0
        %480 = vmatprep.subr.mxu0 0.0
        %481 = vmatpush1.msra.mxu0 0.0
        %482 = vmatprep.subr.mxu0 0.0
        %483 = vmatpush1.msra.mxu0 0.0
        %484 = vmatprep.mubr.f32.mxu0 0.0
        %485 = vmatmul.mubr.f32.gmra.mrb[0].mxu0 %v321
        %v486 = vpop.f32.mrb[0].mxu0
        %v487 = vadd.f32 0.0, %v486
        %v488 = vpop.f32.mrb[0].mxu0
        %489 = vmatprep.mubr.f32.mxu0 0.0
        %490 = vmatmul.mubr.f32.gmra.mrb[0].mxu0 %v324
        %v491 = vpop.f32.mrb[0].mxu0
        %v492 = vadd.f32 0.0, %v491
        %v493 = vpop.f32.mrb[0].mxu0
        %494 = vmatprep.mubr.f32.mxu0 0.0
        %495 = vmatmul.mubr.f32.gmra.mrb[0].mxu0 %v327
        %v496 = vpop.f32.mrb[0].mxu0
        %v497 = vadd.f32 0.0, %v496
        %v498 = vpop.f32.mrb[0].mxu0
        %499 = vmatprep.mubr.f32.mxu0 0.0
        %500 = vmatmul.mubr.f32.gmra.mrb[0].mxu0 %v330
        %v501 = vpop.f32.mrb[0].mxu0
        %v502 = vadd.f32 0.0, %v501
        %v503 = vpop.f32.mrb[0].mxu0
        %504 = vmatprep.mubr.f32.mxu0 0.0
        %505 = vmatmul.mubr.f32.gmra.mrb[0].mxu0 %v333
        %v506 = vpop.f32.mrb[0].mxu0
        %v507 = vadd.f32 0.0, %v506
        %v508 = vpop.f32.mrb[0].mxu0
        %509 = vmatprep.mubr.f32.mxu0 0.0
        %510 = vmatmul.mubr.f32.gmra.mrb[0].mxu0 %v336
        %v511 = vpop.f32.mrb[0].mxu0
        %v512 = vadd.f32 0.0, %v511
        %v513 = vpop.f32.mrb[0].mxu0
        %514 = vmatprep.mubr.f32.mxu0 0.0
        %515 = vmatmul.mubr.f32.gmra.mrb[0].mxu0 %v339
        %v516 = vpop.f32.mrb[0].mxu0
        %v517 = vadd.f32 0.0, %v516
        %v518 = vpop.f32.mrb[0].mxu0
        %519 = vmatprep.mubr.f32.mxu0 0.0
        %520 = vmatmul.mubr.f32.gmra.mrb[0].mxu0 %v342
        %v521 = vpop.f32.mrb[0].mxu0
        %v522 = vadd.f32 0.0, %v521
        %v523 = vpop.f32.mrb[0].mxu0
        %524 = vmatprep.mubr.f32.mxu0 0.0
        %525 = vmatmul.mubr.f32.gmra.mrb[0].mxu0 %v345
        %v526 = vpop.f32.mrb[0].mxu0
        %v527 = vadd.f32 0.0, %v526
        %v528 = vpop.f32.mrb[0].mxu0
        %529 = vmatprep.mubr.f32.mxu0 0.0
        %530 = vmatmul.mubr.f32.gmra.mrb[0].mxu0 %v348
        %v531 = vpop.f32.mrb[0].mxu0
        %v532 = vadd.f32 0.0, %v531
        %v533 = vpop.f32.mrb[0].mxu0
        %534 = vmatprep.mubr.f32.mxu0 0.0
        %535 = vmatmul.mubr.f32.gmra.mrb[0].mxu0 %v351
        %v536 = vpop.f32.mrb[0].mxu0
        %v537 = vadd.f32 0.0, %v536
        %v538 = vpop.f32.mrb[0].mxu0
        %539 = vmatprep.mubr.f32.mxu0 0.0
        %540 = vmatmul.mubr.f32.gmra.mrb[0].mxu0 %v354
        %v541 = vpop.f32.mrb[0].mxu0
        %v542 = vadd.f32 0.0, %v541
        %v543 = vpop.f32.mrb[0].mxu0
        %544 = vmatprep.mubr.f32.mxu0 0.0
        %545 = vmatmul.mubr.f32.gmra.mrb[0].mxu0 %v357
        %v546 = vpop.f32.mrb[0].mxu0
        %v547 = vadd.f32 0.0, %v546
        %v548 = vpop.f32.mrb[0].mxu0
        %549 = vmatprep.mubr.f32.mxu0 0.0
        %550 = vmatmul.mubr.f32.gmra.mrb[0].mxu0 %v360
        %v551 = vpop.f32.mrb[0].mxu0
        %v552 = vadd.f32 0.0, %v551
        %v553 = vpop.f32.mrb[0].mxu0
        %554 = vmatprep.mubr.f32.mxu0 0.0
        %555 = vmatmul.mubr.f32.gmra.mrb[0].mxu0 %v363
        %v556 = vpop.f32.mrb[0].mxu0
        %v557 = vadd.f32 0.0, %v556
        %v558 = vpop.f32.mrb[0].mxu0
        %559 = vmatprep.mubr.f32.mxu0 0.0
        %560 = vmatmul.mubr.f32.gmra.mrb[0].mxu0 %v366
        %v561 = vpop.f32.mrb[0].mxu0
        %v562 = vadd.f32 0.0, %v561
        %v563 = vpop.f32.mrb[0].mxu0
        %564 = vmatprep.mubr.f32.mxu0 0.0
        %565 = vmatmul.mubr.f32.gmra.mrb[0].mxu0 %v369
        %v566 = vpop.f32.mrb[0].mxu0
        %v567 = vadd.f32 0.0, %v566
        %v568 = vpop.f32.mrb[0].mxu0
        %569 = vmatprep.mubr.f32.mxu0 0.0
        %570 = vmatmul.mubr.f32.gmra.mrb[0].mxu0 %v372
        %v571 = vpop.f32.mrb[0].mxu0
        %v572 = vadd.f32 0.0, %v571
        %v573 = vpop.f32.mrb[0].mxu0
        %574 = vmatprep.mubr.f32.mxu0 0.0
        %575 = vmatmul.mubr.f32.gmra.mrb[0].mxu0 %v375
        %v576 = vpop.f32.mrb[0].mxu0
        %v577 = vadd.f32 0.0, %v576
        %v578 = vpop.f32.mrb[0].mxu0
        %579 = vmatprep.mubr.f32.mxu0 0.0
        %580 = vmatmul.mubr.f32.gmra.mrb[0].mxu0 %v378
        %v581 = vpop.f32.mrb[0].mxu0
        %v582 = vadd.f32 0.0, %v581
        %v583 = vpop.f32.mrb[0].mxu0
        %584 = vmatprep.mubr.f32.mxu0 0.0
        %585 = vmatmul.mubr.f32.gmra.mrb[0].mxu0 %v381
        %v586 = vpop.f32.mrb[0].mxu0
        %v587 = vadd.f32 0.0, %v586
        %v588 = vpop.f32.mrb[0].mxu0
        %589 = vmatprep.mubr.f32.mxu0 0.0
        %590 = vmatmul.mubr.f32.gmra.mrb[0].mxu0 %v384
        %v591 = vpop.f32.mrb[0].mxu0
        %v592 = vadd.f32 0.0, %v591
        %v593 = vpop.f32.mrb[0].mxu0
        %594 = vmatprep.mubr.f32.mxu0 0.0
        %595 = vmatmul.mubr.f32.gmra.mrb[0].mxu0 %v387
        %v596 = vpop.f32.mrb[0].mxu0
        %v597 = vadd.f32 0.0, %v596
        %v598 = vpop.f32.mrb[0].mxu0
        %599 = vmatprep.mubr.f32.mxu0 0.0
        %600 = vmatmul.mubr.f32.gmra.mrb[0].mxu0 %v390
        %v601 = vpop.f32.mrb[0].mxu0
        %v602 = vadd.f32 0.0, %v601
        %v603 = vpop.f32.mrb[0].mxu0
        %604 = vmatprep.mubr.f32.mxu0 0.0
        %605 = vmatmul.mubr.f32.gmra.mrb[0].mxu0 %v393
        %v606 = vpop.f32.mrb[0].mxu0
        %v607 = vadd.f32 0.0, %v606
        %v608 = vpop.f32.mrb[0].mxu0
        %609 = vmatprep.mubr.f32.mxu0 0.0
        %610 = vmatmul.mubr.f32.gmra.mrb[0].mxu0 %v396
        %v611 = vpop.f32.mrb[0].mxu0
        %v612 = vadd.f32 0.0, %v611
        %v613 = vpop.f32.mrb[0].mxu0
        %614 = vmatprep.mubr.f32.mxu0 0.0
        %615 = vmatmul.mubr.f32.gmra.mrb[0].mxu0 %v399
        %v616 = vpop.f32.mrb[0].mxu0
        %v617 = vadd.f32 0.0, %v616
        %v618 = vpop.f32.mrb[0].mxu0
        %619 = vmatprep.mubr.f32.mxu0 0.0
        %620 = vmatmul.mubr.f32.gmra.mrb[0].mxu0 %v402
        %v621 = vpop.f32.mrb[0].mxu0
        %v622 = vadd.f32 0.0, %v621
        %v623 = vpop.f32.mrb[0].mxu0
        %624 = vmatprep.mubr.f32.mxu0 0.0
        %625 = vmatmul.mubr.f32.gmra.mrb[0].mxu0 %v405
        %v626 = vpop.f32.mrb[0].mxu0
        %v627 = vadd.f32 0.0, %v626
        %v628 = vpop.f32.mrb[0].mxu0
        %629 = vmatprep.mubr.f32.mxu0 0.0
        %630 = vmatmul.mubr.f32.gmra.mrb[0].mxu0 %v408
        %v631 = vpop.f32.mrb[0].mxu0
        %v632 = vadd.f32 0.0, %v631
        %v633 = vpop.f32.mrb[0].mxu0
        %634 = vmatprep.mubr.f32.mxu0 0.0
        %635 = vmatmul.mubr.f32.gmra.mrb[0].mxu0 %v411
        %v636 = vpop.f32.mrb[0].mxu0
        %v637 = vadd.f32 0.0, %v636
        %v638 = vpop.f32.mrb[0].mxu0
        %639 = vmatprep.mubr.f32.mxu0 0.0
        %640 = vmatmul.mubr.f32.gmra.mrb[0].mxu0 %v414
        %v641 = vpop.f32.mrb[0].mxu0
        %v642 = vadd.f32 0.0, %v641
        %v643 = vpop.f32.mrb[0].mxu0
        %644 = vdwg.mxu0
        %v645 = vadd.f32 %v286, %v487
        %v646 = vadd.f32 %v287, %v492
        %v647 = vadd.f32 %v288, %v497
        %v648 = vadd.f32 %v289, %v502
        %v649 = vadd.f32 %v290, %v507
        %v650 = vadd.f32 %v291, %v512
        %v651 = vadd.f32 %v292, %v517
        %v652 = vadd.f32 %v293, %v522
        %v653 = vadd.f32 %v294, %v527
        %v654 = vadd.f32 %v295, %v532
        %v655 = vadd.f32 %v296, %v537
        %v656 = vadd.f32 %v297, %v542
        %v657 = vadd.f32 %v298, %v547
        %v658 = vadd.f32 %v299, %v552
        %v659 = vadd.f32 %v300, %v557
        %v660 = vadd.f32 %v301, %v562
        %v661 = vadd.f32 %v302, %v567
        %v662 = vadd.f32 %v303, %v572
        %v663 = vadd.f32 %v304, %v577
        %v664 = vadd.f32 %v305, %v582
        %v665 = vadd.f32 %v306, %v587
        %v666 = vadd.f32 %v307, %v592
        %v667 = vadd.f32 %v308, %v597
        %v668 = vadd.f32 %v309, %v602
        %v669 = vadd.f32 %v310, %v607
        %v670 = vadd.f32 %v311, %v612
        %v671 = vadd.f32 %v312, %v617
        %v672 = vadd.f32 %v313, %v622
        %v673 = vadd.f32 %v314, %v627
        %v674 = vadd.f32 %v315, %v632
        %v675 = vadd.f32 %v316, %v637
        %v676 = vadd.f32 %v317, %v642
        %677 = vst [vmem:[#allocation2] sm:$0xff] %v645
        %678 = vst [vmem:[#allocation2 + $0x8] sm:$0xff] %v646
        %679 = vst [vmem:[#allocation2 + $0x10] sm:$0xff] %v647
        %680 = vst [vmem:[#allocation2 + $0x18] sm:$0xff] %v648
        %681 = vst [vmem:[#allocation2 + $0x20] sm:$0xff] %v649
        %682 = vst [vmem:[#allocation2 + $0x28] sm:$0xff] %v650
        %683 = vst [vmem:[#allocation2 + $0x30] sm:$0xff] %v651
        %684 = vst [vmem:[#allocation2 + $0x38] sm:$0xff] %v652
        %685 = vst [vmem:[#allocation2 + $0x40] sm:$0xff] %v653
        %686 = vst [vmem:[#allocation2 + $0x48] sm:$0xff] %v654
        %687 = vst [vmem:[#allocation2 + $0x50] sm:$0xff] %v655
        %688 = vst [vmem:[#allocation2 + $0x58] sm:$0xff] %v656
        %689 = vst [vmem:[#allocation2 + $0x60] sm:$0xff] %v657
        %690 = vst [vmem:[#allocation2 + $0x68] sm:$0xff] %v658
        %691 = vst [vmem:[#allocation2 + $0x70] sm:$0xff] %v659
        %692 = vst [vmem:[#allocation2 + $0x78] sm:$0xff] %v660
        %693 = vst [vmem:[#allocation2 + $0x80] sm:$0xff] %v661
        %694 = vst [vmem:[#allocation2 + $0x88] sm:$0xff] %v662
        %695 = vst [vmem:[#allocation2 + $0x90] sm:$0xff] %v663
        %696 = vst [vmem:[#allocation2 + $0x98] sm:$0xff] %v664
        %697 = vst [vmem:[#allocation2 + $0xa0] sm:$0xff] %v665
        %698 = vst [vmem:[#allocation2 + $0xa8] sm:$0xff] %v666
        %699 = vst [vmem:[#allocation2 + $0xb0] sm:$0xff] %v667
        %700 = vst [vmem:[#allocation2 + $0xb8] sm:$0xff] %v668
        %701 = vst [vmem:[#allocation2 + $0xc0] sm:$0xff] %v669
        %702 = vst [vmem:[#allocation2 + $0xc8] sm:$0xff] %v670
        %703 = vst [vmem:[#allocation2 + $0xd0] sm:$0xff] %v671
        %704 = vst [vmem:[#allocation2 + $0xd8] sm:$0xff] %v672
        %705 = vst [vmem:[#allocation2 + $0xe0] sm:$0xff] %v673
        %706 = vst [vmem:[#allocation2 + $0xe8] sm:$0xff] %v674
        %707 = vst [vmem:[#allocation2 + $0xf0] sm:$0xff] %v675
        %708 = vst [vmem:[#allocation2 + $0xf8] sm:$0xff] %v676
        %v709 = vld [vmem:[%s221 + $0x1] sm:$0xff]
        %v710 = vld [vmem:[%s221 + $0x9] sm:$0xff]
        %v711 = vld [vmem:[%s221 + $0x19] sm:$0xff]
        %v712 = vld [vmem:[%s221 + $0x21] sm:$0xff]
        %v713 = vld [vmem:[%s221 + $0x31] sm:$0xff]
        %v714 = vld [vmem:[%s221 + $0x39] sm:$0xff]
        %v715 = vld [vmem:[%s221 + $0x49] sm:$0xff]
        %v716 = vld [vmem:[%s221 + $0x51] sm:$0xff]
        %v717 = vld [vmem:[%s221 + $0x61] sm:$0xff]
        %v718 = vld [vmem:[%s221 + $0x69] sm:$0xff]
        %v719 = vld [vmem:[%s221 + $0x79] sm:$0xff]
        %v720 = vld [vmem:[%s221 + $0x81] sm:$0xff]
        %v721 = vld [vmem:[%s221 + $0x91] sm:$0xff]
        %v722 = vld [vmem:[%s221 + $0x99] sm:$0xff]
        %v723 = vld [vmem:[%s221 + $0xa9] sm:$0xff]
        %v724 = vld [vmem:[%s221 + $0xb1] sm:$0xff]
        %v725 = vld [vmem:[%s221 + $0xc1] sm:$0xff]
        %v726 = vld [vmem:[%s221 + $0xc9] sm:$0xff]
        %v727 = vld [vmem:[%s221 + $0xd9] sm:$0xff]
        %v728 = vld [vmem:[%s221 + $0xe1] sm:$0xff]
        %v729 = vld [vmem:[%s221 + $0xf1] sm:$0xff]
        %v730 = vld [vmem:[%s221 + $0xf9] sm:$0xff]
        %v731 = vld [vmem:[%s221 + $0x109] sm:$0xff]
        %v732 = vld [vmem:[%s221 + $0x111] sm:$0xff]
        %v733 = vld [vmem:[%s221 + $0x121] sm:$0xff]
        %v734 = vld [vmem:[%s221 + $0x129] sm:$0xff]
        %v735 = vld [vmem:[%s221 + $0x139] sm:$0xff]
        %v736 = vld [vmem:[%s221 + $0x141] sm:$0xff]
        %v737 = vld [vmem:[%s221 + $0x151] sm:$0xff]
        %v738 = vld [vmem:[%s221 + $0x159] sm:$0xff]
        %v739 = vld [vmem:[%s221 + $0x169] sm:$0xff]
        %v740 = vld [vmem:[%s221 + $0x171] sm:$0xff]
        %v741 = vld [vmem:[#allocation2] sm:$0xff]
        %v742 = vld [vmem:[#allocation2 + $0x8] sm:$0xff]
        %v743 = vld [vmem:[#allocation2 + $0x10] sm:$0xff]
        %v744 = vld [vmem:[#allocation2 + $0x18] sm:$0xff]
        %v745 = vld [vmem:[#allocation2 + $0x20] sm:$0xff]
        %v746 = vld [vmem:[#allocation2 + $0x28] sm:$0xff]
        %v747 = vld [vmem:[#allocation2 + $0x30] sm:$0xff]
        %v748 = vld [vmem:[#allocation2 + $0x38] sm:$0xff]
        %v749 = vld [vmem:[#allocation2 + $0x40] sm:$0xff]
        %v750 = vld [vmem:[#allocation2 + $0x48] sm:$0xff]
        %v751 = vld [vmem:[#allocation2 + $0x50] sm:$0xff]
        %v752 = vld [vmem:[#allocation2 + $0x58] sm:$0xff]
        %v753 = vld [vmem:[#allocation2 + $0x60] sm:$0xff]
        %v754 = vld [vmem:[#allocation2 + $0x68] sm:$0xff]
        %v755 = vld [vmem:[#allocation2 + $0x70] sm:$0xff]
        %v756 = vld [vmem:[#allocation2 + $0x78] sm:$0xff]
        %v757 = vld [vmem:[#allocation2 + $0x80] sm:$0xff]
        %v758 = vld [vmem:[#allocation2 + $0x88] sm:$0xff]
        %v759 = vld [vmem:[#allocation2 + $0x90] sm:$0xff]
        %v760 = vld [vmem:[#allocation2 + $0x98] sm:$0xff]
        %v761 = vld [vmem:[#allocation2 + $0xa0] sm:$0xff]
        %v762 = vld [vmem:[#allocation2 + $0xa8] sm:$0xff]
        %v763 = vld [vmem:[#allocation2 + $0xb0] sm:$0xff]
        %v764 = vld [vmem:[#allocation2 + $0xb8] sm:$0xff]
        %v765 = vld [vmem:[#allocation2 + $0xc0] sm:$0xff]
        %v766 = vld [vmem:[#allocation2 + $0xc8] sm:$0xff]
        %v767 = vld [vmem:[#allocation2 + $0xd0] sm:$0xff]
        %v768 = vld [vmem:[#allocation2 + $0xd8] sm:$0xff]
        %v769 = vld [vmem:[#allocation2 + $0xe0] sm:$0xff]
        %v770 = vld [vmem:[#allocation2 + $0xe8] sm:$0xff]
        %v771 = vld [vmem:[#allocation2 + $0xf0] sm:$0xff]
        %v772 = vld [vmem:[#allocation2 + $0xf8] sm:$0xff]
        %s773 = scalar_lea.vmem %s1, 4
        %v774 = vld [vmem:[%s773] sm:$0xf]
        %v776 = vsel %vm319, %v709, 0
        %v779 = vsel %vm319, %v710, 0
        %v782 = vsel %vm319, %v711, 0
        %v785 = vsel %vm319, %v712, 0
        %v788 = vsel %vm319, %v713, 0
        %v791 = vsel %vm319, %v714, 0
        %v794 = vsel %vm319, %v715, 0
        %v797 = vsel %vm319, %v716, 0
        %v800 = vsel %vm319, %v717, 0
        %v803 = vsel %vm319, %v718, 0
        %v806 = vsel %vm319, %v719, 0
        %v809 = vsel %vm319, %v720, 0
        %v812 = vsel %vm319, %v721, 0
        %v815 = vsel %vm319, %v722, 0
        %v818 = vsel %vm319, %v723, 0
        %v821 = vsel %vm319, %v724, 0
        %v824 = vsel %vm319, %v725, 0
        %v827 = vsel %vm319, %v726, 0
        %v830 = vsel %vm319, %v727, 0
        %v833 = vsel %vm319, %v728, 0
        %v836 = vsel %vm319, %v729, 0
        %v839 = vsel %vm319, %v730, 0
        %v842 = vsel %vm319, %v731, 0
        %v845 = vsel %vm319, %v732, 0
        %v848 = vsel %vm319, %v733, 0
        %v851 = vsel %vm319, %v734, 0
        %v854 = vsel %vm319, %v735, 0
        %v857 = vsel %vm319, %v736, 0
        %v860 = vsel %vm319, %v737, 0
        %v863 = vsel %vm319, %v738, 0
        %v866 = vsel %vm319, %v739, 0
        %v869 = vsel %vm319, %v740, 0
        %v872 = vsel %vm416, %v774, 0
        %874 = vmatprep.subr.mxu0 0.0
        %875 = vmatpush1.msra.mxu0 %v872
        %876 = vmatprep.subr.mxu0 0.0
        %877 = vmatpush1.msra.mxu0 0.0
        %878 = vmatprep.subr.mxu0 0.0
        %879 = vmatpush1.msra.mxu0 0.0
        %880 = vmatprep.subr.mxu0 0.0
        %881 = vmatpush1.msra.mxu0 0.0
        %882 = vmatprep.subr.mxu0 0.0
        %883 = vmatpush1.msra.mxu0 0.0
        %884 = vmatprep.subr.mxu0 0.0
        %885 = vmatpush1.msra.mxu0 0.0
        %886 = vmatprep.subr.mxu0 0.0
        %887 = vmatpush1.msra.mxu0 0.0
        %888 = vmatprep.subr.mxu0 0.0
        %889 = vmatpush1.msra.mxu0 0.0
        %890 = vmatprep.subr.mxu0 0.0
        %891 = vmatpush1.msra.mxu0 0.0
        %892 = vmatprep.subr.mxu0 0.0
        %893 = vmatpush1.msra.mxu0 0.0
        %894 = vmatprep.subr.mxu0 0.0
        %895 = vmatpush1.msra.mxu0 0.0
        %896 = vmatprep.subr.mxu0 0.0
        %897 = vmatpush1.msra.mxu0 0.0
        %898 = vmatprep.subr.mxu0 0.0
        %899 = vmatpush1.msra.mxu0 0.0
        %900 = vmatprep.subr.mxu0 0.0
        %901 = vmatpush1.msra.mxu0 0.0
        %902 = vmatprep.subr.mxu0 0.0
        %903 = vmatpush1.msra.mxu0 0.0
        %904 = vmatprep.subr.mxu0 0.0
        %905 = vmatpush1.msra.mxu0 0.0
        %906 = vmatprep.subr.mxu0 0.0
        %907 = vmatpush1.msra.mxu0 0.0
        %908 = vmatprep.subr.mxu0 0.0
        %909 = vmatpush1.msra.mxu0 0.0
        %910 = vmatprep.subr.mxu0 0.0
        %911 = vmatpush1.msra.mxu0 0.0
        %912 = vmatprep.subr.mxu0 0.0
        %913 = vmatpush1.msra.mxu0 0.0
        %914 = vmatprep.subr.mxu0 0.0
        %915 = vmatpush1.msra.mxu0 0.0
        %916 = vmatprep.subr.mxu0 0.0
        %917 = vmatpush1.msra.mxu0 0.0
        %918 = vmatprep.subr.mxu0 0.0
        %919 = vmatpush1.msra.mxu0 0.0
        %920 = vmatprep.subr.mxu0 0.0
        %921 = vmatpush1.msra.mxu0 0.0
        %922 = vmatprep.subr.mxu0 0.0
        %923 = vmatpush1.msra.mxu0 0.0
        %924 = vmatprep.subr.mxu0 0.0
        %925 = vmatpush1.msra.mxu0 0.0
        %926 = vmatprep.subr.mxu0 0.0
        %927 = vmatpush1.msra.mxu0 0.0
        %928 = vmatprep.subr.mxu0 0.0
        %929 = vmatpush1.msra.mxu0 0.0
        %930 = vmatprep.subr.mxu0 0.0
        %931 = vmatpush1.msra.mxu0 0.0
        %932 = vmatprep.subr.mxu0 0.0
        %933 = vmatpush1.msra.mxu0 0.0
        %934 = vmatprep.subr.mxu0 0.0
        %935 = vmatpush1.msra.mxu0 0.0
        %936 = vmatprep.subr.mxu0 0.0
        %937 = vmatpush1.msra.mxu0 0.0
        %938 = vmatprep.mubr.f32.mxu0 0.0
        %939 = vmatmul.mubr.f32.gmra.mrb[0].mxu0 %v776
        %v940 = vpop.f32.mrb[0].mxu0
        %v941 = vadd.f32 0.0, %v940
        %v942 = vpop.f32.mrb[0].mxu0
        %943 = vmatprep.mubr.f32.mxu0 0.0
        %944 = vmatmul.mubr.f32.gmra.mrb[0].mxu0 %v779
        %v945 = vpop.f32.mrb[0].mxu0
        %v946 = vadd.f32 0.0, %v945
        %v947 = vpop.f32.mrb[0].mxu0
        %948 = vmatprep.mubr.f32.mxu0 0.0
        %949 = vmatmul.mubr.f32.gmra.mrb[0].mxu0 %v782
        %v950 = vpop.f32.mrb[0].mxu0
        %v951 = vadd.f32 0.0, %v950
        %v952 = vpop.f32.mrb[0].mxu0
        %953 = vmatprep.mubr.f32.mxu0 0.0
        %954 = vmatmul.mubr.f32.gmra.mrb[0].mxu0 %v785
        %v955 = vpop.f32.mrb[0].mxu0
        %v956 = vadd.f32 0.0, %v955
        %v957 = vpop.f32.mrb[0].mxu0
        %958 = vmatprep.mubr.f32.mxu0 0.0
        %959 = vmatmul.mubr.f32.gmra.mrb[0].mxu0 %v788
        %v960 = vpop.f32.mrb[0].mxu0
        %v961 = vadd.f32 0.0, %v960
        %v962 = vpop.f32.mrb[0].mxu0
        %963 = vmatprep.mubr.f32.mxu0 0.0
        %964 = vmatmul.mubr.f32.gmra.mrb[0].mxu0 %v791
        %v965 = vpop.f32.mrb[0].mxu0
        %v966 = vadd.f32 0.0, %v965
        %v967 = vpop.f32.mrb[0].mxu0
        %968 = vmatprep.mubr.f32.mxu0 0.0
        %969 = vmatmul.mubr.f32.gmra.mrb[0].mxu0 %v794
        %v970 = vpop.f32.mrb[0].mxu0
        %v971 = vadd.f32 0.0, %v970
        %v972 = vpop.f32.mrb[0].mxu0
        %973 = vmatprep.mubr.f32.mxu0 0.0
        %974 = vmatmul.mubr.f32.gmra.mrb[0].mxu0 %v797
        %v975 = vpop.f32.mrb[0].mxu0
        %v976 = vadd.f32 0.0, %v975
        %v977 = vpop.f32.mrb[0].mxu0
        %978 = vmatprep.mubr.f32.mxu0 0.0
        %979 = vmatmul.mubr.f32.gmra.mrb[0].mxu0 %v800
        %v980 = vpop.f32.mrb[0].mxu0
        %v981 = vadd.f32 0.0, %v980
        %v982 = vpop.f32.mrb[0].mxu0
        %983 = vmatprep.mubr.f32.mxu0 0.0
        %984 = vmatmul.mubr.f32.gmra.mrb[0].mxu0 %v803
        %v985 = vpop.f32.mrb[0].mxu0
        %v986 = vadd.f32 0.0, %v985
        %v987 = vpop.f32.mrb[0].mxu0
        %988 = vmatprep.mubr.f32.mxu0 0.0
        %989 = vmatmul.mubr.f32.gmra.mrb[0].mxu0 %v806
        %v990 = vpop.f32.mrb[0].mxu0
        %v991 = vadd.f32 0.0, %v990
        %v992 = vpop.f32.mrb[0].mxu0
        %993 = vmatprep.mubr.f32.mxu0 0.0
        %994 = vmatmul.mubr.f32.gmra.mrb[0].mxu0 %v809
        %v995 = vpop.f32.mrb[0].mxu0
        %v996 = vadd.f32 0.0, %v995
        %v997 = vpop.f32.mrb[0].mxu0
        %998 = vmatprep.mubr.f32.mxu0 0.0
        %999 = vmatmul.mubr.f32.gmra.mrb[0].mxu0 %v812
        %v1000 = vpop.f32.mrb[0].mxu0
        %v1001 = vadd.f32 0.0, %v1000
        %v1002 = vpop.f32.mrb[0].mxu0
        %1003 = vmatprep.mubr.f32.mxu0 0.0
        %1004 = vmatmul.mubr.f32.gmra.mrb[0].mxu0 %v815
        %v1005 = vpop.f32.mrb[0].mxu0
        %v1006 = vadd.f32 0.0, %v1005
        %v1007 = vpop.f32.mrb[0].mxu0
        %1008 = vmatprep.mubr.f32.mxu0 0.0
        %1009 = vmatmul.mubr.f32.gmra.mrb[0].mxu0 %v818
        %v1010 = vpop.f32.mrb[0].mxu0
        %v1011 = vadd.f32 0.0, %v1010
        %v1012 = vpop.f32.mrb[0].mxu0
        %1013 = vmatprep.mubr.f32.mxu0 0.0
        %1014 = vmatmul.mubr.f32.gmra.mrb[0].mxu0 %v821
        %v1015 = vpop.f32.mrb[0].mxu0
        %v1016 = vadd.f32 0.0, %v1015
        %v1017 = vpop.f32.mrb[0].mxu0
        %1018 = vmatprep.mubr.f32.mxu0 0.0
        %1019 = vmatmul.mubr.f32.gmra.mrb[0].mxu0 %v824
        %v1020 = vpop.f32.mrb[0].mxu0
        %v1021 = vadd.f32 0.0, %v1020
        %v1022 = vpop.f32.mrb[0].mxu0
        %1023 = vmatprep.mubr.f32.mxu0 0.0
        %1024 = vmatmul.mubr.f32.gmra.mrb[0].mxu0 %v827
        %v1025 = vpop.f32.mrb[0].mxu0
        %v1026 = vadd.f32 0.0, %v1025
        %v1027 = vpop.f32.mrb[0].mxu0
        %1028 = vmatprep.mubr.f32.mxu0 0.0
        %1029 = vmatmul.mubr.f32.gmra.mrb[0].mxu0 %v830
        %v1030 = vpop.f32.mrb[0].mxu0
        %v1031 = vadd.f32 0.0, %v1030
        %v1032 = vpop.f32.mrb[0].mxu0
        %1033 = vmatprep.mubr.f32.mxu0 0.0
        %1034 = vmatmul.mubr.f32.gmra.mrb[0].mxu0 %v833
        %v1035 = vpop.f32.mrb[0].mxu0
        %v1036 = vadd.f32 0.0, %v1035
        %v1037 = vpop.f32.mrb[0].mxu0
        %1038 = vmatprep.mubr.f32.mxu0 0.0
        %1039 = vmatmul.mubr.f32.gmra.mrb[0].mxu0 %v836
        %v1040 = vpop.f32.mrb[0].mxu0
        %v1041 = vadd.f32 0.0, %v1040
        %v1042 = vpop.f32.mrb[0].mxu0
        %1043 = vmatprep.mubr.f32.mxu0 0.0
        %1044 = vmatmul.mubr.f32.gmra.mrb[0].mxu0 %v839
        %v1045 = vpop.f32.mrb[0].mxu0
        %v1046 = vadd.f32 0.0, %v1045
        %v1047 = vpop.f32.mrb[0].mxu0
        %1048 = vmatprep.mubr.f32.mxu0 0.0
        %1049 = vmatmul.mubr.f32.gmra.mrb[0].mxu0 %v842
        %v1050 = vpop.f32.mrb[0].mxu0
        %v1051 = vadd.f32 0.0, %v1050
        %v1052 = vpop.f32.mrb[0].mxu0
        %1053 = vmatprep.mubr.f32.mxu0 0.0
        %1054 = vmatmul.mubr.f32.gmra.mrb[0].mxu0 %v845
        %v1055 = vpop.f32.mrb[0].mxu0
        %v1056 = vadd.f32 0.0, %v1055
        %v1057 = vpop.f32.mrb[0].mxu0
        %1058 = vmatprep.mubr.f32.mxu0 0.0
        %1059 = vmatmul.mubr.f32.gmra.mrb[0].mxu0 %v848
        %v1060 = vpop.f32.mrb[0].mxu0
        %v1061 = vadd.f32 0.0, %v1060
        %v1062 = vpop.f32.mrb[0].mxu0
        %1063 = vmatprep.mubr.f32.mxu0 0.0
        %1064 = vmatmul.mubr.f32.gmra.mrb[0].mxu0 %v851
        %v1065 = vpop.f32.mrb[0].mxu0
        %v1066 = vadd.f32 0.0, %v1065
        %v1067 = vpop.f32.mrb[0].mxu0
        %1068 = vmatprep.mubr.f32.mxu0 0.0
        %1069 = vmatmul.mubr.f32.gmra.mrb[0].mxu0 %v854
        %v1070 = vpop.f32.mrb[0].mxu0
        %v1071 = vadd.f32 0.0, %v1070
        %v1072 = vpop.f32.mrb[0].mxu0
        %1073 = vmatprep.mubr.f32.mxu0 0.0
        %1074 = vmatmul.mubr.f32.gmra.mrb[0].mxu0 %v857
        %v1075 = vpop.f32.mrb[0].mxu0
        %v1076 = vadd.f32 0.0, %v1075
        %v1077 = vpop.f32.mrb[0].mxu0
        %1078 = vmatprep.mubr.f32.mxu0 0.0
        %1079 = vmatmul.mubr.f32.gmra.mrb[0].mxu0 %v860
        %v1080 = vpop.f32.mrb[0].mxu0
        %v1081 = vadd.f32 0.0, %v1080
        %v1082 = vpop.f32.mrb[0].mxu0
        %1083 = vmatprep.mubr.f32.mxu0 0.0
        %1084 = vmatmul.mubr.f32.gmra.mrb[0].mxu0 %v863
        %v1085 = vpop.f32.mrb[0].mxu0
        %v1086 = vadd.f32 0.0, %v1085
        %v1087 = vpop.f32.mrb[0].mxu0
        %1088 = vmatprep.mubr.f32.mxu0 0.0
        %1089 = vmatmul.mubr.f32.gmra.mrb[0].mxu0 %v866
        %v1090 = vpop.f32.mrb[0].mxu0
        %v1091 = vadd.f32 0.0, %v1090
        %v1092 = vpop.f32.mrb[0].mxu0
        %1093 = vmatprep.mubr.f32.mxu0 0.0
        %1094 = vmatmul.mubr.f32.gmra.mrb[0].mxu0 %v869
        %v1095 = vpop.f32.mrb[0].mxu0
        %v1096 = vadd.f32 0.0, %v1095
        %v1097 = vpop.f32.mrb[0].mxu0
        %1098 = vdwg.mxu0
        %v1099 = vadd.f32 %v741, %v941
        %v1100 = vadd.f32 %v742, %v946
        %v1101 = vadd.f32 %v743, %v951
        %v1102 = vadd.f32 %v744, %v956
        %v1103 = vadd.f32 %v745, %v961
        %v1104 = vadd.f32 %v746, %v966
        %v1105 = vadd.f32 %v747, %v971
        %v1106 = vadd.f32 %v748, %v976
        %v1107 = vadd.f32 %v749, %v981
        %v1108 = vadd.f32 %v750, %v986
        %v1109 = vadd.f32 %v751, %v991
        %v1110 = vadd.f32 %v752, %v996
        %v1111 = vadd.f32 %v753, %v1001
        %v1112 = vadd.f32 %v754, %v1006
        %v1113 = vadd.f32 %v755, %v1011
        %v1114 = vadd.f32 %v756, %v1016
        %v1115 = vadd.f32 %v757, %v1021
        %v1116 = vadd.f32 %v758, %v1026
        %v1117 = vadd.f32 %v759, %v1031
        %v1118 = vadd.f32 %v760, %v1036
        %v1119 = vadd.f32 %v761, %v1041
        %v1120 = vadd.f32 %v762, %v1046
        %v1121 = vadd.f32 %v763, %v1051
        %v1122 = vadd.f32 %v764, %v1056
        %v1123 = vadd.f32 %v765, %v1061
        %v1124 = vadd.f32 %v766, %v1066
        %v1125 = vadd.f32 %v767, %v1071
        %v1126 = vadd.f32 %v768, %v1076
        %v1127 = vadd.f32 %v769, %v1081
        %v1128 = vadd.f32 %v770, %v1086
        %v1129 = vadd.f32 %v771, %v1091
        %v1130 = vadd.f32 %v772, %v1096
        %1131 = vst [vmem:[#allocation2] sm:$0xff] %v1099
        %1132 = vst [vmem:[#allocation2 + $0x8] sm:$0xff] %v1100
        %1133 = vst [vmem:[#allocation2 + $0x10] sm:$0xff] %v1101
        %1134 = vst [vmem:[#allocation2 + $0x18] sm:$0xff] %v1102
        %1135 = vst [vmem:[#allocation2 + $0x20] sm:$0xff] %v1103
        %1136 = vst [vmem:[#allocation2 + $0x28] sm:$0xff] %v1104
        %1137 = vst [vmem:[#allocation2 + $0x30] sm:$0xff] %v1105
        %1138 = vst [vmem:[#allocation2 + $0x38] sm:$0xff] %v1106
        %1139 = vst [vmem:[#allocation2 + $0x40] sm:$0xff] %v1107
        %1140 = vst [vmem:[#allocation2 + $0x48] sm:$0xff] %v1108
        %1141 = vst [vmem:[#allocation2 + $0x50] sm:$0xff] %v1109
        %1142 = vst [vmem:[#allocation2 + $0x58] sm:$0xff] %v1110
        %1143 = vst [vmem:[#allocation2 + $0x60] sm:$0xff] %v1111
        %1144 = vst [vmem:[#allocation2 + $0x68] sm:$0xff] %v1112
        %1145 = vst [vmem:[#allocation2 + $0x70] sm:$0xff] %v1113
        %1146 = vst [vmem:[#allocation2 + $0x78] sm:$0xff] %v1114
        %1147 = vst [vmem:[#allocation2 + $0x80] sm:$0xff] %v1115
        %1148 = vst [vmem:[#allocation2 + $0x88] sm:$0xff] %v1116
        %1149 = vst [vmem:[#allocation2 + $0x90] sm:$0xff] %v1117
        %1150 = vst [vmem:[#allocation2 + $0x98] sm:$0xff] %v1118
        %1151 = vst [vmem:[#allocation2 + $0xa0] sm:$0xff] %v1119
        %1152 = vst [vmem:[#allocation2 + $0xa8] sm:$0xff] %v1120
        %1153 = vst [vmem:[#allocation2 + $0xb0] sm:$0xff] %v1121
        %1154 = vst [vmem:[#allocation2 + $0xb8] sm:$0xff] %v1122
        %1155 = vst [vmem:[#allocation2 + $0xc0] sm:$0xff] %v1123
        %1156 = vst [vmem:[#allocation2 + $0xc8] sm:$0xff] %v1124
        %1157 = vst [vmem:[#allocation2 + $0xd0] sm:$0xff] %v1125
        %1158 = vst [vmem:[#allocation2 + $0xd8] sm:$0xff] %v1126
        %1159 = vst [vmem:[#allocation2 + $0xe0] sm:$0xff] %v1127
        %1160 = vst [vmem:[#allocation2 + $0xe8] sm:$0xff] %v1128
        %1161 = vst [vmem:[#allocation2 + $0xf0] sm:$0xff] %v1129
        %1162 = vst [vmem:[#allocation2 + $0xf8] sm:$0xff] %v1130
        %v1163 = vld [vmem:[%s221 + $0x2] sm:$0xff]
        %v1164 = vld [vmem:[%s221 + $0xa] sm:$0xff]
        %v1165 = vld [vmem:[%s221 + $0x1a] sm:$0xff]
        %v1166 = vld [vmem:[%s221 + $0x22] sm:$0xff]
        %v1167 = vld [vmem:[%s221 + $0x32] sm:$0xff]
        %v1168 = vld [vmem:[%s221 + $0x3a] sm:$0xff]
        %v1169 = vld [vmem:[%s221 + $0x4a] sm:$0xff]
        %v1170 = vld [vmem:[%s221 + $0x52] sm:$0xff]
        %v1171 = vld [vmem:[%s221 + $0x62] sm:$0xff]
        %v1172 = vld [vmem:[%s221 + $0x6a] sm:$0xff]
        %v1173 = vld [vmem:[%s221 + $0x7a] sm:$0xff]
        %v1174 = vld [vmem:[%s221 + $0x82] sm:$0xff]
        %v1175 = vld [vmem:[%s221 + $0x92] sm:$0xff]
        %v1176 = vld [vmem:[%s221 + $0x9a] sm:$0xff]
        %v1177 = vld [vmem:[%s221 + $0xaa] sm:$0xff]
        %v1178 = vld [vmem:[%s221 + $0xb2] sm:$0xff]
        %v1179 = vld [vmem:[%s221 + $0xc2] sm:$0xff]
        %v1180 = vld [vmem:[%s221 + $0xca] sm:$0xff]
        %v1181 = vld [vmem:[%s221 + $0xda] sm:$0xff]
        %v1182 = vld [vmem:[%s221 + $0xe2] sm:$0xff]
        %v1183 = vld [vmem:[%s221 + $0xf2] sm:$0xff]
        %v1184 = vld [vmem:[%s221 + $0xfa] sm:$0xff]
        %v1185 = vld [vmem:[%s221 + $0x10a] sm:$0xff]
        %v1186 = vld [vmem:[%s221 + $0x112] sm:$0xff]
        %v1187 = vld [vmem:[%s221 + $0x122] sm:$0xff]
        %v1188 = vld [vmem:[%s221 + $0x12a] sm:$0xff]
        %v1189 = vld [vmem:[%s221 + $0x13a] sm:$0xff]
        %v1190 = vld [vmem:[%s221 + $0x142] sm:$0xff]
        %v1191 = vld [vmem:[%s221 + $0x152] sm:$0xff]
        %v1192 = vld [vmem:[%s221 + $0x15a] sm:$0xff]
        %v1193 = vld [vmem:[%s221 + $0x16a] sm:$0xff]
        %v1194 = vld [vmem:[%s221 + $0x172] sm:$0xff]
        %v1195 = vld [vmem:[#allocation2] sm:$0xff]
        %v1196 = vld [vmem:[#allocation2 + $0x8] sm:$0xff]
        %v1197 = vld [vmem:[#allocation2 + $0x10] sm:$0xff]
        %v1198 = vld [vmem:[#allocation2 + $0x18] sm:$0xff]
        %v1199 = vld [vmem:[#allocation2 + $0x20] sm:$0xff]
        %v1200 = vld [vmem:[#allocation2 + $0x28] sm:$0xff]
        %v1201 = vld [vmem:[#allocation2 + $0x30] sm:$0xff]
        %v1202 = vld [vmem:[#allocation2 + $0x38] sm:$0xff]
        %v1203 = vld [vmem:[#allocation2 + $0x40] sm:$0xff]
        %v1204 = vld [vmem:[#allocation2 + $0x48] sm:$0xff]
        %v1205 = vld [vmem:[#allocation2 + $0x50] sm:$0xff]
        %v1206 = vld [vmem:[#allocation2 + $0x58] sm:$0xff]
        %v1207 = vld [vmem:[#allocation2 + $0x60] sm:$0xff]
        %v1208 = vld [vmem:[#allocation2 + $0x68] sm:$0xff]
        %v1209 = vld [vmem:[#allocation2 + $0x70] sm:$0xff]
        %v1210 = vld [vmem:[#allocation2 + $0x78] sm:$0xff]
        %v1211 = vld [vmem:[#allocation2 + $0x80] sm:$0xff]
        %v1212 = vld [vmem:[#allocation2 + $0x88] sm:$0xff]
        %v1213 = vld [vmem:[#allocation2 + $0x90] sm:$0xff]
        %v1214 = vld [vmem:[#allocation2 + $0x98] sm:$0xff]
        %v1215 = vld [vmem:[#allocation2 + $0xa0] sm:$0xff]
        %v1216 = vld [vmem:[#allocation2 + $0xa8] sm:$0xff]
        %v1217 = vld [vmem:[#allocation2 + $0xb0] sm:$0xff]
        %v1218 = vld [vmem:[#allocation2 + $0xb8] sm:$0xff]
        %v1219 = vld [vmem:[#allocation2 + $0xc0] sm:$0xff]
        %v1220 = vld [vmem:[#allocation2 + $0xc8] sm:$0xff]
        %v1221 = vld [vmem:[#allocation2 + $0xd0] sm:$0xff]
        %v1222 = vld [vmem:[#allocation2 + $0xd8] sm:$0xff]
        %v1223 = vld [vmem:[#allocation2 + $0xe0] sm:$0xff]
        %v1224 = vld [vmem:[#allocation2 + $0xe8] sm:$0xff]
        %v1225 = vld [vmem:[#allocation2 + $0xf0] sm:$0xff]
        %v1226 = vld [vmem:[#allocation2 + $0xf8] sm:$0xff]
        %s1227 = scalar_lea.vmem %s1, 8
        %v1228 = vld [vmem:[%s1227] sm:$0xf]
        %v1230 = vsel %vm319, %v1163, 0
        %v1233 = vsel %vm319, %v1164, 0
        %v1236 = vsel %vm319, %v1165, 0
        %v1239 = vsel %vm319, %v1166, 0
        %v1242 = vsel %vm319, %v1167, 0
        %v1245 = vsel %vm319, %v1168, 0
        %v1248 = vsel %vm319, %v1169, 0
        %v1251 = vsel %vm319, %v1170, 0
        %v1254 = vsel %vm319, %v1171, 0
        %v1257 = vsel %vm319, %v1172, 0
        %v1260 = vsel %vm319, %v1173, 0
        %v1263 = vsel %vm319, %v1174, 0
        %v1266 = vsel %vm319, %v1175, 0
        %v1269 = vsel %vm319, %v1176, 0
        %v1272 = vsel %vm319, %v1177, 0
        %v1275 = vsel %vm319, %v1178, 0
        %v1278 = vsel %vm319, %v1179, 0
        %v1281 = vsel %vm319, %v1180, 0
        %v1284 = vsel %vm319, %v1181, 0
        %v1287 = vsel %vm319, %v1182, 0
        %v1290 = vsel %vm319, %v1183, 0
        %v1293 = vsel %vm319, %v1184, 0
        %v1296 = vsel %vm319, %v1185, 0
        %v1299 = vsel %vm319, %v1186, 0
        %v1302 = vsel %vm319, %v1187, 0
        %v1305 = vsel %vm319, %v1188, 0
        %v1308 = vsel %vm319, %v1189, 0
        %v1311 = vsel %vm319, %v1190, 0
        %v1314 = vsel %vm319, %v1191, 0
        %v1317 = vsel %vm319, %v1192, 0
        %v1320 = vsel %vm319, %v1193, 0
        %v1323 = vsel %vm319, %v1194, 0
        %v1326 = vsel %vm416, %v1228, 0
        %1328 = vmatprep.subr.mxu0 0.0
        %1329 = vmatpush1.msra.mxu0 %v1326
        %1330 = vmatprep.subr.mxu0 0.0
        %1331 = vmatpush1.msra.mxu0 0.0
        %1332 = vmatprep.subr.mxu0 0.0
        %1333 = vmatpush1.msra.mxu0 0.0
        %1334 = vmatprep.subr.mxu0 0.0
        %1335 = vmatpush1.msra.mxu0 0.0
        %1336 = vmatprep.subr.mxu0 0.0
        %1337 = vmatpush1.msra.mxu0 0.0
        %1338 = vmatprep.subr.mxu0 0.0
        %1339 = vmatpush1.msra.mxu0 0.0
        %1340 = vmatprep.subr.mxu0 0.0
        %1341 = vmatpush1.msra.mxu0 0.0
        %1342 = vmatprep.subr.mxu0 0.0
        %1343 = vmatpush1.msra.mxu0 0.0
        %1344 = vmatprep.subr.mxu0 0.0
        %1345 = vmatpush1.msra.mxu0 0.0
        %1346 = vmatprep.subr.mxu0 0.0
        %1347 = vmatpush1.msra.mxu0 0.0
        %1348 = vmatprep.subr.mxu0 0.0
        %1349 = vmatpush1.msra.mxu0 0.0
        %1350 = vmatprep.subr.mxu0 0.0
        %1351 = vmatpush1.msra.mxu0 0.0
        %1352 = vmatprep.subr.mxu0 0.0
        %1353 = vmatpush1.msra.mxu0 0.0
        %1354 = vmatprep.subr.mxu0 0.0
        %1355 = vmatpush1.msra.mxu0 0.0
        %1356 = vmatprep.subr.mxu0 0.0
        %1357 = vmatpush1.msra.mxu0 0.0
        %1358 = vmatprep.subr.mxu0 0.0
        %1359 = vmatpush1.msra.mxu0 0.0
        %1360 = vmatprep.subr.mxu0 0.0
        %1361 = vmatpush1.msra.mxu0 0.0
        %1362 = vmatprep.subr.mxu0 0.0
        %1363 = vmatpush1.msra.mxu0 0.0
        %1364 = vmatprep.subr.mxu0 0.0
        %1365 = vmatpush1.msra.mxu0 0.0
        %1366 = vmatprep.subr.mxu0 0.0
        %1367 = vmatpush1.msra.mxu0 0.0
        %1368 = vmatprep.subr.mxu0 0.0
        %1369 = vmatpush1.msra.mxu0 0.0
        %1370 = vmatprep.subr.mxu0 0.0
        %1371 = vmatpush1.msra.mxu0 0.0
        %1372 = vmatprep.subr.mxu0 0.0
        %1373 = vmatpush1.msra.mxu0 0.0
        %1374 = vmatprep.subr.mxu0 0.0
        %1375 = vmatpush1.msra.mxu0 0.0
        %1376 = vmatprep.subr.mxu0 0.0
        %1377 = vmatpush1.msra.mxu0 0.0
        %1378 = vmatprep.subr.mxu0 0.0
        %1379 = vmatpush1.msra.mxu0 0.0
        %1380 = vmatprep.subr.mxu0 0.0
        %1381 = vmatpush1.msra.mxu0 0.0
        %1382 = vmatprep.subr.mxu0 0.0
        %1383 = vmatpush1.msra.mxu0 0.0
        %1384 = vmatprep.subr.mxu0 0.0
        %1385 = vmatpush1.msra.mxu0 0.0
        %1386 = vmatprep.subr.mxu0 0.0
        %1387 = vmatpush1.msra.mxu0 0.0
        %1388 = vmatprep.subr.mxu0 0.0
        %1389 = vmatpush1.msra.mxu0 0.0
        %1390 = vmatprep.subr.mxu0 0.0
        %1391 = vmatpush1.msra.mxu0 0.0
        %1392 = vmatprep.mubr.f32.mxu0 0.0
        %1393 = vmatmul.mubr.f32.gmra.mrb[0].mxu0 %v1230
        %v1394 = vpop.f32.mrb[0].mxu0
        %v1395 = vadd.f32 0.0, %v1394
        %v1396 = vpop.f32.mrb[0].mxu0
        %1397 = vmatprep.mubr.f32.mxu0 0.0
        %1398 = vmatmul.mubr.f32.gmra.mrb[0].mxu0 %v1233
        %v1399 = vpop.f32.mrb[0].mxu0
        %v1400 = vadd.f32 0.0, %v1399
        %v1401 = vpop.f32.mrb[0].mxu0
        %1402 = vmatprep.mubr.f32.mxu0 0.0
        %1403 = vmatmul.mubr.f32.gmra.mrb[0].mxu0 %v1236
        %v1404 = vpop.f32.mrb[0].mxu0
        %v1405 = vadd.f32 0.0, %v1404
        %v1406 = vpop.f32.mrb[0].mxu0
        %1407 = vmatprep.mubr.f32.mxu0 0.0
        %1408 = vmatmul.mubr.f32.gmra.mrb[0].mxu0 %v1239
        %v1409 = vpop.f32.mrb[0].mxu0
        %v1410 = vadd.f32 0.0, %v1409
        %v1411 = vpop.f32.mrb[0].mxu0
        %1412 = vmatprep.mubr.f32.mxu0 0.0
        %1413 = vmatmul.mubr.f32.gmra.mrb[0].mxu0 %v1242
        %v1414 = vpop.f32.mrb[0].mxu0
        %v1415 = vadd.f32 0.0, %v1414
        %v1416 = vpop.f32.mrb[0].mxu0
        %1417 = vmatprep.mubr.f32.mxu0 0.0
        %1418 = vmatmul.mubr.f32.gmra.mrb[0].mxu0 %v1245
        %v1419 = vpop.f32.mrb[0].mxu0
        %v1420 = vadd.f32 0.0, %v1419
        %v1421 = vpop.f32.mrb[0].mxu0
        %1422 = vmatprep.mubr.f32.mxu0 0.0
        %1423 = vmatmul.mubr.f32.gmra.mrb[0].mxu0 %v1248
        %v1424 = vpop.f32.mrb[0].mxu0
        %v1425 = vadd.f32 0.0, %v1424
        %v1426 = vpop.f32.mrb[0].mxu0
        %1427 = vmatprep.mubr.f32.mxu0 0.0
        %1428 = vmatmul.mubr.f32.gmra.mrb[0].mxu0 %v1251
        %v1429 = vpop.f32.mrb[0].mxu0
        %v1430 = vadd.f32 0.0, %v1429
        %v1431 = vpop.f32.mrb[0].mxu0
        %1432 = vmatprep.mubr.f32.mxu0 0.0
        %1433 = vmatmul.mubr.f32.gmra.mrb[0].mxu0 %v1254
        %v1434 = vpop.f32.mrb[0].mxu0
        %v1435 = vadd.f32 0.0, %v1434
        %v1436 = vpop.f32.mrb[0].mxu0
        %1437 = vmatprep.mubr.f32.mxu0 0.0
        %1438 = vmatmul.mubr.f32.gmra.mrb[0].mxu0 %v1257
        %v1439 = vpop.f32.mrb[0].mxu0
        %v1440 = vadd.f32 0.0, %v1439
        %v1441 = vpop.f32.mrb[0].mxu0
        %1442 = vmatprep.mubr.f32.mxu0 0.0
        %1443 = vmatmul.mubr.f32.gmra.mrb[0].mxu0 %v1260
        %v1444 = vpop.f32.mrb[0].mxu0
        %v1445 = vadd.f32 0.0, %v1444
        %v1446 = vpop.f32.mrb[0].mxu0
        %1447 = vmatprep.mubr.f32.mxu0 0.0
        %1448 = vmatmul.mubr.f32.gmra.mrb[0].mxu0 %v1263
        %v1449 = vpop.f32.mrb[0].mxu0
        %v1450 = vadd.f32 0.0, %v1449
        %v1451 = vpop.f32.mrb[0].mxu0
        %1452 = vmatprep.mubr.f32.mxu0 0.0
        %1453 = vmatmul.mubr.f32.gmra.mrb[0].mxu0 %v1266
        %v1454 = vpop.f32.mrb[0].mxu0
        %v1455 = vadd.f32 0.0, %v1454
        %v1456 = vpop.f32.mrb[0].mxu0
        %1457 = vmatprep.mubr.f32.mxu0 0.0
        %1458 = vmatmul.mubr.f32.gmra.mrb[0].mxu0 %v1269
        %v1459 = vpop.f32.mrb[0].mxu0
        %v1460 = vadd.f32 0.0, %v1459
        %v1461 = vpop.f32.mrb[0].mxu0
        %1462 = vmatprep.mubr.f32.mxu0 0.0
        %1463 = vmatmul.mubr.f32.gmra.mrb[0].mxu0 %v1272
        %v1464 = vpop.f32.mrb[0].mxu0
        %v1465 = vadd.f32 0.0, %v1464
        %v1466 = vpop.f32.mrb[0].mxu0
        %1467 = vmatprep.mubr.f32.mxu0 0.0
        %1468 = vmatmul.mubr.f32.gmra.mrb[0].mxu0 %v1275
        %v1469 = vpop.f32.mrb[0].mxu0
        %v1470 = vadd.f32 0.0, %v1469
        %v1471 = vpop.f32.mrb[0].mxu0
        %1472 = vmatprep.mubr.f32.mxu0 0.0
        %1473 = vmatmul.mubr.f32.gmra.mrb[0].mxu0 %v1278
        %v1474 = vpop.f32.mrb[0].mxu0
        %v1475 = vadd.f32 0.0, %v1474
        %v1476 = vpop.f32.mrb[0].mxu0
        %1477 = vmatprep.mubr.f32.mxu0 0.0
        %1478 = vmatmul.mubr.f32.gmra.mrb[0].mxu0 %v1281
        %v1479 = vpop.f32.mrb[0].mxu0
        %v1480 = vadd.f32 0.0, %v1479
        %v1481 = vpop.f32.mrb[0].mxu0
        %1482 = vmatprep.mubr.f32.mxu0 0.0
        %1483 = vmatmul.mubr.f32.gmra.mrb[0].mxu0 %v1284
        %v1484 = vpop.f32.mrb[0].mxu0
        %v1485 = vadd.f32 0.0, %v1484
        %v1486 = vpop.f32.mrb[0].mxu0
        %1487 = vmatprep.mubr.f32.mxu0 0.0
        %1488 = vmatmul.mubr.f32.gmra.mrb[0].mxu0 %v1287
        %v1489 = vpop.f32.mrb[0].mxu0
        %v1490 = vadd.f32 0.0, %v1489
        %v1491 = vpop.f32.mrb[0].mxu0
        %1492 = vmatprep.mubr.f32.mxu0 0.0
        %1493 = vmatmul.mubr.f32.gmra.mrb[0].mxu0 %v1290
        %v1494 = vpop.f32.mrb[0].mxu0
        %v1495 = vadd.f32 0.0, %v1494
        %v1496 = vpop.f32.mrb[0].mxu0
        %1497 = vmatprep.mubr.f32.mxu0 0.0
        %1498 = vmatmul.mubr.f32.gmra.mrb[0].mxu0 %v1293
        %v1499 = vpop.f32.mrb[0].mxu0
        %v1500 = vadd.f32 0.0, %v1499
        %v1501 = vpop.f32.mrb[0].mxu0
        %1502 = vmatprep.mubr.f32.mxu0 0.0
        %1503 = vmatmul.mubr.f32.gmra.mrb[0].mxu0 %v1296
        %v1504 = vpop.f32.mrb[0].mxu0
        %v1505 = vadd.f32 0.0, %v1504
        %v1506 = vpop.f32.mrb[0].mxu0
        %1507 = vmatprep.mubr.f32.mxu0 0.0
        %1508 = vmatmul.mubr.f32.gmra.mrb[0].mxu0 %v1299
        %v1509 = vpop.f32.mrb[0].mxu0
        %v1510 = vadd.f32 0.0, %v1509
        %v1511 = vpop.f32.mrb[0].mxu0
        %1512 = vmatprep.mubr.f32.mxu0 0.0
        %1513 = vmatmul.mubr.f32.gmra.mrb[0].mxu0 %v1302
        %v1514 = vpop.f32.mrb[0].mxu0
        %v1515 = vadd.f32 0.0, %v1514
        %v1516 = vpop.f32.mrb[0].mxu0
        %1517 = vmatprep.mubr.f32.mxu0 0.0
        %1518 = vmatmul.mubr.f32.gmra.mrb[0].mxu0 %v1305
        %v1519 = vpop.f32.mrb[0].mxu0
        %v1520 = vadd.f32 0.0, %v1519
        %v1521 = vpop.f32.mrb[0].mxu0
        %1522 = vmatprep.mubr.f32.mxu0 0.0
        %1523 = vmatmul.mubr.f32.gmra.mrb[0].mxu0 %v1308
        %v1524 = vpop.f32.mrb[0].mxu0
        %v1525 = vadd.f32 0.0, %v1524
        %v1526 = vpop.f32.mrb[0].mxu0
        %1527 = vmatprep.mubr.f32.mxu0 0.0
        %1528 = vmatmul.mubr.f32.gmra.mrb[0].mxu0 %v1311
        %v1529 = vpop.f32.mrb[0].mxu0
        %v1530 = vadd.f32 0.0, %v1529
        %v1531 = vpop.f32.mrb[0].mxu0
        %1532 = vmatprep.mubr.f32.mxu0 0.0
        %1533 = vmatmul.mubr.f32.gmra.mrb[0].mxu0 %v1314
        %v1534 = vpop.f32.mrb[0].mxu0
        %v1535 = vadd.f32 0.0, %v1534
        %v1536 = vpop.f32.mrb[0].mxu0
        %1537 = vmatprep.mubr.f32.mxu0 0.0
        %1538 = vmatmul.mubr.f32.gmra.mrb[0].mxu0 %v1317
        %v1539 = vpop.f32.mrb[0].mxu0
        %v1540 = vadd.f32 0.0, %v1539
        %v1541 = vpop.f32.mrb[0].mxu0
        %1542 = vmatprep.mubr.f32.mxu0 0.0
        %1543 = vmatmul.mubr.f32.gmra.mrb[0].mxu0 %v1320
        %v1544 = vpop.f32.mrb[0].mxu0
        %v1545 = vadd.f32 0.0, %v1544
        %v1546 = vpop.f32.mrb[0].mxu0
        %1547 = vmatprep.mubr.f32.mxu0 0.0
        %1548 = vmatmul.mubr.f32.gmra.mrb[0].mxu0 %v1323
        %v1549 = vpop.f32.mrb[0].mxu0
        %v1550 = vadd.f32 0.0, %v1549
        %v1551 = vpop.f32.mrb[0].mxu0
        %1552 = vdwg.mxu0
        %v1553 = vadd.f32 %v1195, %v1395
        %v1554 = vadd.f32 %v1196, %v1400
        %v1555 = vadd.f32 %v1197, %v1405
        %v1556 = vadd.f32 %v1198, %v1410
        %v1557 = vadd.f32 %v1199, %v1415
        %v1558 = vadd.f32 %v1200, %v1420
        %v1559 = vadd.f32 %v1201, %v1425
        %v1560 = vadd.f32 %v1202, %v1430
        %v1561 = vadd.f32 %v1203, %v1435
        %v1562 = vadd.f32 %v1204, %v1440
        %v1563 = vadd.f32 %v1205, %v1445
        %v1564 = vadd.f32 %v1206, %v1450
        %v1565 = vadd.f32 %v1207, %v1455
        %v1566 = vadd.f32 %v1208, %v1460
        %v1567 = vadd.f32 %v1209, %v1465
        %v1568 = vadd.f32 %v1210, %v1470
        %v1569 = vadd.f32 %v1211, %v1475
        %v1570 = vadd.f32 %v1212, %v1480
        %v1571 = vadd.f32 %v1213, %v1485
        %v1572 = vadd.f32 %v1214, %v1490
        %v1573 = vadd.f32 %v1215, %v1495
        %v1574 = vadd.f32 %v1216, %v1500
        %v1575 = vadd.f32 %v1217, %v1505
        %v1576 = vadd.f32 %v1218, %v1510
        %v1577 = vadd.f32 %v1219, %v1515
        %v1578 = vadd.f32 %v1220, %v1520
        %v1579 = vadd.f32 %v1221, %v1525
        %v1580 = vadd.f32 %v1222, %v1530
        %v1581 = vadd.f32 %v1223, %v1535
        %v1582 = vadd.f32 %v1224, %v1540
        %v1583 = vadd.f32 %v1225, %v1545
        %v1584 = vadd.f32 %v1226, %v1550
        %1585 = vst [vmem:[#allocation2] sm:$0xff] %v1553
        %1586 = vst [vmem:[#allocation2 + $0x8] sm:$0xff] %v1554
        %1587 = vst [vmem:[#allocation2 + $0x10] sm:$0xff] %v1555
        %1588 = vst [vmem:[#allocation2 + $0x18] sm:$0xff] %v1556
        %1589 = vst [vmem:[#allocation2 + $0x20] sm:$0xff] %v1557
        %1590 = vst [vmem:[#allocation2 + $0x28] sm:$0xff] %v1558
        %1591 = vst [vmem:[#allocation2 + $0x30] sm:$0xff] %v1559
        %1592 = vst [vmem:[#allocation2 + $0x38] sm:$0xff] %v1560
        %1593 = vst [vmem:[#allocation2 + $0x40] sm:$0xff] %v1561
        %1594 = vst [vmem:[#allocation2 + $0x48] sm:$0xff] %v1562
        %1595 = vst [vmem:[#allocation2 + $0x50] sm:$0xff] %v1563
        %1596 = vst [vmem:[#allocation2 + $0x58] sm:$0xff] %v1564
        %1597 = vst [vmem:[#allocation2 + $0x60] sm:$0xff] %v1565
        %1598 = vst [vmem:[#allocation2 + $0x68] sm:$0xff] %v1566
        %1599 = vst [vmem:[#allocation2 + $0x70] sm:$0xff] %v1567
        %1600 = vst [vmem:[#allocation2 + $0x78] sm:$0xff] %v1568
        %1601 = vst [vmem:[#allocation2 + $0x80] sm:$0xff] %v1569
        %1602 = vst [vmem:[#allocation2 + $0x88] sm:$0xff] %v1570
        %1603 = vst [vmem:[#allocation2 + $0x90] sm:$0xff] %v1571
        %1604 = vst [vmem:[#allocation2 + $0x98] sm:$0xff] %v1572
        %1605 = vst [vmem:[#allocation2 + $0xa0] sm:$0xff] %v1573
        %1606 = vst [vmem:[#allocation2 + $0xa8] sm:$0xff] %v1574
        %1607 = vst [vmem:[#allocation2 + $0xb0] sm:$0xff] %v1575
        %1608 = vst [vmem:[#allocation2 + $0xb8] sm:$0xff] %v1576
        %1609 = vst [vmem:[#allocation2 + $0xc0] sm:$0xff] %v1577
        %1610 = vst [vmem:[#allocation2 + $0xc8] sm:$0xff] %v1578
        %1611 = vst [vmem:[#allocation2 + $0xd0] sm:$0xff] %v1579
        %1612 = vst [vmem:[#allocation2 + $0xd8] sm:$0xff] %v1580
        %1613 = vst [vmem:[#allocation2 + $0xe0] sm:$0xff] %v1581
        %1614 = vst [vmem:[#allocation2 + $0xe8] sm:$0xff] %v1582
        %1615 = vst [vmem:[#allocation2 + $0xf0] sm:$0xff] %v1583
        %1616 = vst [vmem:[#allocation2 + $0xf8] sm:$0xff] %v1584
        %s1617 = scalar_lea.vmem %s221, 24
        %v1618 = vld [vmem:[%s1617] sm:$0xff]
        %v1619 = vld [vmem:[%s1617 + $0x8] sm:$0xff]
        %v1620 = vld [vmem:[%s1617 + $0x18] sm:$0xff]
        %v1621 = vld [vmem:[%s1617 + $0x20] sm:$0xff]
        %v1622 = vld [vmem:[%s1617 + $0x30] sm:$0xff]
        %v1623 = vld [vmem:[%s1617 + $0x38] sm:$0xff]
        %v1624 = vld [vmem:[%s1617 + $0x48] sm:$0xff]
        %v1625 = vld [vmem:[%s1617 + $0x50] sm:$0xff]
        %v1626 = vld [vmem:[%s1617 + $0x60] sm:$0xff]
        %v1627 = vld [vmem:[%s1617 + $0x68] sm:$0xff]
        %v1628 = vld [vmem:[%s1617 + $0x78] sm:$0xff]
        %v1629 = vld [vmem:[%s1617 + $0x80] sm:$0xff]
        %v1630 = vld [vmem:[%s1617 + $0x90] sm:$0xff]
        %v1631 = vld [vmem:[%s1617 + $0x98] sm:$0xff]
        %v1632 = vld [vmem:[%s1617 + $0xa8] sm:$0xff]
        %v1633 = vld [vmem:[%s1617 + $0xb0] sm:$0xff]
        %v1634 = vld [vmem:[%s1617 + $0xc0] sm:$0xff]
        %v1635 = vld [vmem:[%s1617 + $0xc8] sm:$0xff]
        %v1636 = vld [vmem:[%s1617 + $0xd8] sm:$0xff]
        %v1637 = vld [vmem:[%s1617 + $0xe0] sm:$0xff]
        %v1638 = vld [vmem:[%s1617 + $0xf0] sm:$0xff]
        %v1639 = vld [vmem:[%s1617 + $0xf8] sm:$0xff]
        %v1640 = vld [vmem:[%s1617 + $0x108] sm:$0xff]
        %v1641 = vld [vmem:[%s1617 + $0x110] sm:$0xff]
        %v1642 = vld [vmem:[%s1617 + $0x120] sm:$0xff]
        %v1643 = vld [vmem:[%s1617 + $0x128] sm:$0xff]
        %v1644 = vld [vmem:[%s1617 + $0x138] sm:$0xff]
        %v1645 = vld [vmem:[%s1617 + $0x140] sm:$0xff]
        %v1646 = vld [vmem:[%s1617 + $0x150] sm:$0xff]
        %v1647 = vld [vmem:[%s1617 + $0x158] sm:$0xff]
        %v1648 = vld [vmem:[%s1617 + $0x168] sm:$0xff]
        %v1649 = vld [vmem:[%s1617 + $0x170] sm:$0xff]
        %v1650 = vld [vmem:[#allocation2] sm:$0xff]
        %v1651 = vld [vmem:[#allocation2 + $0x8] sm:$0xff]
        %v1652 = vld [vmem:[#allocation2 + $0x10] sm:$0xff]
        %v1653 = vld [vmem:[#allocation2 + $0x18] sm:$0xff]
        %v1654 = vld [vmem:[#allocation2 + $0x20] sm:$0xff]
        %v1655 = vld [vmem:[#allocation2 + $0x28] sm:$0xff]
        %v1656 = vld [vmem:[#allocation2 + $0x30] sm:$0xff]
        %v1657 = vld [vmem:[#allocation2 + $0x38] sm:$0xff]
        %v1658 = vld [vmem:[#allocation2 + $0x40] sm:$0xff]
        %v1659 = vld [vmem:[#allocation2 + $0x48] sm:$0xff]
        %v1660 = vld [vmem:[#allocation2 + $0x50] sm:$0xff]
        %v1661 = vld [vmem:[#allocation2 + $0x58] sm:$0xff]
        %v1662 = vld [vmem:[#allocation2 + $0x60] sm:$0xff]
        %v1663 = vld [vmem:[#allocation2 + $0x68] sm:$0xff]
        %v1664 = vld [vmem:[#allocation2 + $0x70] sm:$0xff]
        %v1665 = vld [vmem:[#allocation2 + $0x78] sm:$0xff]
        %v1666 = vld [vmem:[#allocation2 + $0x80] sm:$0xff]
        %v1667 = vld [vmem:[#allocation2 + $0x88] sm:$0xff]
        %v1668 = vld [vmem:[#allocation2 + $0x90] sm:$0xff]
        %v1669 = vld [vmem:[#allocation2 + $0x98] sm:$0xff]
        %v1670 = vld [vmem:[#allocation2 + $0xa0] sm:$0xff]
        %v1671 = vld [vmem:[#allocation2 + $0xa8] sm:$0xff]
        %v1672 = vld [vmem:[#allocation2 + $0xb0] sm:$0xff]
        %v1673 = vld [vmem:[#allocation2 + $0xb8] sm:$0xff]
        %v1674 = vld [vmem:[#allocation2 + $0xc0] sm:$0xff]
        %v1675 = vld [vmem:[#allocation2 + $0xc8] sm:$0xff]
        %v1676 = vld [vmem:[#allocation2 + $0xd0] sm:$0xff]
        %v1677 = vld [vmem:[#allocation2 + $0xd8] sm:$0xff]
        %v1678 = vld [vmem:[#allocation2 + $0xe0] sm:$0xff]
        %v1679 = vld [vmem:[#allocation2 + $0xe8] sm:$0xff]
        %v1680 = vld [vmem:[#allocation2 + $0xf0] sm:$0xff]
        %v1681 = vld [vmem:[#allocation2 + $0xf8] sm:$0xff]
        %s1682 = scalar_lea.vmem %s1, 12
        %v1683 = vld [vmem:[%s1682] sm:$0xf]
        %v1685 = vsel %vm319, %v1618, 0
        %v1688 = vsel %vm319, %v1619, 0
        %v1691 = vsel %vm319, %v1620, 0
        %v1694 = vsel %vm319, %v1621, 0
        %v1697 = vsel %vm319, %v1622, 0
        %v1700 = vsel %vm319, %v1623, 0
        %v1703 = vsel %vm319, %v1624, 0
        %v1706 = vsel %vm319, %v1625, 0
        %v1709 = vsel %vm319, %v1626, 0
        %v1712 = vsel %vm319, %v1627, 0
        %v1715 = vsel %vm319, %v1628, 0
        %v1718 = vsel %vm319, %v1629, 0
        %v1721 = vsel %vm319, %v1630, 0
        %v1724 = vsel %vm319, %v1631, 0
        %v1727 = vsel %vm319, %v1632, 0
        %v1730 = vsel %vm319, %v1633, 0
        %v1733 = vsel %vm319, %v1634, 0
        %v1736 = vsel %vm319, %v1635, 0
        %v1739 = vsel %vm319, %v1636, 0
        %v1742 = vsel %vm319, %v1637, 0
        %v1745 = vsel %vm319, %v1638, 0
        %v1748 = vsel %vm319, %v1639, 0
        %v1751 = vsel %vm319, %v1640, 0
        %v1754 = vsel %vm319, %v1641, 0
        %v1757 = vsel %vm319, %v1642, 0
        %v1760 = vsel %vm319, %v1643, 0
        %v1763 = vsel %vm319, %v1644, 0
        %v1766 = vsel %vm319, %v1645, 0
        %v1769 = vsel %vm319, %v1646, 0
        %v1772 = vsel %vm319, %v1647, 0
        %v1775 = vsel %vm319, %v1648, 0
        %v1778 = vsel %vm319, %v1649, 0
        %v1781 = vsel %vm416, %v1683, 0
        %1783 = vmatprep.subr.mxu0 0.0
        %1784 = vmatpush1.msra.mxu0 %v1781
        %1785 = vmatprep.subr.mxu0 0.0
        %1786 = vmatpush1.msra.mxu0 0.0
        %1787 = vmatprep.subr.mxu0 0.0
        %1788 = vmatpush1.msra.mxu0 0.0
        %1789 = vmatprep.subr.mxu0 0.0
        %1790 = vmatpush1.msra.mxu0 0.0
        %1791 = vmatprep.subr.mxu0 0.0
        %1792 = vmatpush1.msra.mxu0 0.0
        %1793 = vmatprep.subr.mxu0 0.0
        %1794 = vmatpush1.msra.mxu0 0.0
        %1795 = vmatprep.subr.mxu0 0.0
        %1796 = vmatpush1.msra.mxu0 0.0
        %1797 = vmatprep.subr.mxu0 0.0
        %1798 = vmatpush1.msra.mxu0 0.0
        %1799 = vmatprep.subr.mxu0 0.0
        %1800 = vmatpush1.msra.mxu0 0.0
        %1801 = vmatprep.subr.mxu0 0.0
        %1802 = vmatpush1.msra.mxu0 0.0
        %1803 = vmatprep.subr.mxu0 0.0
        %1804 = vmatpush1.msra.mxu0 0.0
        %1805 = vmatprep.subr.mxu0 0.0
        %1806 = vmatpush1.msra.mxu0 0.0
        %1807 = vmatprep.subr.mxu0 0.0
        %1808 = vmatpush1.msra.mxu0 0.0
        %1809 = vmatprep.subr.mxu0 0.0
        %1810 = vmatpush1.msra.mxu0 0.0
        %1811 = vmatprep.subr.mxu0 0.0
        %1812 = vmatpush1.msra.mxu0 0.0
        %1813 = vmatprep.subr.mxu0 0.0
        %1814 = vmatpush1.msra.mxu0 0.0
        %1815 = vmatprep.subr.mxu0 0.0
        %1816 = vmatpush1.msra.mxu0 0.0
        %1817 = vmatprep.subr.mxu0 0.0
        %1818 = vmatpush1.msra.mxu0 0.0
        %1819 = vmatprep.subr.mxu0 0.0
        %1820 = vmatpush1.msra.mxu0 0.0
        %1821 = vmatprep.subr.mxu0 0.0
        %1822 = vmatpush1.msra.mxu0 0.0
        %1823 = vmatprep.subr.mxu0 0.0
        %1824 = vmatpush1.msra.mxu0 0.0
        %1825 = vmatprep.subr.mxu0 0.0
        %1826 = vmatpush1.msra.mxu0 0.0
        %1827 = vmatprep.subr.mxu0 0.0
        %1828 = vmatpush1.msra.mxu0 0.0
        %1829 = vmatprep.subr.mxu0 0.0
        %1830 = vmatpush1.msra.mxu0 0.0
        %1831 = vmatprep.subr.mxu0 0.0
        %1832 = vmatpush1.msra.mxu0 0.0
        %1833 = vmatprep.subr.mxu0 0.0
        %1834 = vmatpush1.msra.mxu0 0.0
        %1835 = vmatprep.subr.mxu0 0.0
        %1836 = vmatpush1.msra.mxu0 0.0
        %1837 = vmatprep.subr.mxu0 0.0
        %1838 = vmatpush1.msra.mxu0 0.0
        %1839 = vmatprep.subr.mxu0 0.0
        %1840 = vmatpush1.msra.mxu0 0.0
        %1841 = vmatprep.subr.mxu0 0.0
        %1842 = vmatpush1.msra.mxu0 0.0
        %1843 = vmatprep.subr.mxu0 0.0
        %1844 = vmatpush1.msra.mxu0 0.0
        %1845 = vmatprep.subr.mxu0 0.0
        %1846 = vmatpush1.msra.mxu0 0.0
        %1847 = vmatprep.mubr.f32.mxu0 0.0
        %1848 = vmatmul.mubr.f32.gmra.mrb[0].mxu0 %v1685
        %v1849 = vpop.f32.mrb[0].mxu0
        %v1850 = vadd.f32 0.0, %v1849
        %v1851 = vpop.f32.mrb[0].mxu0
        %1852 = vmatprep.mubr.f32.mxu0 0.0
        %1853 = vmatmul.mubr.f32.gmra.mrb[0].mxu0 %v1688
        %v1854 = vpop.f32.mrb[0].mxu0
        %v1855 = vadd.f32 0.0, %v1854
        %v1856 = vpop.f32.mrb[0].mxu0
        %1857 = vmatprep.mubr.f32.mxu0 0.0
        %1858 = vmatmul.mubr.f32.gmra.mrb[0].mxu0 %v1691
        %v1859 = vpop.f32.mrb[0].mxu0
        %v1860 = vadd.f32 0.0, %v1859
        %v1861 = vpop.f32.mrb[0].mxu0
        %1862 = vmatprep.mubr.f32.mxu0 0.0
        %1863 = vmatmul.mubr.f32.gmra.mrb[0].mxu0 %v1694
        %v1864 = vpop.f32.mrb[0].mxu0
        %v1865 = vadd.f32 0.0, %v1864
        %v1866 = vpop.f32.mrb[0].mxu0
        %1867 = vmatprep.mubr.f32.mxu0 0.0
        %1868 = vmatmul.mubr.f32.gmra.mrb[0].mxu0 %v1697
        %v1869 = vpop.f32.mrb[0].mxu0
        %v1870 = vadd.f32 0.0, %v1869
        %v1871 = vpop.f32.mrb[0].mxu0
        %1872 = vmatprep.mubr.f32.mxu0 0.0
        %1873 = vmatmul.mubr.f32.gmra.mrb[0].mxu0 %v1700
        %v1874 = vpop.f32.mrb[0].mxu0
        %v1875 = vadd.f32 0.0, %v1874
        %v1876 = vpop.f32.mrb[0].mxu0
        %1877 = vmatprep.mubr.f32.mxu0 0.0
        %1878 = vmatmul.mubr.f32.gmra.mrb[0].mxu0 %v1703
        %v1879 = vpop.f32.mrb[0].mxu0
        %v1880 = vadd.f32 0.0, %v1879
        %v1881 = vpop.f32.mrb[0].mxu0
        %1882 = vmatprep.mubr.f32.mxu0 0.0
        %1883 = vmatmul.mubr.f32.gmra.mrb[0].mxu0 %v1706
        %v1884 = vpop.f32.mrb[0].mxu0
        %v1885 = vadd.f32 0.0, %v1884
        %v1886 = vpop.f32.mrb[0].mxu0
        %1887 = vmatprep.mubr.f32.mxu0 0.0
        %1888 = vmatmul.mubr.f32.gmra.mrb[0].mxu0 %v1709
        %v1889 = vpop.f32.mrb[0].mxu0
        %v1890 = vadd.f32 0.0, %v1889
        %v1891 = vpop.f32.mrb[0].mxu0
        %1892 = vmatprep.mubr.f32.mxu0 0.0
        %1893 = vmatmul.mubr.f32.gmra.mrb[0].mxu0 %v1712
        %v1894 = vpop.f32.mrb[0].mxu0
        %v1895 = vadd.f32 0.0, %v1894
        %v1896 = vpop.f32.mrb[0].mxu0
        %1897 = vmatprep.mubr.f32.mxu0 0.0
        %1898 = vmatmul.mubr.f32.gmra.mrb[0].mxu0 %v1715
        %v1899 = vpop.f32.mrb[0].mxu0
        %v1900 = vadd.f32 0.0, %v1899
        %v1901 = vpop.f32.mrb[0].mxu0
        %1902 = vmatprep.mubr.f32.mxu0 0.0
        %1903 = vmatmul.mubr.f32.gmra.mrb[0].mxu0 %v1718
        %v1904 = vpop.f32.mrb[0].mxu0
        %v1905 = vadd.f32 0.0, %v1904
        %v1906 = vpop.f32.mrb[0].mxu0
        %1907 = vmatprep.mubr.f32.mxu0 0.0
        %1908 = vmatmul.mubr.f32.gmra.mrb[0].mxu0 %v1721
        %v1909 = vpop.f32.mrb[0].mxu0
        %v1910 = vadd.f32 0.0, %v1909
        %v1911 = vpop.f32.mrb[0].mxu0
        %1912 = vmatprep.mubr.f32.mxu0 0.0
        %1913 = vmatmul.mubr.f32.gmra.mrb[0].mxu0 %v1724
        %v1914 = vpop.f32.mrb[0].mxu0
        %v1915 = vadd.f32 0.0, %v1914
        %v1916 = vpop.f32.mrb[0].mxu0
        %1917 = vmatprep.mubr.f32.mxu0 0.0
        %1918 = vmatmul.mubr.f32.gmra.mrb[0].mxu0 %v1727
        %v1919 = vpop.f32.mrb[0].mxu0
        %v1920 = vadd.f32 0.0, %v1919
        %v1921 = vpop.f32.mrb[0].mxu0
        %1922 = vmatprep.mubr.f32.mxu0 0.0
        %1923 = vmatmul.mubr.f32.gmra.mrb[0].mxu0 %v1730
        %v1924 = vpop.f32.mrb[0].mxu0
        %v1925 = vadd.f32 0.0, %v1924
        %v1926 = vpop.f32.mrb[0].mxu0
        %1927 = vmatprep.mubr.f32.mxu0 0.0
        %1928 = vmatmul.mubr.f32.gmra.mrb[0].mxu0 %v1733
        %v1929 = vpop.f32.mrb[0].mxu0
        %v1930 = vadd.f32 0.0, %v1929
        %v1931 = vpop.f32.mrb[0].mxu0
        %1932 = vmatprep.mubr.f32.mxu0 0.0
        %1933 = vmatmul.mubr.f32.gmra.mrb[0].mxu0 %v1736
        %v1934 = vpop.f32.mrb[0].mxu0
        %v1935 = vadd.f32 0.0, %v1934
        %v1936 = vpop.f32.mrb[0].mxu0
        %1937 = vmatprep.mubr.f32.mxu0 0.0
        %1938 = vmatmul.mubr.f32.gmra.mrb[0].mxu0 %v1739
        %v1939 = vpop.f32.mrb[0].mxu0
        %v1940 = vadd.f32 0.0, %v1939
        %v1941 = vpop.f32.mrb[0].mxu0
        %1942 = vmatprep.mubr.f32.mxu0 0.0
        %1943 = vmatmul.mubr.f32.gmra.mrb[0].mxu0 %v1742
        %v1944 = vpop.f32.mrb[0].mxu0
        %v1945 = vadd.f32 0.0, %v1944
        %v1946 = vpop.f32.mrb[0].mxu0
        %1947 = vmatprep.mubr.f32.mxu0 0.0
        %1948 = vmatmul.mubr.f32.gmra.mrb[0].mxu0 %v1745
        %v1949 = vpop.f32.mrb[0].mxu0
        %v1950 = vadd.f32 0.0, %v1949
        %v1951 = vpop.f32.mrb[0].mxu0
        %1952 = vmatprep.mubr.f32.mxu0 0.0
        %1953 = vmatmul.mubr.f32.gmra.mrb[0].mxu0 %v1748
        %v1954 = vpop.f32.mrb[0].mxu0
        %v1955 = vadd.f32 0.0, %v1954
        %v1956 = vpop.f32.mrb[0].mxu0
        %1957 = vmatprep.mubr.f32.mxu0 0.0
        %1958 = vmatmul.mubr.f32.gmra.mrb[0].mxu0 %v1751
        %v1959 = vpop.f32.mrb[0].mxu0
        %v1960 = vadd.f32 0.0, %v1959
        %v1961 = vpop.f32.mrb[0].mxu0
        %1962 = vmatprep.mubr.f32.mxu0 0.0
        %1963 = vmatmul.mubr.f32.gmra.mrb[0].mxu0 %v1754
        %v1964 = vpop.f32.mrb[0].mxu0
        %v1965 = vadd.f32 0.0, %v1964
        %v1966 = vpop.f32.mrb[0].mxu0
        %1967 = vmatprep.mubr.f32.mxu0 0.0
        %1968 = vmatmul.mubr.f32.gmra.mrb[0].mxu0 %v1757
        %v1969 = vpop.f32.mrb[0].mxu0
        %v1970 = vadd.f32 0.0, %v1969
        %v1971 = vpop.f32.mrb[0].mxu0
        %1972 = vmatprep.mubr.f32.mxu0 0.0
        %1973 = vmatmul.mubr.f32.gmra.mrb[0].mxu0 %v1760
        %v1974 = vpop.f32.mrb[0].mxu0
        %v1975 = vadd.f32 0.0, %v1974
        %v1976 = vpop.f32.mrb[0].mxu0
        %1977 = vmatprep.mubr.f32.mxu0 0.0
        %1978 = vmatmul.mubr.f32.gmra.mrb[0].mxu0 %v1763
        %v1979 = vpop.f32.mrb[0].mxu0
        %v1980 = vadd.f32 0.0, %v1979
        %v1981 = vpop.f32.mrb[0].mxu0
        %1982 = vmatprep.mubr.f32.mxu0 0.0
        %1983 = vmatmul.mubr.f32.gmra.mrb[0].mxu0 %v1766
        %v1984 = vpop.f32.mrb[0].mxu0
        %v1985 = vadd.f32 0.0, %v1984
        %v1986 = vpop.f32.mrb[0].mxu0
        %1987 = vmatprep.mubr.f32.mxu0 0.0
        %1988 = vmatmul.mubr.f32.gmra.mrb[0].mxu0 %v1769
        %v1989 = vpop.f32.mrb[0].mxu0
        %v1990 = vadd.f32 0.0, %v1989
        %v1991 = vpop.f32.mrb[0].mxu0
        %1992 = vmatprep.mubr.f32.mxu0 0.0
        %1993 = vmatmul.mubr.f32.gmra.mrb[0].mxu0 %v1772
        %v1994 = vpop.f32.mrb[0].mxu0
        %v1995 = vadd.f32 0.0, %v1994
        %v1996 = vpop.f32.mrb[0].mxu0
        %1997 = vmatprep.mubr.f32.mxu0 0.0
        %1998 = vmatmul.mubr.f32.gmra.mrb[0].mxu0 %v1775
        %v1999 = vpop.f32.mrb[0].mxu0
        %v2000 = vadd.f32 0.0, %v1999
        %v2001 = vpop.f32.mrb[0].mxu0
        %2002 = vmatprep.mubr.f32.mxu0 0.0
        %2003 = vmatmul.mubr.f32.gmra.mrb[0].mxu0 %v1778
        %v2004 = vpop.f32.mrb[0].mxu0
        %v2005 = vadd.f32 0.0, %v2004
        %v2006 = vpop.f32.mrb[0].mxu0
        %2007 = vdwg.mxu0
        %v2008 = vadd.f32 %v1650, %v1850
        %v2009 = vadd.f32 %v1651, %v1855
        %v2010 = vadd.f32 %v1652, %v1860
        %v2011 = vadd.f32 %v1653, %v1865
        %v2012 = vadd.f32 %v1654, %v1870
        %v2013 = vadd.f32 %v1655, %v1875
        %v2014 = vadd.f32 %v1656, %v1880
        %v2015 = vadd.f32 %v1657, %v1885
        %v2016 = vadd.f32 %v1658, %v1890
        %v2017 = vadd.f32 %v1659, %v1895
        %v2018 = vadd.f32 %v1660, %v1900
        %v2019 = vadd.f32 %v1661, %v1905
        %v2020 = vadd.f32 %v1662, %v1910
        %v2021 = vadd.f32 %v1663, %v1915
        %v2022 = vadd.f32 %v1664, %v1920
        %v2023 = vadd.f32 %v1665, %v1925
        %v2024 = vadd.f32 %v1666, %v1930
        %v2025 = vadd.f32 %v1667, %v1935
        %v2026 = vadd.f32 %v1668, %v1940
        %v2027 = vadd.f32 %v1669, %v1945
        %v2028 = vadd.f32 %v1670, %v1950
        %v2029 = vadd.f32 %v1671, %v1955
        %v2030 = vadd.f32 %v1672, %v1960
        %v2031 = vadd.f32 %v1673, %v1965
        %v2032 = vadd.f32 %v1674, %v1970
        %v2033 = vadd.f32 %v1675, %v1975
        %v2034 = vadd.f32 %v1676, %v1980
        %v2035 = vadd.f32 %v1677, %v1985
        %v2036 = vadd.f32 %v1678, %v1990
        %v2037 = vadd.f32 %v1679, %v1995
        %v2038 = vadd.f32 %v1680, %v2000
        %v2039 = vadd.f32 %v1681, %v2005
        %2040 = vst [vmem:[#allocation2] sm:$0xff] %v2008
        %2041 = vst [vmem:[#allocation2 + $0x8] sm:$0xff] %v2009
        %2042 = vst [vmem:[#allocation2 + $0x10] sm:$0xff] %v2010
        %2043 = vst [vmem:[#allocation2 + $0x18] sm:$0xff] %v2011
        %2044 = vst [vmem:[#allocation2 + $0x20] sm:$0xff] %v2012
        %2045 = vst [vmem:[#allocation2 + $0x28] sm:$0xff] %v2013
        %2046 = vst [vmem:[#allocation2 + $0x30] sm:$0xff] %v2014
        %2047 = vst [vmem:[#allocation2 + $0x38] sm:$0xff] %v2015
        %2048 = vst [vmem:[#allocation2 + $0x40] sm:$0xff] %v2016
        %2049 = vst [vmem:[#allocation2 + $0x48] sm:$0xff] %v2017
        %2050 = vst [vmem:[#allocation2 + $0x50] sm:$0xff] %v2018
        %2051 = vst [vmem:[#allocation2 + $0x58] sm:$0xff] %v2019
        %2052 = vst [vmem:[#allocation2 + $0x60] sm:$0xff] %v2020
        %2053 = vst [vmem:[#allocation2 + $0x68] sm:$0xff] %v2021
        %2054 = vst [vmem:[#allocation2 + $0x70] sm:$0xff] %v2022
        %2055 = vst [vmem:[#allocation2 + $0x78] sm:$0xff] %v2023
        %2056 = vst [vmem:[#allocation2 + $0x80] sm:$0xff] %v2024
        %2057 = vst [vmem:[#allocation2 + $0x88] sm:$0xff] %v2025
        %2058 = vst [vmem:[#allocation2 + $0x90] sm:$0xff] %v2026
        %2059 = vst [vmem:[#allocation2 + $0x98] sm:$0xff] %v2027
        %2060 = vst [vmem:[#allocation2 + $0xa0] sm:$0xff] %v2028
        %2061 = vst [vmem:[#allocation2 + $0xa8] sm:$0xff] %v2029
        %2062 = vst [vmem:[#allocation2 + $0xb0] sm:$0xff] %v2030
        %2063 = vst [vmem:[#allocation2 + $0xb8] sm:$0xff] %v2031
        %2064 = vst [vmem:[#allocation2 + $0xc0] sm:$0xff] %v2032
        %2065 = vst [vmem:[#allocation2 + $0xc8] sm:$0xff] %v2033
        %2066 = vst [vmem:[#allocation2 + $0xd0] sm:$0xff] %v2034
        %2067 = vst [vmem:[#allocation2 + $0xd8] sm:$0xff] %v2035
        %2068 = vst [vmem:[#allocation2 + $0xe0] sm:$0xff] %v2036
        %2069 = vst [vmem:[#allocation2 + $0xe8] sm:$0xff] %v2037
        %2070 = vst [vmem:[#allocation2 + $0xf0] sm:$0xff] %v2038
        %2071 = vst [vmem:[#allocation2 + $0xf8] sm:$0xff] %v2039
        %v2072 = vld [vmem:[%s1617 + $0x1] sm:$0xff]
        %v2073 = vld [vmem:[%s1617 + $0x9] sm:$0xff]
        %v2074 = vld [vmem:[%s1617 + $0x19] sm:$0xff]
        %v2075 = vld [vmem:[%s1617 + $0x21] sm:$0xff]
        %v2076 = vld [vmem:[%s1617 + $0x31] sm:$0xff]
        %v2077 = vld [vmem:[%s1617 + $0x39] sm:$0xff]
        %v2078 = vld [vmem:[%s1617 + $0x49] sm:$0xff]
        %v2079 = vld [vmem:[%s1617 + $0x51] sm:$0xff]
        %v2080 = vld [vmem:[%s1617 + $0x61] sm:$0xff]
        %v2081 = vld [vmem:[%s1617 + $0x69] sm:$0xff]
        %v2082 = vld [vmem:[%s1617 + $0x79] sm:$0xff]
        %v2083 = vld [vmem:[%s1617 + $0x81] sm:$0xff]
        %v2084 = vld [vmem:[%s1617 + $0x91] sm:$0xff]
        %v2085 = vld [vmem:[%s1617 + $0x99] sm:$0xff]
        %v2086 = vld [vmem:[%s1617 + $0xa9] sm:$0xff]
        %v2087 = vld [vmem:[%s1617 + $0xb1] sm:$0xff]
        %v2088 = vld [vmem:[%s1617 + $0xc1] sm:$0xff]
        %v2089 = vld [vmem:[%s1617 + $0xc9] sm:$0xff]
        %v2090 = vld [vmem:[%s1617 + $0xd9] sm:$0xff]
        %v2091 = vld [vmem:[%s1617 + $0xe1] sm:$0xff]
        %v2092 = vld [vmem:[%s1617 + $0xf1] sm:$0xff]
        %v2093 = vld [vmem:[%s1617 + $0xf9] sm:$0xff]
        %v2094 = vld [vmem:[%s1617 + $0x109] sm:$0xff]
        %v2095 = vld [vmem:[%s1617 + $0x111] sm:$0xff]
        %v2096 = vld [vmem:[%s1617 + $0x121] sm:$0xff]
        %v2097 = vld [vmem:[%s1617 + $0x129] sm:$0xff]
        %v2098 = vld [vmem:[%s1617 + $0x139] sm:$0xff]
        %v2099 = vld [vmem:[%s1617 + $0x141] sm:$0xff]
        %v2100 = vld [vmem:[%s1617 + $0x151] sm:$0xff]
        %v2101 = vld [vmem:[%s1617 + $0x159] sm:$0xff]
        %v2102 = vld [vmem:[%s1617 + $0x169] sm:$0xff]
        %v2103 = vld [vmem:[%s1617 + $0x171] sm:$0xff]
        %v2104 = vld [vmem:[#allocation2] sm:$0xff]
        %v2105 = vld [vmem:[#allocation2 + $0x8] sm:$0xff]
        %v2106 = vld [vmem:[#allocation2 + $0x10] sm:$0xff]
        %v2107 = vld [vmem:[#allocation2 + $0x18] sm:$0xff]
        %v2108 = vld [vmem:[#allocation2 + $0x20] sm:$0xff]
        %v2109 = vld [vmem:[#allocation2 + $0x28] sm:$0xff]
        %v2110 = vld [vmem:[#allocation2 + $0x30] sm:$0xff]
        %v2111 = vld [vmem:[#allocation2 + $0x38] sm:$0xff]
        %v2112 = vld [vmem:[#allocation2 + $0x40] sm:$0xff]
        %v2113 = vld [vmem:[#allocation2 + $0x48] sm:$0xff]
        %v2114 = vld [vmem:[#allocation2 + $0x50] sm:$0xff]
        %v2115 = vld [vmem:[#allocation2 + $0x58] sm:$0xff]
        %v2116 = vld [vmem:[#allocation2 + $0x60] sm:$0xff]
        %v2117 = vld [vmem:[#allocation2 + $0x68] sm:$0xff]
        %v2118 = vld [vmem:[#allocation2 + $0x70] sm:$0xff]
        %v2119 = vld [vmem:[#allocation2 + $0x78] sm:$0xff]
        %v2120 = vld [vmem:[#allocation2 + $0x80] sm:$0xff]
        %v2121 = vld [vmem:[#allocation2 + $0x88] sm:$0xff]
        %v2122 = vld [vmem:[#allocation2 + $0x90] sm:$0xff]
        %v2123 = vld [vmem:[#allocation2 + $0x98] sm:$0xff]
        %v2124 = vld [vmem:[#allocation2 + $0xa0] sm:$0xff]
        %v2125 = vld [vmem:[#allocation2 + $0xa8] sm:$0xff]
        %v2126 = vld [vmem:[#allocation2 + $0xb0] sm:$0xff]
        %v2127 = vld [vmem:[#allocation2 + $0xb8] sm:$0xff]
        %v2128 = vld [vmem:[#allocation2 + $0xc0] sm:$0xff]
        %v2129 = vld [vmem:[#allocation2 + $0xc8] sm:$0xff]
        %v2130 = vld [vmem:[#allocation2 + $0xd0] sm:$0xff]
        %v2131 = vld [vmem:[#allocation2 + $0xd8] sm:$0xff]
        %v2132 = vld [vmem:[#allocation2 + $0xe0] sm:$0xff]
        %v2133 = vld [vmem:[#allocation2 + $0xe8] sm:$0xff]
        %v2134 = vld [vmem:[#allocation2 + $0xf0] sm:$0xff]
        %v2135 = vld [vmem:[#allocation2 + $0xf8] sm:$0xff]
        %s2136 = scalar_lea.vmem %s1, 16
        %v2137 = vld [vmem:[%s2136] sm:$0xf]
        %v2139 = vsel %vm319, %v2072, 0
        %v2142 = vsel %vm319, %v2073, 0
        %v2145 = vsel %vm319, %v2074, 0
        %v2148 = vsel %vm319, %v2075, 0
        %v2151 = vsel %vm319, %v2076, 0
        %v2154 = vsel %vm319, %v2077, 0
        %v2157 = vsel %vm319, %v2078, 0
        %v2160 = vsel %vm319, %v2079, 0
        %v2163 = vsel %vm319, %v2080, 0
        %v2166 = vsel %vm319, %v2081, 0
        %v2169 = vsel %vm319, %v2082, 0
        %v2172 = vsel %vm319, %v2083, 0
        %v2175 = vsel %vm319, %v2084, 0
        %v2178 = vsel %vm319, %v2085, 0
        %v2181 = vsel %vm319, %v2086, 0
        %v2184 = vsel %vm319, %v2087, 0
        %v2187 = vsel %vm319, %v2088, 0
        %v2190 = vsel %vm319, %v2089, 0
        %v2193 = vsel %vm319, %v2090, 0
        %v2196 = vsel %vm319, %v2091, 0
        %v2199 = vsel %vm319, %v2092, 0
        %v2202 = vsel %vm319, %v2093, 0
        %v2205 = vsel %vm319, %v2094, 0
        %v2208 = vsel %vm319, %v2095, 0
        %v2211 = vsel %vm319, %v2096, 0
        %v2214 = vsel %vm319, %v2097, 0
        %v2217 = vsel %vm319, %v2098, 0
        %v2220 = vsel %vm319, %v2099, 0
        %v2223 = vsel %vm319, %v2100, 0
        %v2226 = vsel %vm319, %v2101, 0
        %v2229 = vsel %vm319, %v2102, 0
        %v2232 = vsel %vm319, %v2103, 0
        %v2235 = vsel %vm416, %v2137, 0
        %2237 = vmatprep.subr.mxu0 0.0
        %2238 = vmatpush1.msra.mxu0 %v2235
        %2239 = vmatprep.subr.mxu0 0.0
        %2240 = vmatpush1.msra.mxu0 0.0
        %2241 = vmatprep.subr.mxu0 0.0
        %2242 = vmatpush1.msra.mxu0 0.0
        %2243 = vmatprep.subr.mxu0 0.0
        %2244 = vmatpush1.msra.mxu0 0.0
        %2245 = vmatprep.subr.mxu0 0.0
        %2246 = vmatpush1.msra.mxu0 0.0
        %2247 = vmatprep.subr.mxu0 0.0
        %2248 = vmatpush1.msra.mxu0 0.0
        %2249 = vmatprep.subr.mxu0 0.0
        %2250 = vmatpush1.msra.mxu0 0.0
        %2251 = vmatprep.subr.mxu0 0.0
        %2252 = vmatpush1.msra.mxu0 0.0
        %2253 = vmatprep.subr.mxu0 0.0
        %2254 = vmatpush1.msra.mxu0 0.0
        %2255 = vmatprep.subr.mxu0 0.0
        %2256 = vmatpush1.msra.mxu0 0.0
        %2257 = vmatprep.subr.mxu0 0.0
        %2258 = vmatpush1.msra.mxu0 0.0
        %2259 = vmatprep.subr.mxu0 0.0
        %2260 = vmatpush1.msra.mxu0 0.0
        %2261 = vmatprep.subr.mxu0 0.0
        %2262 = vmatpush1.msra.mxu0 0.0
        %2263 = vmatprep.subr.mxu0 0.0
        %2264 = vmatpush1.msra.mxu0 0.0
        %2265 = vmatprep.subr.mxu0 0.0
        %2266 = vmatpush1.msra.mxu0 0.0
        %2267 = vmatprep.subr.mxu0 0.0
        %2268 = vmatpush1.msra.mxu0 0.0
        %2269 = vmatprep.subr.mxu0 0.0
        %2270 = vmatpush1.msra.mxu0 0.0
        %2271 = vmatprep.subr.mxu0 0.0
        %2272 = vmatpush1.msra.mxu0 0.0
        %2273 = vmatprep.subr.mxu0 0.0
        %2274 = vmatpush1.msra.mxu0 0.0
        %2275 = vmatprep.subr.mxu0 0.0
        %2276 = vmatpush1.msra.mxu0 0.0
        %2277 = vmatprep.subr.mxu0 0.0
        %2278 = vmatpush1.msra.mxu0 0.0
        %2279 = vmatprep.subr.mxu0 0.0
        %2280 = vmatpush1.msra.mxu0 0.0
        %2281 = vmatprep.subr.mxu0 0.0
        %2282 = vmatpush1.msra.mxu0 0.0
        %2283 = vmatprep.subr.mxu0 0.0
        %2284 = vmatpush1.msra.mxu0 0.0
        %2285 = vmatprep.subr.mxu0 0.0
        %2286 = vmatpush1.msra.mxu0 0.0
        %2287 = vmatprep.subr.mxu0 0.0
        %2288 = vmatpush1.msra.mxu0 0.0
        %2289 = vmatprep.subr.mxu0 0.0
        %2290 = vmatpush1.msra.mxu0 0.0
        %2291 = vmatprep.subr.mxu0 0.0
        %2292 = vmatpush1.msra.mxu0 0.0
        %2293 = vmatprep.subr.mxu0 0.0
        %2294 = vmatpush1.msra.mxu0 0.0
        %2295 = vmatprep.subr.mxu0 0.0
        %2296 = vmatpush1.msra.mxu0 0.0
        %2297 = vmatprep.subr.mxu0 0.0
        %2298 = vmatpush1.msra.mxu0 0.0
        %2299 = vmatprep.subr.mxu0 0.0
        %2300 = vmatpush1.msra.mxu0 0.0
        %2301 = vmatprep.mubr.f32.mxu0 0.0
        %2302 = vmatmul.mubr.f32.gmra.mrb[0].mxu0 %v2139
        %v2303 = vpop.f32.mrb[0].mxu0
        %v2304 = vadd.f32 0.0, %v2303
        %v2305 = vpop.f32.mrb[0].mxu0
        %2306 = vmatprep.mubr.f32.mxu0 0.0
        %2307 = vmatmul.mubr.f32.gmra.mrb[0].mxu0 %v2142
        %v2308 = vpop.f32.mrb[0].mxu0
        %v2309 = vadd.f32 0.0, %v2308
        %v2310 = vpop.f32.mrb[0].mxu0
        %2311 = vmatprep.mubr.f32.mxu0 0.0
        %2312 = vmatmul.mubr.f32.gmra.mrb[0].mxu0 %v2145
        %v2313 = vpop.f32.mrb[0].mxu0
        %v2314 = vadd.f32 0.0, %v2313
        %v2315 = vpop.f32.mrb[0].mxu0
        %2316 = vmatprep.mubr.f32.mxu0 0.0
        %2317 = vmatmul.mubr.f32.gmra.mrb[0].mxu0 %v2148
        %v2318 = vpop.f32.mrb[0].mxu0
        %v2319 = vadd.f32 0.0, %v2318
        %v2320 = vpop.f32.mrb[0].mxu0
        %2321 = vmatprep.mubr.f32.mxu0 0.0
        %2322 = vmatmul.mubr.f32.gmra.mrb[0].mxu0 %v2151
        %v2323 = vpop.f32.mrb[0].mxu0
        %v2324 = vadd.f32 0.0, %v2323
        %v2325 = vpop.f32.mrb[0].mxu0
        %2326 = vmatprep.mubr.f32.mxu0 0.0
        %2327 = vmatmul.mubr.f32.gmra.mrb[0].mxu0 %v2154
        %v2328 = vpop.f32.mrb[0].mxu0
        %v2329 = vadd.f32 0.0, %v2328
        %v2330 = vpop.f32.mrb[0].mxu0
        %2331 = vmatprep.mubr.f32.mxu0 0.0
        %2332 = vmatmul.mubr.f32.gmra.mrb[0].mxu0 %v2157
        %v2333 = vpop.f32.mrb[0].mxu0
        %v2334 = vadd.f32 0.0, %v2333
        %v2335 = vpop.f32.mrb[0].mxu0
        %2336 = vmatprep.mubr.f32.mxu0 0.0
        %2337 = vmatmul.mubr.f32.gmra.mrb[0].mxu0 %v2160
        %v2338 = vpop.f32.mrb[0].mxu0
        %v2339 = vadd.f32 0.0, %v2338
        %v2340 = vpop.f32.mrb[0].mxu0
        %2341 = vmatprep.mubr.f32.mxu0 0.0
        %2342 = vmatmul.mubr.f32.gmra.mrb[0].mxu0 %v2163
        %v2343 = vpop.f32.mrb[0].mxu0
        %v2344 = vadd.f32 0.0, %v2343
        %v2345 = vpop.f32.mrb[0].mxu0
        %2346 = vmatprep.mubr.f32.mxu0 0.0
        %2347 = vmatmul.mubr.f32.gmra.mrb[0].mxu0 %v2166
        %v2348 = vpop.f32.mrb[0].mxu0
        %v2349 = vadd.f32 0.0, %v2348
        %v2350 = vpop.f32.mrb[0].mxu0
        %2351 = vmatprep.mubr.f32.mxu0 0.0
        %2352 = vmatmul.mubr.f32.gmra.mrb[0].mxu0 %v2169
        %v2353 = vpop.f32.mrb[0].mxu0
        %v2354 = vadd.f32 0.0, %v2353
        %v2355 = vpop.f32.mrb[0].mxu0
        %2356 = vmatprep.mubr.f32.mxu0 0.0
        %2357 = vmatmul.mubr.f32.gmra.mrb[0].mxu0 %v2172
        %v2358 = vpop.f32.mrb[0].mxu0
        %v2359 = vadd.f32 0.0, %v2358
        %v2360 = vpop.f32.mrb[0].mxu0
        %2361 = vmatprep.mubr.f32.mxu0 0.0
        %2362 = vmatmul.mubr.f32.gmra.mrb[0].mxu0 %v2175
        %v2363 = vpop.f32.mrb[0].mxu0
        %v2364 = vadd.f32 0.0, %v2363
        %v2365 = vpop.f32.mrb[0].mxu0
        %2366 = vmatprep.mubr.f32.mxu0 0.0
        %2367 = vmatmul.mubr.f32.gmra.mrb[0].mxu0 %v2178
        %v2368 = vpop.f32.mrb[0].mxu0
        %v2369 = vadd.f32 0.0, %v2368
        %v2370 = vpop.f32.mrb[0].mxu0
        %2371 = vmatprep.mubr.f32.mxu0 0.0
        %2372 = vmatmul.mubr.f32.gmra.mrb[0].mxu0 %v2181
        %v2373 = vpop.f32.mrb[0].mxu0
        %v2374 = vadd.f32 0.0, %v2373
        %v2375 = vpop.f32.mrb[0].mxu0
        %2376 = vmatprep.mubr.f32.mxu0 0.0
        %2377 = vmatmul.mubr.f32.gmra.mrb[0].mxu0 %v2184
        %v2378 = vpop.f32.mrb[0].mxu0
        %v2379 = vadd.f32 0.0, %v2378
        %v2380 = vpop.f32.mrb[0].mxu0
        %2381 = vmatprep.mubr.f32.mxu0 0.0
        %2382 = vmatmul.mubr.f32.gmra.mrb[0].mxu0 %v2187
        %v2383 = vpop.f32.mrb[0].mxu0
        %v2384 = vadd.f32 0.0, %v2383
        %v2385 = vpop.f32.mrb[0].mxu0
        %2386 = vmatprep.mubr.f32.mxu0 0.0
        %2387 = vmatmul.mubr.f32.gmra.mrb[0].mxu0 %v2190
        %v2388 = vpop.f32.mrb[0].mxu0
        %v2389 = vadd.f32 0.0, %v2388
        %v2390 = vpop.f32.mrb[0].mxu0
        %2391 = vmatprep.mubr.f32.mxu0 0.0
        %2392 = vmatmul.mubr.f32.gmra.mrb[0].mxu0 %v2193
        %v2393 = vpop.f32.mrb[0].mxu0
        %v2394 = vadd.f32 0.0, %v2393
        %v2395 = vpop.f32.mrb[0].mxu0
        %2396 = vmatprep.mubr.f32.mxu0 0.0
        %2397 = vmatmul.mubr.f32.gmra.mrb[0].mxu0 %v2196
        %v2398 = vpop.f32.mrb[0].mxu0
        %v2399 = vadd.f32 0.0, %v2398
        %v2400 = vpop.f32.mrb[0].mxu0
        %2401 = vmatprep.mubr.f32.mxu0 0.0
        %2402 = vmatmul.mubr.f32.gmra.mrb[0].mxu0 %v2199
        %v2403 = vpop.f32.mrb[0].mxu0
        %v2404 = vadd.f32 0.0, %v2403
        %v2405 = vpop.f32.mrb[0].mxu0
        %2406 = vmatprep.mubr.f32.mxu0 0.0
        %2407 = vmatmul.mubr.f32.gmra.mrb[0].mxu0 %v2202
        %v2408 = vpop.f32.mrb[0].mxu0
        %v2409 = vadd.f32 0.0, %v2408
        %v2410 = vpop.f32.mrb[0].mxu0
        %2411 = vmatprep.mubr.f32.mxu0 0.0
        %2412 = vmatmul.mubr.f32.gmra.mrb[0].mxu0 %v2205
        %v2413 = vpop.f32.mrb[0].mxu0
        %v2414 = vadd.f32 0.0, %v2413
        %v2415 = vpop.f32.mrb[0].mxu0
        %2416 = vmatprep.mubr.f32.mxu0 0.0
        %2417 = vmatmul.mubr.f32.gmra.mrb[0].mxu0 %v2208
        %v2418 = vpop.f32.mrb[0].mxu0
        %v2419 = vadd.f32 0.0, %v2418
        %v2420 = vpop.f32.mrb[0].mxu0
        %2421 = vmatprep.mubr.f32.mxu0 0.0
        %2422 = vmatmul.mubr.f32.gmra.mrb[0].mxu0 %v2211
        %v2423 = vpop.f32.mrb[0].mxu0
        %v2424 = vadd.f32 0.0, %v2423
        %v2425 = vpop.f32.mrb[0].mxu0
        %2426 = vmatprep.mubr.f32.mxu0 0.0
        %2427 = vmatmul.mubr.f32.gmra.mrb[0].mxu0 %v2214
        %v2428 = vpop.f32.mrb[0].mxu0
        %v2429 = vadd.f32 0.0, %v2428
        %v2430 = vpop.f32.mrb[0].mxu0
        %2431 = vmatprep.mubr.f32.mxu0 0.0
        %2432 = vmatmul.mubr.f32.gmra.mrb[0].mxu0 %v2217
        %v2433 = vpop.f32.mrb[0].mxu0
        %v2434 = vadd.f32 0.0, %v2433
        %v2435 = vpop.f32.mrb[0].mxu0
        %2436 = vmatprep.mubr.f32.mxu0 0.0
        %2437 = vmatmul.mubr.f32.gmra.mrb[0].mxu0 %v2220
        %v2438 = vpop.f32.mrb[0].mxu0
        %v2439 = vadd.f32 0.0, %v2438
        %v2440 = vpop.f32.mrb[0].mxu0
        %2441 = vmatprep.mubr.f32.mxu0 0.0
        %2442 = vmatmul.mubr.f32.gmra.mrb[0].mxu0 %v2223
        %v2443 = vpop.f32.mrb[0].mxu0
        %v2444 = vadd.f32 0.0, %v2443
        %v2445 = vpop.f32.mrb[0].mxu0
        %2446 = vmatprep.mubr.f32.mxu0 0.0
        %2447 = vmatmul.mubr.f32.gmra.mrb[0].mxu0 %v2226
        %v2448 = vpop.f32.mrb[0].mxu0
        %v2449 = vadd.f32 0.0, %v2448
        %v2450 = vpop.f32.mrb[0].mxu0
        %2451 = vmatprep.mubr.f32.mxu0 0.0
        %2452 = vmatmul.mubr.f32.gmra.mrb[0].mxu0 %v2229
        %v2453 = vpop.f32.mrb[0].mxu0
        %v2454 = vadd.f32 0.0, %v2453
        %v2455 = vpop.f32.mrb[0].mxu0
        %2456 = vmatprep.mubr.f32.mxu0 0.0
        %2457 = vmatmul.mubr.f32.gmra.mrb[0].mxu0 %v2232
        %v2458 = vpop.f32.mrb[0].mxu0
        %v2459 = vadd.f32 0.0, %v2458
        %v2460 = vpop.f32.mrb[0].mxu0
        %2461 = vdwg.mxu0
        %v2462 = vadd.f32 %v2104, %v2304
        %v2463 = vadd.f32 %v2105, %v2309
        %v2464 = vadd.f32 %v2106, %v2314
        %v2465 = vadd.f32 %v2107, %v2319
        %v2466 = vadd.f32 %v2108, %v2324
        %v2467 = vadd.f32 %v2109, %v2329
        %v2468 = vadd.f32 %v2110, %v2334
        %v2469 = vadd.f32 %v2111, %v2339
        %v2470 = vadd.f32 %v2112, %v2344
        %v2471 = vadd.f32 %v2113, %v2349
        %v2472 = vadd.f32 %v2114, %v2354
        %v2473 = vadd.f32 %v2115, %v2359
        %v2474 = vadd.f32 %v2116, %v2364
        %v2475 = vadd.f32 %v2117, %v2369
        %v2476 = vadd.f32 %v2118, %v2374
        %v2477 = vadd.f32 %v2119, %v2379
        %v2478 = vadd.f32 %v2120, %v2384
        %v2479 = vadd.f32 %v2121, %v2389
        %v2480 = vadd.f32 %v2122, %v2394
        %v2481 = vadd.f32 %v2123, %v2399
        %v2482 = vadd.f32 %v2124, %v2404
        %v2483 = vadd.f32 %v2125, %v2409
        %v2484 = vadd.f32 %v2126, %v2414
        %v2485 = vadd.f32 %v2127, %v2419
        %v2486 = vadd.f32 %v2128, %v2424
        %v2487 = vadd.f32 %v2129, %v2429
        %v2488 = vadd.f32 %v2130, %v2434
        %v2489 = vadd.f32 %v2131, %v2439
        %v2490 = vadd.f32 %v2132, %v2444
        %v2491 = vadd.f32 %v2133, %v2449
        %v2492 = vadd.f32 %v2134, %v2454
        %v2493 = vadd.f32 %v2135, %v2459
        %2494 = vst [vmem:[#allocation2] sm:$0xff] %v2462
        %2495 = vst [vmem:[#allocation2 + $0x8] sm:$0xff] %v2463
        %2496 = vst [vmem:[#allocation2 + $0x10] sm:$0xff] %v2464
        %2497 = vst [vmem:[#allocation2 + $0x18] sm:$0xff] %v2465
        %2498 = vst [vmem:[#allocation2 + $0x20] sm:$0xff] %v2466
        %2499 = vst [vmem:[#allocation2 + $0x28] sm:$0xff] %v2467
        %2500 = vst [vmem:[#allocation2 + $0x30] sm:$0xff] %v2468
        %2501 = vst [vmem:[#allocation2 + $0x38] sm:$0xff] %v2469
        %2502 = vst [vmem:[#allocation2 + $0x40] sm:$0xff] %v2470
        %2503 = vst [vmem:[#allocation2 + $0x48] sm:$0xff] %v2471
        %2504 = vst [vmem:[#allocation2 + $0x50] sm:$0xff] %v2472
        %2505 = vst [vmem:[#allocation2 + $0x58] sm:$0xff] %v2473
        %2506 = vst [vmem:[#allocation2 + $0x60] sm:$0xff] %v2474
        %2507 = vst [vmem:[#allocation2 + $0x68] sm:$0xff] %v2475
        %2508 = vst [vmem:[#allocation2 + $0x70] sm:$0xff] %v2476
        %2509 = vst [vmem:[#allocation2 + $0x78] sm:$0xff] %v2477
        %2510 = vst [vmem:[#allocation2 + $0x80] sm:$0xff] %v2478
        %2511 = vst [vmem:[#allocation2 + $0x88] sm:$0xff] %v2479
        %2512 = vst [vmem:[#allocation2 + $0x90] sm:$0xff] %v2480
        %2513 = vst [vmem:[#allocation2 + $0x98] sm:$0xff] %v2481
        %2514 = vst [vmem:[#allocation2 + $0xa0] sm:$0xff] %v2482
        %2515 = vst [vmem:[#allocation2 + $0xa8] sm:$0xff] %v2483
        %2516 = vst [vmem:[#allocation2 + $0xb0] sm:$0xff] %v2484
        %2517 = vst [vmem:[#allocation2 + $0xb8] sm:$0xff] %v2485
        %2518 = vst [vmem:[#allocation2 + $0xc0] sm:$0xff] %v2486
        %2519 = vst [vmem:[#allocation2 + $0xc8] sm:$0xff] %v2487
        %2520 = vst [vmem:[#allocation2 + $0xd0] sm:$0xff] %v2488
        %2521 = vst [vmem:[#allocation2 + $0xd8] sm:$0xff] %v2489
        %2522 = vst [vmem:[#allocation2 + $0xe0] sm:$0xff] %v2490
        %2523 = vst [vmem:[#allocation2 + $0xe8] sm:$0xff] %v2491
        %2524 = vst [vmem:[#allocation2 + $0xf0] sm:$0xff] %v2492
        %2525 = vst [vmem:[#allocation2 + $0xf8] sm:$0xff] %v2493
        %v2526 = vld [vmem:[%s1617 + $0x2] sm:$0xff]
        %v2527 = vld [vmem:[%s1617 + $0xa] sm:$0xff]
        %v2528 = vld [vmem:[%s1617 + $0x1a] sm:$0xff]
        %v2529 = vld [vmem:[%s1617 + $0x22] sm:$0xff]
        %v2530 = vld [vmem:[%s1617 + $0x32] sm:$0xff]
        %v2531 = vld [vmem:[%s1617 + $0x3a] sm:$0xff]
        %v2532 = vld [vmem:[%s1617 + $0x4a] sm:$0xff]
        %v2533 = vld [vmem:[%s1617 + $0x52] sm:$0xff]
        %v2534 = vld [vmem:[%s1617 + $0x62] sm:$0xff]
        %v2535 = vld [vmem:[%s1617 + $0x6a] sm:$0xff]
        %v2536 = vld [vmem:[%s1617 + $0x7a] sm:$0xff]
        %v2537 = vld [vmem:[%s1617 + $0x82] sm:$0xff]
        %v2538 = vld [vmem:[%s1617 + $0x92] sm:$0xff]
        %v2539 = vld [vmem:[%s1617 + $0x9a] sm:$0xff]
        %v2540 = vld [vmem:[%s1617 + $0xaa] sm:$0xff]
        %v2541 = vld [vmem:[%s1617 + $0xb2] sm:$0xff]
        %v2542 = vld [vmem:[%s1617 + $0xc2] sm:$0xff]
        %v2543 = vld [vmem:[%s1617 + $0xca] sm:$0xff]
        %v2544 = vld [vmem:[%s1617 + $0xda] sm:$0xff]
        %v2545 = vld [vmem:[%s1617 + $0xe2] sm:$0xff]
        %v2546 = vld [vmem:[%s1617 + $0xf2] sm:$0xff]
        %v2547 = vld [vmem:[%s1617 + $0xfa] sm:$0xff]
        %v2548 = vld [vmem:[%s1617 + $0x10a] sm:$0xff]
        %v2549 = vld [vmem:[%s1617 + $0x112] sm:$0xff]
        %v2550 = vld [vmem:[%s1617 + $0x122] sm:$0xff]
        %v2551 = vld [vmem:[%s1617 + $0x12a] sm:$0xff]
        %v2552 = vld [vmem:[%s1617 + $0x13a] sm:$0xff]
        %v2553 = vld [vmem:[%s1617 + $0x142] sm:$0xff]
        %v2554 = vld [vmem:[%s1617 + $0x152] sm:$0xff]
        %v2555 = vld [vmem:[%s1617 + $0x15a] sm:$0xff]
        %v2556 = vld [vmem:[%s1617 + $0x16a] sm:$0xff]
        %v2557 = vld [vmem:[%s1617 + $0x172] sm:$0xff]
        %v2558 = vld [vmem:[#allocation2] sm:$0xff]
        %v2559 = vld [vmem:[#allocation2 + $0x8] sm:$0xff]
        %v2560 = vld [vmem:[#allocation2 + $0x10] sm:$0xff]
        %v2561 = vld [vmem:[#allocation2 + $0x18] sm:$0xff]
        %v2562 = vld [vmem:[#allocation2 + $0x20] sm:$0xff]
        %v2563 = vld [vmem:[#allocation2 + $0x28] sm:$0xff]
        %v2564 = vld [vmem:[#allocation2 + $0x30] sm:$0xff]
        %v2565 = vld [vmem:[#allocation2 + $0x38] sm:$0xff]
        %v2566 = vld [vmem:[#allocation2 + $0x40] sm:$0xff]
        %v2567 = vld [vmem:[#allocation2 + $0x48] sm:$0xff]
        %v2568 = vld [vmem:[#allocation2 + $0x50] sm:$0xff]
        %v2569 = vld [vmem:[#allocation2 + $0x58] sm:$0xff]
        %v2570 = vld [vmem:[#allocation2 + $0x60] sm:$0xff]
        %v2571 = vld [vmem:[#allocation2 + $0x68] sm:$0xff]
        %v2572 = vld [vmem:[#allocation2 + $0x70] sm:$0xff]
        %v2573 = vld [vmem:[#allocation2 + $0x78] sm:$0xff]
        %v2574 = vld [vmem:[#allocation2 + $0x80] sm:$0xff]
        %v2575 = vld [vmem:[#allocation2 + $0x88] sm:$0xff]
        %v2576 = vld [vmem:[#allocation2 + $0x90] sm:$0xff]
        %v2577 = vld [vmem:[#allocation2 + $0x98] sm:$0xff]
        %v2578 = vld [vmem:[#allocation2 + $0xa0] sm:$0xff]
        %v2579 = vld [vmem:[#allocation2 + $0xa8] sm:$0xff]
        %v2580 = vld [vmem:[#allocation2 + $0xb0] sm:$0xff]
        %v2581 = vld [vmem:[#allocation2 + $0xb8] sm:$0xff]
        %v2582 = vld [vmem:[#allocation2 + $0xc0] sm:$0xff]
        %v2583 = vld [vmem:[#allocation2 + $0xc8] sm:$0xff]
        %v2584 = vld [vmem:[#allocation2 + $0xd0] sm:$0xff]
        %v2585 = vld [vmem:[#allocation2 + $0xd8] sm:$0xff]
        %v2586 = vld [vmem:[#allocation2 + $0xe0] sm:$0xff]
        %v2587 = vld [vmem:[#allocation2 + $0xe8] sm:$0xff]
        %v2588 = vld [vmem:[#allocation2 + $0xf0] sm:$0xff]
        %v2589 = vld [vmem:[#allocation2 + $0xf8] sm:$0xff]
        %s2590 = scalar_lea.vmem %s1, 20
        %v2591 = vld [vmem:[%s2590] sm:$0xf]
        %v2593 = vsel %vm319, %v2526, 0
        %v2596 = vsel %vm319, %v2527, 0
        %v2599 = vsel %vm319, %v2528, 0
        %v2602 = vsel %vm319, %v2529, 0
        %v2605 = vsel %vm319, %v2530, 0
        %v2608 = vsel %vm319, %v2531, 0
        %v2611 = vsel %vm319, %v2532, 0
        %v2614 = vsel %vm319, %v2533, 0
        %v2617 = vsel %vm319, %v2534, 0
        %v2620 = vsel %vm319, %v2535, 0
        %v2623 = vsel %vm319, %v2536, 0
        %v2626 = vsel %vm319, %v2537, 0
        %v2629 = vsel %vm319, %v2538, 0
        %v2632 = vsel %vm319, %v2539, 0
        %v2635 = vsel %vm319, %v2540, 0
        %v2638 = vsel %vm319, %v2541, 0
        %v2641 = vsel %vm319, %v2542, 0
        %v2644 = vsel %vm319, %v2543, 0
        %v2647 = vsel %vm319, %v2544, 0
        %v2650 = vsel %vm319, %v2545, 0
        %v2653 = vsel %vm319, %v2546, 0
        %v2656 = vsel %vm319, %v2547, 0
        %v2659 = vsel %vm319, %v2548, 0
        %v2662 = vsel %vm319, %v2549, 0
        %v2665 = vsel %vm319, %v2550, 0
        %v2668 = vsel %vm319, %v2551, 0
        %v2671 = vsel %vm319, %v2552, 0
        %v2674 = vsel %vm319, %v2553, 0
        %v2677 = vsel %vm319, %v2554, 0
        %v2680 = vsel %vm319, %v2555, 0
        %v2683 = vsel %vm319, %v2556, 0
        %v2686 = vsel %vm319, %v2557, 0
        %v2689 = vsel %vm416, %v2591, 0
        %2691 = vmatprep.subr.mxu0 0.0
        %2692 = vmatpush1.msra.mxu0 %v2689
        %2693 = vmatprep.subr.mxu0 0.0
        %2694 = vmatpush1.msra.mxu0 0.0
        %2695 = vmatprep.subr.mxu0 0.0
        %2696 = vmatpush1.msra.mxu0 0.0
        %2697 = vmatprep.subr.mxu0 0.0
        %2698 = vmatpush1.msra.mxu0 0.0
        %2699 = vmatprep.subr.mxu0 0.0
        %2700 = vmatpush1.msra.mxu0 0.0
        %2701 = vmatprep.subr.mxu0 0.0
        %2702 = vmatpush1.msra.mxu0 0.0
        %2703 = vmatprep.subr.mxu0 0.0
        %2704 = vmatpush1.msra.mxu0 0.0
        %2705 = vmatprep.subr.mxu0 0.0
        %2706 = vmatpush1.msra.mxu0 0.0
        %2707 = vmatprep.subr.mxu0 0.0
        %2708 = vmatpush1.msra.mxu0 0.0
        %2709 = vmatprep.subr.mxu0 0.0
        %2710 = vmatpush1.msra.mxu0 0.0
        %2711 = vmatprep.subr.mxu0 0.0
        %2712 = vmatpush1.msra.mxu0 0.0
        %2713 = vmatprep.subr.mxu0 0.0
        %2714 = vmatpush1.msra.mxu0 0.0
        %2715 = vmatprep.subr.mxu0 0.0
        %2716 = vmatpush1.msra.mxu0 0.0
        %2717 = vmatprep.subr.mxu0 0.0
        %2718 = vmatpush1.msra.mxu0 0.0
        %2719 = vmatprep.subr.mxu0 0.0
        %2720 = vmatpush1.msra.mxu0 0.0
        %2721 = vmatprep.subr.mxu0 0.0
        %2722 = vmatpush1.msra.mxu0 0.0
        %2723 = vmatprep.subr.mxu0 0.0
        %2724 = vmatpush1.msra.mxu0 0.0
        %2725 = vmatprep.subr.mxu0 0.0
        %2726 = vmatpush1.msra.mxu0 0.0
        %2727 = vmatprep.subr.mxu0 0.0
        %2728 = vmatpush1.msra.mxu0 0.0
        %2729 = vmatprep.subr.mxu0 0.0
        %2730 = vmatpush1.msra.mxu0 0.0
        %2731 = vmatprep.subr.mxu0 0.0
        %2732 = vmatpush1.msra.mxu0 0.0
        %2733 = vmatprep.subr.mxu0 0.0
        %2734 = vmatpush1.msra.mxu0 0.0
        %2735 = vmatprep.subr.mxu0 0.0
        %2736 = vmatpush1.msra.mxu0 0.0
        %2737 = vmatprep.subr.mxu0 0.0
        %2738 = vmatpush1.msra.mxu0 0.0
        %2739 = vmatprep.subr.mxu0 0.0
        %2740 = vmatpush1.msra.mxu0 0.0
        %2741 = vmatprep.subr.mxu0 0.0
        %2742 = vmatpush1.msra.mxu0 0.0
        %2743 = vmatprep.subr.mxu0 0.0
        %2744 = vmatpush1.msra.mxu0 0.0
        %2745 = vmatprep.subr.mxu0 0.0
        %2746 = vmatpush1.msra.mxu0 0.0
        %2747 = vmatprep.subr.mxu0 0.0
        %2748 = vmatpush1.msra.mxu0 0.0
        %2749 = vmatprep.subr.mxu0 0.0
        %2750 = vmatpush1.msra.mxu0 0.0
        %2751 = vmatprep.subr.mxu0 0.0
        %2752 = vmatpush1.msra.mxu0 0.0
        %2753 = vmatprep.subr.mxu0 0.0
        %2754 = vmatpush1.msra.mxu0 0.0
        %2755 = vmatprep.mubr.f32.mxu0 0.0
        %2756 = vmatmul.mubr.f32.gmra.mrb[0].mxu0 %v2593
        %v2757 = vpop.f32.mrb[0].mxu0
        %v2758 = vadd.f32 0.0, %v2757
        %v2759 = vpop.f32.mrb[0].mxu0
        %2760 = vmatprep.mubr.f32.mxu0 0.0
        %2761 = vmatmul.mubr.f32.gmra.mrb[0].mxu0 %v2596
        %v2762 = vpop.f32.mrb[0].mxu0
        %v2763 = vadd.f32 0.0, %v2762
        %v2764 = vpop.f32.mrb[0].mxu0
        %2765 = vmatprep.mubr.f32.mxu0 0.0
        %2766 = vmatmul.mubr.f32.gmra.mrb[0].mxu0 %v2599
        %v2767 = vpop.f32.mrb[0].mxu0
        %v2768 = vadd.f32 0.0, %v2767
        %v2769 = vpop.f32.mrb[0].mxu0
        %2770 = vmatprep.mubr.f32.mxu0 0.0
        %2771 = vmatmul.mubr.f32.gmra.mrb[0].mxu0 %v2602
        %v2772 = vpop.f32.mrb[0].mxu0
        %v2773 = vadd.f32 0.0, %v2772
        %v2774 = vpop.f32.mrb[0].mxu0
        %2775 = vmatprep.mubr.f32.mxu0 0.0
        %2776 = vmatmul.mubr.f32.gmra.mrb[0].mxu0 %v2605
        %v2777 = vpop.f32.mrb[0].mxu0
        %v2778 = vadd.f32 0.0, %v2777
        %v2779 = vpop.f32.mrb[0].mxu0
        %2780 = vmatprep.mubr.f32.mxu0 0.0
        %2781 = vmatmul.mubr.f32.gmra.mrb[0].mxu0 %v2608
        %v2782 = vpop.f32.mrb[0].mxu0
        %v2783 = vadd.f32 0.0, %v2782
        %v2784 = vpop.f32.mrb[0].mxu0
        %2785 = vmatprep.mubr.f32.mxu0 0.0
        %2786 = vmatmul.mubr.f32.gmra.mrb[0].mxu0 %v2611
        %v2787 = vpop.f32.mrb[0].mxu0
        %v2788 = vadd.f32 0.0, %v2787
        %v2789 = vpop.f32.mrb[0].mxu0
        %2790 = vmatprep.mubr.f32.mxu0 0.0
        %2791 = vmatmul.mubr.f32.gmra.mrb[0].mxu0 %v2614
        %v2792 = vpop.f32.mrb[0].mxu0
        %v2793 = vadd.f32 0.0, %v2792
        %v2794 = vpop.f32.mrb[0].mxu0
        %2795 = vmatprep.mubr.f32.mxu0 0.0
        %2796 = vmatmul.mubr.f32.gmra.mrb[0].mxu0 %v2617
        %v2797 = vpop.f32.mrb[0].mxu0
        %v2798 = vadd.f32 0.0, %v2797
        %v2799 = vpop.f32.mrb[0].mxu0
        %2800 = vmatprep.mubr.f32.mxu0 0.0
        %2801 = vmatmul.mubr.f32.gmra.mrb[0].mxu0 %v2620
        %v2802 = vpop.f32.mrb[0].mxu0
        %v2803 = vadd.f32 0.0, %v2802
        %v2804 = vpop.f32.mrb[0].mxu0
        %2805 = vmatprep.mubr.f32.mxu0 0.0
        %2806 = vmatmul.mubr.f32.gmra.mrb[0].mxu0 %v2623
        %v2807 = vpop.f32.mrb[0].mxu0
        %v2808 = vadd.f32 0.0, %v2807
        %v2809 = vpop.f32.mrb[0].mxu0
        %2810 = vmatprep.mubr.f32.mxu0 0.0
        %2811 = vmatmul.mubr.f32.gmra.mrb[0].mxu0 %v2626
        %v2812 = vpop.f32.mrb[0].mxu0
        %v2813 = vadd.f32 0.0, %v2812
        %v2814 = vpop.f32.mrb[0].mxu0
        %2815 = vmatprep.mubr.f32.mxu0 0.0
        %2816 = vmatmul.mubr.f32.gmra.mrb[0].mxu0 %v2629
        %v2817 = vpop.f32.mrb[0].mxu0
        %v2818 = vadd.f32 0.0, %v2817
        %v2819 = vpop.f32.mrb[0].mxu0
        %2820 = vmatprep.mubr.f32.mxu0 0.0
        %2821 = vmatmul.mubr.f32.gmra.mrb[0].mxu0 %v2632
        %v2822 = vpop.f32.mrb[0].mxu0
        %v2823 = vadd.f32 0.0, %v2822
        %v2824 = vpop.f32.mrb[0].mxu0
        %2825 = vmatprep.mubr.f32.mxu0 0.0
        %2826 = vmatmul.mubr.f32.gmra.mrb[0].mxu0 %v2635
        %v2827 = vpop.f32.mrb[0].mxu0
        %v2828 = vadd.f32 0.0, %v2827
        %v2829 = vpop.f32.mrb[0].mxu0
        %2830 = vmatprep.mubr.f32.mxu0 0.0
        %2831 = vmatmul.mubr.f32.gmra.mrb[0].mxu0 %v2638
        %v2832 = vpop.f32.mrb[0].mxu0
        %v2833 = vadd.f32 0.0, %v2832
        %v2834 = vpop.f32.mrb[0].mxu0
        %2835 = vmatprep.mubr.f32.mxu0 0.0
        %2836 = vmatmul.mubr.f32.gmra.mrb[0].mxu0 %v2641
        %v2837 = vpop.f32.mrb[0].mxu0
        %v2838 = vadd.f32 0.0, %v2837
        %v2839 = vpop.f32.mrb[0].mxu0
        %2840 = vmatprep.mubr.f32.mxu0 0.0
        %2841 = vmatmul.mubr.f32.gmra.mrb[0].mxu0 %v2644
        %v2842 = vpop.f32.mrb[0].mxu0
        %v2843 = vadd.f32 0.0, %v2842
        %v2844 = vpop.f32.mrb[0].mxu0
        %2845 = vmatprep.mubr.f32.mxu0 0.0
        %2846 = vmatmul.mubr.f32.gmra.mrb[0].mxu0 %v2647
        %v2847 = vpop.f32.mrb[0].mxu0
        %v2848 = vadd.f32 0.0, %v2847
        %v2849 = vpop.f32.mrb[0].mxu0
        %2850 = vmatprep.mubr.f32.mxu0 0.0
        %2851 = vmatmul.mubr.f32.gmra.mrb[0].mxu0 %v2650
        %v2852 = vpop.f32.mrb[0].mxu0
        %v2853 = vadd.f32 0.0, %v2852
        %v2854 = vpop.f32.mrb[0].mxu0
        %2855 = vmatprep.mubr.f32.mxu0 0.0
        %2856 = vmatmul.mubr.f32.gmra.mrb[0].mxu0 %v2653
        %v2857 = vpop.f32.mrb[0].mxu0
        %v2858 = vadd.f32 0.0, %v2857
        %v2859 = vpop.f32.mrb[0].mxu0
        %2860 = vmatprep.mubr.f32.mxu0 0.0
        %2861 = vmatmul.mubr.f32.gmra.mrb[0].mxu0 %v2656
        %v2862 = vpop.f32.mrb[0].mxu0
        %v2863 = vadd.f32 0.0, %v2862
        %v2864 = vpop.f32.mrb[0].mxu0
        %2865 = vmatprep.mubr.f32.mxu0 0.0
        %2866 = vmatmul.mubr.f32.gmra.mrb[0].mxu0 %v2659
        %v2867 = vpop.f32.mrb[0].mxu0
        %v2868 = vadd.f32 0.0, %v2867
        %v2869 = vpop.f32.mrb[0].mxu0
        %2870 = vmatprep.mubr.f32.mxu0 0.0
        %2871 = vmatmul.mubr.f32.gmra.mrb[0].mxu0 %v2662
        %v2872 = vpop.f32.mrb[0].mxu0
        %v2873 = vadd.f32 0.0, %v2872
        %v2874 = vpop.f32.mrb[0].mxu0
        %2875 = vmatprep.mubr.f32.mxu0 0.0
        %2876 = vmatmul.mubr.f32.gmra.mrb[0].mxu0 %v2665
        %v2877 = vpop.f32.mrb[0].mxu0
        %v2878 = vadd.f32 0.0, %v2877
        %v2879 = vpop.f32.mrb[0].mxu0
        %2880 = vmatprep.mubr.f32.mxu0 0.0
        %2881 = vmatmul.mubr.f32.gmra.mrb[0].mxu0 %v2668
        %v2882 = vpop.f32.mrb[0].mxu0
        %v2883 = vadd.f32 0.0, %v2882
        %v2884 = vpop.f32.mrb[0].mxu0
        %2885 = vmatprep.mubr.f32.mxu0 0.0
        %2886 = vmatmul.mubr.f32.gmra.mrb[0].mxu0 %v2671
        %v2887 = vpop.f32.mrb[0].mxu0
        %v2888 = vadd.f32 0.0, %v2887
        %v2889 = vpop.f32.mrb[0].mxu0
        %2890 = vmatprep.mubr.f32.mxu0 0.0
        %2891 = vmatmul.mubr.f32.gmra.mrb[0].mxu0 %v2674
        %v2892 = vpop.f32.mrb[0].mxu0
        %v2893 = vadd.f32 0.0, %v2892
        %v2894 = vpop.f32.mrb[0].mxu0
        %2895 = vmatprep.mubr.f32.mxu0 0.0
        %2896 = vmatmul.mubr.f32.gmra.mrb[0].mxu0 %v2677
        %v2897 = vpop.f32.mrb[0].mxu0
        %v2898 = vadd.f32 0.0, %v2897
        %v2899 = vpop.f32.mrb[0].mxu0
        %2900 = vmatprep.mubr.f32.mxu0 0.0
        %2901 = vmatmul.mubr.f32.gmra.mrb[0].mxu0 %v2680
        %v2902 = vpop.f32.mrb[0].mxu0
        %v2903 = vadd.f32 0.0, %v2902
        %v2904 = vpop.f32.mrb[0].mxu0
        %2905 = vmatprep.mubr.f32.mxu0 0.0
        %2906 = vmatmul.mubr.f32.gmra.mrb[0].mxu0 %v2683
        %v2907 = vpop.f32.mrb[0].mxu0
        %v2908 = vadd.f32 0.0, %v2907
        %v2909 = vpop.f32.mrb[0].mxu0
        %2910 = vmatprep.mubr.f32.mxu0 0.0
        %2911 = vmatmul.mubr.f32.gmra.mrb[0].mxu0 %v2686
        %v2912 = vpop.f32.mrb[0].mxu0
        %v2913 = vadd.f32 0.0, %v2912
        %v2914 = vpop.f32.mrb[0].mxu0
        %2915 = vdwg.mxu0
        %v2916 = vadd.f32 %v2558, %v2758
        %v2917 = vadd.f32 %v2559, %v2763
        %v2918 = vadd.f32 %v2560, %v2768
        %v2919 = vadd.f32 %v2561, %v2773
        %v2920 = vadd.f32 %v2562, %v2778
        %v2921 = vadd.f32 %v2563, %v2783
        %v2922 = vadd.f32 %v2564, %v2788
        %v2923 = vadd.f32 %v2565, %v2793
        %v2924 = vadd.f32 %v2566, %v2798
        %v2925 = vadd.f32 %v2567, %v2803
        %v2926 = vadd.f32 %v2568, %v2808
        %v2927 = vadd.f32 %v2569, %v2813
        %v2928 = vadd.f32 %v2570, %v2818
        %v2929 = vadd.f32 %v2571, %v2823
        %v2930 = vadd.f32 %v2572, %v2828
        %v2931 = vadd.f32 %v2573, %v2833
        %v2932 = vadd.f32 %v2574, %v2838
        %v2933 = vadd.f32 %v2575, %v2843
        %v2934 = vadd.f32 %v2576, %v2848
        %v2935 = vadd.f32 %v2577, %v2853
        %v2936 = vadd.f32 %v2578, %v2858
        %v2937 = vadd.f32 %v2579, %v2863
        %v2938 = vadd.f32 %v2580, %v2868
        %v2939 = vadd.f32 %v2581, %v2873
        %v2940 = vadd.f32 %v2582, %v2878
        %v2941 = vadd.f32 %v2583, %v2883
        %v2942 = vadd.f32 %v2584, %v2888
        %v2943 = vadd.f32 %v2585, %v2893
        %v2944 = vadd.f32 %v2586, %v2898
        %v2945 = vadd.f32 %v2587, %v2903
        %v2946 = vadd.f32 %v2588, %v2908
        %v2947 = vadd.f32 %v2589, %v2913
        %2948 = vst [vmem:[#allocation2] sm:$0xff] %v2916
        %2949 = vst [vmem:[#allocation2 + $0x8] sm:$0xff] %v2917
        %2950 = vst [vmem:[#allocation2 + $0x10] sm:$0xff] %v2918
        %2951 = vst [vmem:[#allocation2 + $0x18] sm:$0xff] %v2919
        %2952 = vst [vmem:[#allocation2 + $0x20] sm:$0xff] %v2920
        %2953 = vst [vmem:[#allocation2 + $0x28] sm:$0xff] %v2921
        %2954 = vst [vmem:[#allocation2 + $0x30] sm:$0xff] %v2922
        %2955 = vst [vmem:[#allocation2 + $0x38] sm:$0xff] %v2923
        %2956 = vst [vmem:[#allocation2 + $0x40] sm:$0xff] %v2924
        %2957 = vst [vmem:[#allocation2 + $0x48] sm:$0xff] %v2925
        %2958 = vst [vmem:[#allocation2 + $0x50] sm:$0xff] %v2926
        %2959 = vst [vmem:[#allocation2 + $0x58] sm:$0xff] %v2927
        %2960 = vst [vmem:[#allocation2 + $0x60] sm:$0xff] %v2928
        %2961 = vst [vmem:[#allocation2 + $0x68] sm:$0xff] %v2929
        %2962 = vst [vmem:[#allocation2 + $0x70] sm:$0xff] %v2930
        %2963 = vst [vmem:[#allocation2 + $0x78] sm:$0xff] %v2931
        %2964 = vst [vmem:[#allocation2 + $0x80] sm:$0xff] %v2932
        %2965 = vst [vmem:[#allocation2 + $0x88] sm:$0xff] %v2933
        %2966 = vst [vmem:[#allocation2 + $0x90] sm:$0xff] %v2934
        %2967 = vst [vmem:[#allocation2 + $0x98] sm:$0xff] %v2935
        %2968 = vst [vmem:[#allocation2 + $0xa0] sm:$0xff] %v2936
        %2969 = vst [vmem:[#allocation2 + $0xa8] sm:$0xff] %v2937
        %2970 = vst [vmem:[#allocation2 + $0xb0] sm:$0xff] %v2938
        %2971 = vst [vmem:[#allocation2 + $0xb8] sm:$0xff] %v2939
        %2972 = vst [vmem:[#allocation2 + $0xc0] sm:$0xff] %v2940
        %2973 = vst [vmem:[#allocation2 + $0xc8] sm:$0xff] %v2941
        %2974 = vst [vmem:[#allocation2 + $0xd0] sm:$0xff] %v2942
        %2975 = vst [vmem:[#allocation2 + $0xd8] sm:$0xff] %v2943
        %2976 = vst [vmem:[#allocation2 + $0xe0] sm:$0xff] %v2944
        %2977 = vst [vmem:[#allocation2 + $0xe8] sm:$0xff] %v2945
        %2978 = vst [vmem:[#allocation2 + $0xf0] sm:$0xff] %v2946
        %2979 = vst [vmem:[#allocation2 + $0xf8] sm:$0xff] %v2947
        %s2980 = scalar_lea.vmem %s221, 48
        %v2981 = vld [vmem:[%s2980] sm:$0xff]
        %v2982 = vld [vmem:[%s2980 + $0x8] sm:$0xff]
        %v2983 = vld [vmem:[%s2980 + $0x18] sm:$0xff]
        %v2984 = vld [vmem:[%s2980 + $0x20] sm:$0xff]
        %v2985 = vld [vmem:[%s2980 + $0x30] sm:$0xff]
        %v2986 = vld [vmem:[%s2980 + $0x38] sm:$0xff]
        %v2987 = vld [vmem:[%s2980 + $0x48] sm:$0xff]
        %v2988 = vld [vmem:[%s2980 + $0x50] sm:$0xff]
        %v2989 = vld [vmem:[%s2980 + $0x60] sm:$0xff]
        %v2990 = vld [vmem:[%s2980 + $0x68] sm:$0xff]
        %v2991 = vld [vmem:[%s2980 + $0x78] sm:$0xff]
        %v2992 = vld [vmem:[%s2980 + $0x80] sm:$0xff]
        %v2993 = vld [vmem:[%s2980 + $0x90] sm:$0xff]
        %v2994 = vld [vmem:[%s2980 + $0x98] sm:$0xff]
        %v2995 = vld [vmem:[%s2980 + $0xa8] sm:$0xff]
        %v2996 = vld [vmem:[%s2980 + $0xb0] sm:$0xff]
        %v2997 = vld [vmem:[%s2980 + $0xc0] sm:$0xff]
        %v2998 = vld [vmem:[%s2980 + $0xc8] sm:$0xff]
        %v2999 = vld [vmem:[%s2980 + $0xd8] sm:$0xff]
        %v3000 = vld [vmem:[%s2980 + $0xe0] sm:$0xff]
        %v3001 = vld [vmem:[%s2980 + $0xf0] sm:$0xff]
        %v3002 = vld [vmem:[%s2980 + $0xf8] sm:$0xff]
        %v3003 = vld [vmem:[%s2980 + $0x108] sm:$0xff]
        %v3004 = vld [vmem:[%s2980 + $0x110] sm:$0xff]
        %v3005 = vld [vmem:[%s2980 + $0x120] sm:$0xff]
        %v3006 = vld [vmem:[%s2980 + $0x128] sm:$0xff]
        %v3007 = vld [vmem:[%s2980 + $0x138] sm:$0xff]
        %v3008 = vld [vmem:[%s2980 + $0x140] sm:$0xff]
        %v3009 = vld [vmem:[%s2980 + $0x150] sm:$0xff]
        %v3010 = vld [vmem:[%s2980 + $0x158] sm:$0xff]
        %v3011 = vld [vmem:[%s2980 + $0x168] sm:$0xff]
        %v3012 = vld [vmem:[%s2980 + $0x170] sm:$0xff]
        %v3013 = vld [vmem:[#allocation2] sm:$0xff]
        %v3014 = vld [vmem:[#allocation2 + $0x8] sm:$0xff]
        %v3015 = vld [vmem:[#allocation2 + $0x10] sm:$0xff]
        %v3016 = vld [vmem:[#allocation2 + $0x18] sm:$0xff]
        %v3017 = vld [vmem:[#allocation2 + $0x20] sm:$0xff]
        %v3018 = vld [vmem:[#allocation2 + $0x28] sm:$0xff]
        %v3019 = vld [vmem:[#allocation2 + $0x30] sm:$0xff]
        %v3020 = vld [vmem:[#allocation2 + $0x38] sm:$0xff]
        %v3021 = vld [vmem:[#allocation2 + $0x40] sm:$0xff]
        %v3022 = vld [vmem:[#allocation2 + $0x48] sm:$0xff]
        %v3023 = vld [vmem:[#allocation2 + $0x50] sm:$0xff]
        %v3024 = vld [vmem:[#allocation2 + $0x58] sm:$0xff]
        %v3025 = vld [vmem:[#allocation2 + $0x60] sm:$0xff]
        %v3026 = vld [vmem:[#allocation2 + $0x68] sm:$0xff]
        %v3027 = vld [vmem:[#allocation2 + $0x70] sm:$0xff]
        %v3028 = vld [vmem:[#allocation2 + $0x78] sm:$0xff]
        %v3029 = vld [vmem:[#allocation2 + $0x80] sm:$0xff]
        %v3030 = vld [vmem:[#allocation2 + $0x88] sm:$0xff]
        %v3031 = vld [vmem:[#allocation2 + $0x90] sm:$0xff]
        %v3032 = vld [vmem:[#allocation2 + $0x98] sm:$0xff]
        %v3033 = vld [vmem:[#allocation2 + $0xa0] sm:$0xff]
        %v3034 = vld [vmem:[#allocation2 + $0xa8] sm:$0xff]
        %v3035 = vld [vmem:[#allocation2 + $0xb0] sm:$0xff]
        %v3036 = vld [vmem:[#allocation2 + $0xb8] sm:$0xff]
        %v3037 = vld [vmem:[#allocation2 + $0xc0] sm:$0xff]
        %v3038 = vld [vmem:[#allocation2 + $0xc8] sm:$0xff]
        %v3039 = vld [vmem:[#allocation2 + $0xd0] sm:$0xff]
        %v3040 = vld [vmem:[#allocation2 + $0xd8] sm:$0xff]
        %v3041 = vld [vmem:[#allocation2 + $0xe0] sm:$0xff]
        %v3042 = vld [vmem:[#allocation2 + $0xe8] sm:$0xff]
        %v3043 = vld [vmem:[#allocation2 + $0xf0] sm:$0xff]
        %v3044 = vld [vmem:[#allocation2 + $0xf8] sm:$0xff]
        %s3045 = scalar_lea.vmem %s1, 24
        %v3046 = vld [vmem:[%s3045] sm:$0xf]
        %v3048 = vsel %vm319, %v2981, 0
        %v3051 = vsel %vm319, %v2982, 0
        %v3054 = vsel %vm319, %v2983, 0
        %v3057 = vsel %vm319, %v2984, 0
        %v3060 = vsel %vm319, %v2985, 0
        %v3063 = vsel %vm319, %v2986, 0
        %v3066 = vsel %vm319, %v2987, 0
        %v3069 = vsel %vm319, %v2988, 0
        %v3072 = vsel %vm319, %v2989, 0
        %v3075 = vsel %vm319, %v2990, 0
        %v3078 = vsel %vm319, %v2991, 0
        %v3081 = vsel %vm319, %v2992, 0
        %v3084 = vsel %vm319, %v2993, 0
        %v3087 = vsel %vm319, %v2994, 0
        %v3090 = vsel %vm319, %v2995, 0
        %v3093 = vsel %vm319, %v2996, 0
        %v3096 = vsel %vm319, %v2997, 0
        %v3099 = vsel %vm319, %v2998, 0
        %v3102 = vsel %vm319, %v2999, 0
        %v3105 = vsel %vm319, %v3000, 0
        %v3108 = vsel %vm319, %v3001, 0
        %v3111 = vsel %vm319, %v3002, 0
        %v3114 = vsel %vm319, %v3003, 0
        %v3117 = vsel %vm319, %v3004, 0
        %v3120 = vsel %vm319, %v3005, 0
        %v3123 = vsel %vm319, %v3006, 0
        %v3126 = vsel %vm319, %v3007, 0
        %v3129 = vsel %vm319, %v3008, 0
        %v3132 = vsel %vm319, %v3009, 0
        %v3135 = vsel %vm319, %v3010, 0
        %v3138 = vsel %vm319, %v3011, 0
        %v3141 = vsel %vm319, %v3012, 0
        %v3144 = vsel %vm416, %v3046, 0
        %3146 = vmatprep.subr.mxu0 0.0
        %3147 = vmatpush1.msra.mxu0 %v3144
        %3148 = vmatprep.subr.mxu0 0.0
        %3149 = vmatpush1.msra.mxu0 0.0
        %3150 = vmatprep.subr.mxu0 0.0
        %3151 = vmatpush1.msra.mxu0 0.0
        %3152 = vmatprep.subr.mxu0 0.0
        %3153 = vmatpush1.msra.mxu0 0.0
        %3154 = vmatprep.subr.mxu0 0.0
        %3155 = vmatpush1.msra.mxu0 0.0
        %3156 = vmatprep.subr.mxu0 0.0
        %3157 = vmatpush1.msra.mxu0 0.0
        %3158 = vmatprep.subr.mxu0 0.0
        %3159 = vmatpush1.msra.mxu0 0.0
        %3160 = vmatprep.subr.mxu0 0.0
        %3161 = vmatpush1.msra.mxu0 0.0
        %3162 = vmatprep.subr.mxu0 0.0
        %3163 = vmatpush1.msra.mxu0 0.0
        %3164 = vmatprep.subr.mxu0 0.0
        %3165 = vmatpush1.msra.mxu0 0.0
        %3166 = vmatprep.subr.mxu0 0.0
        %3167 = vmatpush1.msra.mxu0 0.0
        %3168 = vmatprep.subr.mxu0 0.0
        %3169 = vmatpush1.msra.mxu0 0.0
        %3170 = vmatprep.subr.mxu0 0.0
        %3171 = vmatpush1.msra.mxu0 0.0
        %3172 = vmatprep.subr.mxu0 0.0
        %3173 = vmatpush1.msra.mxu0 0.0
        %3174 = vmatprep.subr.mxu0 0.0
        %3175 = vmatpush1.msra.mxu0 0.0
        %3176 = vmatprep.subr.mxu0 0.0
        %3177 = vmatpush1.msra.mxu0 0.0
        %3178 = vmatprep.subr.mxu0 0.0
        %3179 = vmatpush1.msra.mxu0 0.0
        %3180 = vmatprep.subr.mxu0 0.0
        %3181 = vmatpush1.msra.mxu0 0.0
        %3182 = vmatprep.subr.mxu0 0.0
        %3183 = vmatpush1.msra.mxu0 0.0
        %3184 = vmatprep.subr.mxu0 0.0
        %3185 = vmatpush1.msra.mxu0 0.0
        %3186 = vmatprep.subr.mxu0 0.0
        %3187 = vmatpush1.msra.mxu0 0.0
        %3188 = vmatprep.subr.mxu0 0.0
        %3189 = vmatpush1.msra.mxu0 0.0
        %3190 = vmatprep.subr.mxu0 0.0
        %3191 = vmatpush1.msra.mxu0 0.0
        %3192 = vmatprep.subr.mxu0 0.0
        %3193 = vmatpush1.msra.mxu0 0.0
        %3194 = vmatprep.subr.mxu0 0.0
        %3195 = vmatpush1.msra.mxu0 0.0
        %3196 = vmatprep.subr.mxu0 0.0
        %3197 = vmatpush1.msra.mxu0 0.0
        %3198 = vmatprep.subr.mxu0 0.0
        %3199 = vmatpush1.msra.mxu0 0.0
        %3200 = vmatprep.subr.mxu0 0.0
        %3201 = vmatpush1.msra.mxu0 0.0
        %3202 = vmatprep.subr.mxu0 0.0
        %3203 = vmatpush1.msra.mxu0 0.0
        %3204 = vmatprep.subr.mxu0 0.0
        %3205 = vmatpush1.msra.mxu0 0.0
        %3206 = vmatprep.subr.mxu0 0.0
        %3207 = vmatpush1.msra.mxu0 0.0
        %3208 = vmatprep.subr.mxu0 0.0
        %3209 = vmatpush1.msra.mxu0 0.0
        %3210 = vmatprep.mubr.f32.mxu0 0.0
        %3211 = vmatmul.mubr.f32.gmra.mrb[0].mxu0 %v3048
        %v3212 = vpop.f32.mrb[0].mxu0
        %v3213 = vadd.f32 0.0, %v3212
        %v3214 = vpop.f32.mrb[0].mxu0
        %3215 = vmatprep.mubr.f32.mxu0 0.0
        %3216 = vmatmul.mubr.f32.gmra.mrb[0].mxu0 %v3051
        %v3217 = vpop.f32.mrb[0].mxu0
        %v3218 = vadd.f32 0.0, %v3217
        %v3219 = vpop.f32.mrb[0].mxu0
        %3220 = vmatprep.mubr.f32.mxu0 0.0
        %3221 = vmatmul.mubr.f32.gmra.mrb[0].mxu0 %v3054
        %v3222 = vpop.f32.mrb[0].mxu0
        %v3223 = vadd.f32 0.0, %v3222
        %v3224 = vpop.f32.mrb[0].mxu0
        %3225 = vmatprep.mubr.f32.mxu0 0.0
        %3226 = vmatmul.mubr.f32.gmra.mrb[0].mxu0 %v3057
        %v3227 = vpop.f32.mrb[0].mxu0
        %v3228 = vadd.f32 0.0, %v3227
        %v3229 = vpop.f32.mrb[0].mxu0
        %3230 = vmatprep.mubr.f32.mxu0 0.0
        %3231 = vmatmul.mubr.f32.gmra.mrb[0].mxu0 %v3060
        %v3232 = vpop.f32.mrb[0].mxu0
        %v3233 = vadd.f32 0.0, %v3232
        %v3234 = vpop.f32.mrb[0].mxu0
        %3235 = vmatprep.mubr.f32.mxu0 0.0
        %3236 = vmatmul.mubr.f32.gmra.mrb[0].mxu0 %v3063
        %v3237 = vpop.f32.mrb[0].mxu0
        %v3238 = vadd.f32 0.0, %v3237
        %v3239 = vpop.f32.mrb[0].mxu0
        %3240 = vmatprep.mubr.f32.mxu0 0.0
        %3241 = vmatmul.mubr.f32.gmra.mrb[0].mxu0 %v3066
        %v3242 = vpop.f32.mrb[0].mxu0
        %v3243 = vadd.f32 0.0, %v3242
        %v3244 = vpop.f32.mrb[0].mxu0
        %3245 = vmatprep.mubr.f32.mxu0 0.0
        %3246 = vmatmul.mubr.f32.gmra.mrb[0].mxu0 %v3069
        %v3247 = vpop.f32.mrb[0].mxu0
        %v3248 = vadd.f32 0.0, %v3247
        %v3249 = vpop.f32.mrb[0].mxu0
        %3250 = vmatprep.mubr.f32.mxu0 0.0
        %3251 = vmatmul.mubr.f32.gmra.mrb[0].mxu0 %v3072
        %v3252 = vpop.f32.mrb[0].mxu0
        %v3253 = vadd.f32 0.0, %v3252
        %v3254 = vpop.f32.mrb[0].mxu0
        %3255 = vmatprep.mubr.f32.mxu0 0.0
        %3256 = vmatmul.mubr.f32.gmra.mrb[0].mxu0 %v3075
        %v3257 = vpop.f32.mrb[0].mxu0
        %v3258 = vadd.f32 0.0, %v3257
        %v3259 = vpop.f32.mrb[0].mxu0
        %3260 = vmatprep.mubr.f32.mxu0 0.0
        %3261 = vmatmul.mubr.f32.gmra.mrb[0].mxu0 %v3078
        %v3262 = vpop.f32.mrb[0].mxu0
        %v3263 = vadd.f32 0.0, %v3262
        %v3264 = vpop.f32.mrb[0].mxu0
        %3265 = vmatprep.mubr.f32.mxu0 0.0
        %3266 = vmatmul.mubr.f32.gmra.mrb[0].mxu0 %v3081
        %v3267 = vpop.f32.mrb[0].mxu0
        %v3268 = vadd.f32 0.0, %v3267
        %v3269 = vpop.f32.mrb[0].mxu0
        %3270 = vmatprep.mubr.f32.mxu0 0.0
        %3271 = vmatmul.mubr.f32.gmra.mrb[0].mxu0 %v3084
        %v3272 = vpop.f32.mrb[0].mxu0
        %v3273 = vadd.f32 0.0, %v3272
        %v3274 = vpop.f32.mrb[0].mxu0
        %3275 = vmatprep.mubr.f32.mxu0 0.0
        %3276 = vmatmul.mubr.f32.gmra.mrb[0].mxu0 %v3087
        %v3277 = vpop.f32.mrb[0].mxu0
        %v3278 = vadd.f32 0.0, %v3277
        %v3279 = vpop.f32.mrb[0].mxu0
        %3280 = vmatprep.mubr.f32.mxu0 0.0
        %3281 = vmatmul.mubr.f32.gmra.mrb[0].mxu0 %v3090
        %v3282 = vpop.f32.mrb[0].mxu0
        %v3283 = vadd.f32 0.0, %v3282
        %v3284 = vpop.f32.mrb[0].mxu0
        %3285 = vmatprep.mubr.f32.mxu0 0.0
        %3286 = vmatmul.mubr.f32.gmra.mrb[0].mxu0 %v3093
        %v3287 = vpop.f32.mrb[0].mxu0
        %v3288 = vadd.f32 0.0, %v3287
        %v3289 = vpop.f32.mrb[0].mxu0
        %3290 = vmatprep.mubr.f32.mxu0 0.0
        %3291 = vmatmul.mubr.f32.gmra.mrb[0].mxu0 %v3096
        %v3292 = vpop.f32.mrb[0].mxu0
        %v3293 = vadd.f32 0.0, %v3292
        %v3294 = vpop.f32.mrb[0].mxu0
        %3295 = vmatprep.mubr.f32.mxu0 0.0
        %3296 = vmatmul.mubr.f32.gmra.mrb[0].mxu0 %v3099
        %v3297 = vpop.f32.mrb[0].mxu0
        %v3298 = vadd.f32 0.0, %v3297
        %v3299 = vpop.f32.mrb[0].mxu0
        %3300 = vmatprep.mubr.f32.mxu0 0.0
        %3301 = vmatmul.mubr.f32.gmra.mrb[0].mxu0 %v3102
        %v3302 = vpop.f32.mrb[0].mxu0
        %v3303 = vadd.f32 0.0, %v3302
        %v3304 = vpop.f32.mrb[0].mxu0
        %3305 = vmatprep.mubr.f32.mxu0 0.0
        %3306 = vmatmul.mubr.f32.gmra.mrb[0].mxu0 %v3105
        %v3307 = vpop.f32.mrb[0].mxu0
        %v3308 = vadd.f32 0.0, %v3307
        %v3309 = vpop.f32.mrb[0].mxu0
        %3310 = vmatprep.mubr.f32.mxu0 0.0
        %3311 = vmatmul.mubr.f32.gmra.mrb[0].mxu0 %v3108
        %v3312 = vpop.f32.mrb[0].mxu0
        %v3313 = vadd.f32 0.0, %v3312
        %v3314 = vpop.f32.mrb[0].mxu0
        %3315 = vmatprep.mubr.f32.mxu0 0.0
        %3316 = vmatmul.mubr.f32.gmra.mrb[0].mxu0 %v3111
        %v3317 = vpop.f32.mrb[0].mxu0
        %v3318 = vadd.f32 0.0, %v3317
        %v3319 = vpop.f32.mrb[0].mxu0
        %3320 = vmatprep.mubr.f32.mxu0 0.0
        %3321 = vmatmul.mubr.f32.gmra.mrb[0].mxu0 %v3114
        %v3322 = vpop.f32.mrb[0].mxu0
        %v3323 = vadd.f32 0.0, %v3322
        %v3324 = vpop.f32.mrb[0].mxu0
        %3325 = vmatprep.mubr.f32.mxu0 0.0
        %3326 = vmatmul.mubr.f32.gmra.mrb[0].mxu0 %v3117
        %v3327 = vpop.f32.mrb[0].mxu0
        %v3328 = vadd.f32 0.0, %v3327
        %v3329 = vpop.f32.mrb[0].mxu0
        %3330 = vmatprep.mubr.f32.mxu0 0.0
        %3331 = vmatmul.mubr.f32.gmra.mrb[0].mxu0 %v3120
        %v3332 = vpop.f32.mrb[0].mxu0
        %v3333 = vadd.f32 0.0, %v3332
        %v3334 = vpop.f32.mrb[0].mxu0
        %3335 = vmatprep.mubr.f32.mxu0 0.0
        %3336 = vmatmul.mubr.f32.gmra.mrb[0].mxu0 %v3123
        %v3337 = vpop.f32.mrb[0].mxu0
        %v3338 = vadd.f32 0.0, %v3337
        %v3339 = vpop.f32.mrb[0].mxu0
        %3340 = vmatprep.mubr.f32.mxu0 0.0
        %3341 = vmatmul.mubr.f32.gmra.mrb[0].mxu0 %v3126
        %v3342 = vpop.f32.mrb[0].mxu0
        %v3343 = vadd.f32 0.0, %v3342
        %v3344 = vpop.f32.mrb[0].mxu0
        %3345 = vmatprep.mubr.f32.mxu0 0.0
        %3346 = vmatmul.mubr.f32.gmra.mrb[0].mxu0 %v3129
        %v3347 = vpop.f32.mrb[0].mxu0
        %v3348 = vadd.f32 0.0, %v3347
        %v3349 = vpop.f32.mrb[0].mxu0
        %3350 = vmatprep.mubr.f32.mxu0 0.0
        %3351 = vmatmul.mubr.f32.gmra.mrb[0].mxu0 %v3132
        %v3352 = vpop.f32.mrb[0].mxu0
        %v3353 = vadd.f32 0.0, %v3352
        %v3354 = vpop.f32.mrb[0].mxu0
        %3355 = vmatprep.mubr.f32.mxu0 0.0
        %3356 = vmatmul.mubr.f32.gmra.mrb[0].mxu0 %v3135
        %v3357 = vpop.f32.mrb[0].mxu0
        %v3358 = vadd.f32 0.0, %v3357
        %v3359 = vpop.f32.mrb[0].mxu0
        %3360 = vmatprep.mubr.f32.mxu0 0.0
        %3361 = vmatmul.mubr.f32.gmra.mrb[0].mxu0 %v3138
        %v3362 = vpop.f32.mrb[0].mxu0
        %v3363 = vadd.f32 0.0, %v3362
        %v3364 = vpop.f32.mrb[0].mxu0
        %3365 = vmatprep.mubr.f32.mxu0 0.0
        %3366 = vmatmul.mubr.f32.gmra.mrb[0].mxu0 %v3141
        %v3367 = vpop.f32.mrb[0].mxu0
        %v3368 = vadd.f32 0.0, %v3367
        %v3369 = vpop.f32.mrb[0].mxu0
        %3370 = vdwg.mxu0
        %v3371 = vadd.f32 %v3013, %v3213
        %v3372 = vadd.f32 %v3014, %v3218
        %v3373 = vadd.f32 %v3015, %v3223
        %v3374 = vadd.f32 %v3016, %v3228
        %v3375 = vadd.f32 %v3017, %v3233
        %v3376 = vadd.f32 %v3018, %v3238
        %v3377 = vadd.f32 %v3019, %v3243
        %v3378 = vadd.f32 %v3020, %v3248
        %v3379 = vadd.f32 %v3021, %v3253
        %v3380 = vadd.f32 %v3022, %v3258
        %v3381 = vadd.f32 %v3023, %v3263
        %v3382 = vadd.f32 %v3024, %v3268
        %v3383 = vadd.f32 %v3025, %v3273
        %v3384 = vadd.f32 %v3026, %v3278
        %v3385 = vadd.f32 %v3027, %v3283
        %v3386 = vadd.f32 %v3028, %v3288
        %v3387 = vadd.f32 %v3029, %v3293
        %v3388 = vadd.f32 %v3030, %v3298
        %v3389 = vadd.f32 %v3031, %v3303
        %v3390 = vadd.f32 %v3032, %v3308
        %v3391 = vadd.f32 %v3033, %v3313
        %v3392 = vadd.f32 %v3034, %v3318
        %v3393 = vadd.f32 %v3035, %v3323
        %v3394 = vadd.f32 %v3036, %v3328
        %v3395 = vadd.f32 %v3037, %v3333
        %v3396 = vadd.f32 %v3038, %v3338
        %v3397 = vadd.f32 %v3039, %v3343
        %v3398 = vadd.f32 %v3040, %v3348
        %v3399 = vadd.f32 %v3041, %v3353
        %v3400 = vadd.f32 %v3042, %v3358
        %v3401 = vadd.f32 %v3043, %v3363
        %v3402 = vadd.f32 %v3044, %v3368
        %3403 = vst [vmem:[#allocation2] sm:$0xff] %v3371
        %3404 = vst [vmem:[#allocation2 + $0x8] sm:$0xff] %v3372
        %3405 = vst [vmem:[#allocation2 + $0x10] sm:$0xff] %v3373
        %3406 = vst [vmem:[#allocation2 + $0x18] sm:$0xff] %v3374
        %3407 = vst [vmem:[#allocation2 + $0x20] sm:$0xff] %v3375
        %3408 = vst [vmem:[#allocation2 + $0x28] sm:$0xff] %v3376
        %3409 = vst [vmem:[#allocation2 + $0x30] sm:$0xff] %v3377
        %3410 = vst [vmem:[#allocation2 + $0x38] sm:$0xff] %v3378
        %3411 = vst [vmem:[#allocation2 + $0x40] sm:$0xff] %v3379
        %3412 = vst [vmem:[#allocation2 + $0x48] sm:$0xff] %v3380
        %3413 = vst [vmem:[#allocation2 + $0x50] sm:$0xff] %v3381
        %3414 = vst [vmem:[#allocation2 + $0x58] sm:$0xff] %v3382
        %3415 = vst [vmem:[#allocation2 + $0x60] sm:$0xff] %v3383
        %3416 = vst [vmem:[#allocation2 + $0x68] sm:$0xff] %v3384
        %3417 = vst [vmem:[#allocation2 + $0x70] sm:$0xff] %v3385
        %3418 = vst [vmem:[#allocation2 + $0x78] sm:$0xff] %v3386
        %3419 = vst [vmem:[#allocation2 + $0x80] sm:$0xff] %v3387
        %3420 = vst [vmem:[#allocation2 + $0x88] sm:$0xff] %v3388
        %3421 = vst [vmem:[#allocation2 + $0x90] sm:$0xff] %v3389
        %3422 = vst [vmem:[#allocation2 + $0x98] sm:$0xff] %v3390
        %3423 = vst [vmem:[#allocation2 + $0xa0] sm:$0xff] %v3391
        %3424 = vst [vmem:[#allocation2 + $0xa8] sm:$0xff] %v3392
        %3425 = vst [vmem:[#allocation2 + $0xb0] sm:$0xff] %v3393
        %3426 = vst [vmem:[#allocation2 + $0xb8] sm:$0xff] %v3394
        %3427 = vst [vmem:[#allocation2 + $0xc0] sm:$0xff] %v3395
        %3428 = vst [vmem:[#allocation2 + $0xc8] sm:$0xff] %v3396
        %3429 = vst [vmem:[#allocation2 + $0xd0] sm:$0xff] %v3397
        %3430 = vst [vmem:[#allocation2 + $0xd8] sm:$0xff] %v3398
        %3431 = vst [vmem:[#allocation2 + $0xe0] sm:$0xff] %v3399
        %3432 = vst [vmem:[#allocation2 + $0xe8] sm:$0xff] %v3400
        %3433 = vst [vmem:[#allocation2 + $0xf0] sm:$0xff] %v3401
        %3434 = vst [vmem:[#allocation2 + $0xf8] sm:$0xff] %v3402
        %v3435 = vld [vmem:[%s2980 + $0x1] sm:$0xff]
        %v3436 = vld [vmem:[%s2980 + $0x9] sm:$0xff]
        %v3437 = vld [vmem:[%s2980 + $0x19] sm:$0xff]
        %v3438 = vld [vmem:[%s2980 + $0x21] sm:$0xff]
        %v3439 = vld [vmem:[%s2980 + $0x31] sm:$0xff]
        %v3440 = vld [vmem:[%s2980 + $0x39] sm:$0xff]
        %v3441 = vld [vmem:[%s2980 + $0x49] sm:$0xff]
        %v3442 = vld [vmem:[%s2980 + $0x51] sm:$0xff]
        %v3443 = vld [vmem:[%s2980 + $0x61] sm:$0xff]
        %v3444 = vld [vmem:[%s2980 + $0x69] sm:$0xff]
        %v3445 = vld [vmem:[%s2980 + $0x79] sm:$0xff]
        %v3446 = vld [vmem:[%s2980 + $0x81] sm:$0xff]
        %v3447 = vld [vmem:[%s2980 + $0x91] sm:$0xff]
        %v3448 = vld [vmem:[%s2980 + $0x99] sm:$0xff]
        %v3449 = vld [vmem:[%s2980 + $0xa9] sm:$0xff]
        %v3450 = vld [vmem:[%s2980 + $0xb1] sm:$0xff]
        %v3451 = vld [vmem:[%s2980 + $0xc1] sm:$0xff]
        %v3452 = vld [vmem:[%s2980 + $0xc9] sm:$0xff]
        %v3453 = vld [vmem:[%s2980 + $0xd9] sm:$0xff]
        %v3454 = vld [vmem:[%s2980 + $0xe1] sm:$0xff]
        %v3455 = vld [vmem:[%s2980 + $0xf1] sm:$0xff]
        %v3456 = vld [vmem:[%s2980 + $0xf9] sm:$0xff]
        %v3457 = vld [vmem:[%s2980 + $0x109] sm:$0xff]
        %v3458 = vld [vmem:[%s2980 + $0x111] sm:$0xff]
        %v3459 = vld [vmem:[%s2980 + $0x121] sm:$0xff]
        %v3460 = vld [vmem:[%s2980 + $0x129] sm:$0xff]
        %v3461 = vld [vmem:[%s2980 + $0x139] sm:$0xff]
        %v3462 = vld [vmem:[%s2980 + $0x141] sm:$0xff]
        %v3463 = vld [vmem:[%s2980 + $0x151] sm:$0xff]
        %v3464 = vld [vmem:[%s2980 + $0x159] sm:$0xff]
        %v3465 = vld [vmem:[%s2980 + $0x169] sm:$0xff]
        %v3466 = vld [vmem:[%s2980 + $0x171] sm:$0xff]
        %v3467 = vld [vmem:[#allocation2] sm:$0xff]
        %v3468 = vld [vmem:[#allocation2 + $0x8] sm:$0xff]
        %v3469 = vld [vmem:[#allocation2 + $0x10] sm:$0xff]
        %v3470 = vld [vmem:[#allocation2 + $0x18] sm:$0xff]
        %v3471 = vld [vmem:[#allocation2 + $0x20] sm:$0xff]
        %v3472 = vld [vmem:[#allocation2 + $0x28] sm:$0xff]
        %v3473 = vld [vmem:[#allocation2 + $0x30] sm:$0xff]
        %v3474 = vld [vmem:[#allocation2 + $0x38] sm:$0xff]
        %v3475 = vld [vmem:[#allocation2 + $0x40] sm:$0xff]
        %v3476 = vld [vmem:[#allocation2 + $0x48] sm:$0xff]
        %v3477 = vld [vmem:[#allocation2 + $0x50] sm:$0xff]
        %v3478 = vld [vmem:[#allocation2 + $0x58] sm:$0xff]
        %v3479 = vld [vmem:[#allocation2 + $0x60] sm:$0xff]
        %v3480 = vld [vmem:[#allocation2 + $0x68] sm:$0xff]
        %v3481 = vld [vmem:[#allocation2 + $0x70] sm:$0xff]
        %v3482 = vld [vmem:[#allocation2 + $0x78] sm:$0xff]
        %v3483 = vld [vmem:[#allocation2 + $0x80] sm:$0xff]
        %v3484 = vld [vmem:[#allocation2 + $0x88] sm:$0xff]
        %v3485 = vld [vmem:[#allocation2 + $0x90] sm:$0xff]
        %v3486 = vld [vmem:[#allocation2 + $0x98] sm:$0xff]
        %v3487 = vld [vmem:[#allocation2 + $0xa0] sm:$0xff]
        %v3488 = vld [vmem:[#allocation2 + $0xa8] sm:$0xff]
        %v3489 = vld [vmem:[#allocation2 + $0xb0] sm:$0xff]
        %v3490 = vld [vmem:[#allocation2 + $0xb8] sm:$0xff]
        %v3491 = vld [vmem:[#allocation2 + $0xc0] sm:$0xff]
        %v3492 = vld [vmem:[#allocation2 + $0xc8] sm:$0xff]
        %v3493 = vld [vmem:[#allocation2 + $0xd0] sm:$0xff]
        %v3494 = vld [vmem:[#allocation2 + $0xd8] sm:$0xff]
        %v3495 = vld [vmem:[#allocation2 + $0xe0] sm:$0xff]
        %v3496 = vld [vmem:[#allocation2 + $0xe8] sm:$0xff]
        %v3497 = vld [vmem:[#allocation2 + $0xf0] sm:$0xff]
        %v3498 = vld [vmem:[#allocation2 + $0xf8] sm:$0xff]
        %s3499 = scalar_lea.vmem %s1, 28
        %v3500 = vld [vmem:[%s3499] sm:$0xf]
        %v3502 = vsel %vm319, %v3435, 0
        %v3505 = vsel %vm319, %v3436, 0
        %v3508 = vsel %vm319, %v3437, 0
        %v3511 = vsel %vm319, %v3438, 0
        %v3514 = vsel %vm319, %v3439, 0
        %v3517 = vsel %vm319, %v3440, 0
        %v3520 = vsel %vm319, %v3441, 0
        %v3523 = vsel %vm319, %v3442, 0
        %v3526 = vsel %vm319, %v3443, 0
        %v3529 = vsel %vm319, %v3444, 0
        %v3532 = vsel %vm319, %v3445, 0
        %v3535 = vsel %vm319, %v3446, 0
        %v3538 = vsel %vm319, %v3447, 0
        %v3541 = vsel %vm319, %v3448, 0
        %v3544 = vsel %vm319, %v3449, 0
        %v3547 = vsel %vm319, %v3450, 0
        %v3550 = vsel %vm319, %v3451, 0
        %v3553 = vsel %vm319, %v3452, 0
        %v3556 = vsel %vm319, %v3453, 0
        %v3559 = vsel %vm319, %v3454, 0
        %v3562 = vsel %vm319, %v3455, 0
        %v3565 = vsel %vm319, %v3456, 0
        %v3568 = vsel %vm319, %v3457, 0
        %v3571 = vsel %vm319, %v3458, 0
        %v3574 = vsel %vm319, %v3459, 0
        %v3577 = vsel %vm319, %v3460, 0
        %v3580 = vsel %vm319, %v3461, 0
        %v3583 = vsel %vm319, %v3462, 0
        %v3586 = vsel %vm319, %v3463, 0
        %v3589 = vsel %vm319, %v3464, 0
        %v3592 = vsel %vm319, %v3465, 0
        %v3595 = vsel %vm319, %v3466, 0
        %v3598 = vsel %vm416, %v3500, 0
        %3600 = vmatprep.subr.mxu0 0.0
        %3601 = vmatpush1.msra.mxu0 %v3598
        %3602 = vmatprep.subr.mxu0 0.0
        %3603 = vmatpush1.msra.mxu0 0.0
        %3604 = vmatprep.subr.mxu0 0.0
        %3605 = vmatpush1.msra.mxu0 0.0
        %3606 = vmatprep.subr.mxu0 0.0
        %3607 = vmatpush1.msra.mxu0 0.0
        %3608 = vmatprep.subr.mxu0 0.0
        %3609 = vmatpush1.msra.mxu0 0.0
        %3610 = vmatprep.subr.mxu0 0.0
        %3611 = vmatpush1.msra.mxu0 0.0
        %3612 = vmatprep.subr.mxu0 0.0
        %3613 = vmatpush1.msra.mxu0 0.0
        %3614 = vmatprep.subr.mxu0 0.0
        %3615 = vmatpush1.msra.mxu0 0.0
        %3616 = vmatprep.subr.mxu0 0.0
        %3617 = vmatpush1.msra.mxu0 0.0
        %3618 = vmatprep.subr.mxu0 0.0
        %3619 = vmatpush1.msra.mxu0 0.0
        %3620 = vmatprep.subr.mxu0 0.0
        %3621 = vmatpush1.msra.mxu0 0.0
        %3622 = vmatprep.subr.mxu0 0.0
        %3623 = vmatpush1.msra.mxu0 0.0
        %3624 = vmatprep.subr.mxu0 0.0
        %3625 = vmatpush1.msra.mxu0 0.0
        %3626 = vmatprep.subr.mxu0 0.0
        %3627 = vmatpush1.msra.mxu0 0.0
        %3628 = vmatprep.subr.mxu0 0.0
        %3629 = vmatpush1.msra.mxu0 0.0
        %3630 = vmatprep.subr.mxu0 0.0
        %3631 = vmatpush1.msra.mxu0 0.0
        %3632 = vmatprep.subr.mxu0 0.0
        %3633 = vmatpush1.msra.mxu0 0.0
        %3634 = vmatprep.subr.mxu0 0.0
        %3635 = vmatpush1.msra.mxu0 0.0
        %3636 = vmatprep.subr.mxu0 0.0
        %3637 = vmatpush1.msra.mxu0 0.0
        %3638 = vmatprep.subr.mxu0 0.0
        %3639 = vmatpush1.msra.mxu0 0.0
        %3640 = vmatprep.subr.mxu0 0.0
        %3641 = vmatpush1.msra.mxu0 0.0
        %3642 = vmatprep.subr.mxu0 0.0
        %3643 = vmatpush1.msra.mxu0 0.0
        %3644 = vmatprep.subr.mxu0 0.0
        %3645 = vmatpush1.msra.mxu0 0.0
        %3646 = vmatprep.subr.mxu0 0.0
        %3647 = vmatpush1.msra.mxu0 0.0
        %3648 = vmatprep.subr.mxu0 0.0
        %3649 = vmatpush1.msra.mxu0 0.0
        %3650 = vmatprep.subr.mxu0 0.0
        %3651 = vmatpush1.msra.mxu0 0.0
        %3652 = vmatprep.subr.mxu0 0.0
        %3653 = vmatpush1.msra.mxu0 0.0
        %3654 = vmatprep.subr.mxu0 0.0
        %3655 = vmatpush1.msra.mxu0 0.0
        %3656 = vmatprep.subr.mxu0 0.0
        %3657 = vmatpush1.msra.mxu0 0.0
        %3658 = vmatprep.subr.mxu0 0.0
        %3659 = vmatpush1.msra.mxu0 0.0
        %3660 = vmatprep.subr.mxu0 0.0
        %3661 = vmatpush1.msra.mxu0 0.0
        %3662 = vmatprep.subr.mxu0 0.0
        %3663 = vmatpush1.msra.mxu0 0.0
        %3664 = vmatprep.mubr.f32.mxu0 0.0
        %3665 = vmatmul.mubr.f32.gmra.mrb[0].mxu0 %v3502
        %v3666 = vpop.f32.mrb[0].mxu0
        %v3667 = vadd.f32 0.0, %v3666
        %v3668 = vpop.f32.mrb[0].mxu0
        %3669 = vmatprep.mubr.f32.mxu0 0.0
        %3670 = vmatmul.mubr.f32.gmra.mrb[0].mxu0 %v3505
        %v3671 = vpop.f32.mrb[0].mxu0
        %v3672 = vadd.f32 0.0, %v3671
        %v3673 = vpop.f32.mrb[0].mxu0
        %3674 = vmatprep.mubr.f32.mxu0 0.0
        %3675 = vmatmul.mubr.f32.gmra.mrb[0].mxu0 %v3508
        %v3676 = vpop.f32.mrb[0].mxu0
        %v3677 = vadd.f32 0.0, %v3676
        %v3678 = vpop.f32.mrb[0].mxu0
        %3679 = vmatprep.mubr.f32.mxu0 0.0
        %3680 = vmatmul.mubr.f32.gmra.mrb[0].mxu0 %v3511
        %v3681 = vpop.f32.mrb[0].mxu0
        %v3682 = vadd.f32 0.0, %v3681
        %v3683 = vpop.f32.mrb[0].mxu0
        %3684 = vmatprep.mubr.f32.mxu0 0.0
        %3685 = vmatmul.mubr.f32.gmra.mrb[0].mxu0 %v3514
        %v3686 = vpop.f32.mrb[0].mxu0
        %v3687 = vadd.f32 0.0, %v3686
        %v3688 = vpop.f32.mrb[0].mxu0
        %3689 = vmatprep.mubr.f32.mxu0 0.0
        %3690 = vmatmul.mubr.f32.gmra.mrb[0].mxu0 %v3517
        %v3691 = vpop.f32.mrb[0].mxu0
        %v3692 = vadd.f32 0.0, %v3691
        %v3693 = vpop.f32.mrb[0].mxu0
        %3694 = vmatprep.mubr.f32.mxu0 0.0
        %3695 = vmatmul.mubr.f32.gmra.mrb[0].mxu0 %v3520
        %v3696 = vpop.f32.mrb[0].mxu0
        %v3697 = vadd.f32 0.0, %v3696
        %v3698 = vpop.f32.mrb[0].mxu0
        %3699 = vmatprep.mubr.f32.mxu0 0.0
        %3700 = vmatmul.mubr.f32.gmra.mrb[0].mxu0 %v3523
        %v3701 = vpop.f32.mrb[0].mxu0
        %v3702 = vadd.f32 0.0, %v3701
        %v3703 = vpop.f32.mrb[0].mxu0
        %3704 = vmatprep.mubr.f32.mxu0 0.0
        %3705 = vmatmul.mubr.f32.gmra.mrb[0].mxu0 %v3526
        %v3706 = vpop.f32.mrb[0].mxu0
        %v3707 = vadd.f32 0.0, %v3706
        %v3708 = vpop.f32.mrb[0].mxu0
        %3709 = vmatprep.mubr.f32.mxu0 0.0
        %3710 = vmatmul.mubr.f32.gmra.mrb[0].mxu0 %v3529
        %v3711 = vpop.f32.mrb[0].mxu0
        %v3712 = vadd.f32 0.0, %v3711
        %v3713 = vpop.f32.mrb[0].mxu0
        %3714 = vmatprep.mubr.f32.mxu0 0.0
        %3715 = vmatmul.mubr.f32.gmra.mrb[0].mxu0 %v3532
        %v3716 = vpop.f32.mrb[0].mxu0
        %v3717 = vadd.f32 0.0, %v3716
        %v3718 = vpop.f32.mrb[0].mxu0
        %3719 = vmatprep.mubr.f32.mxu0 0.0
        %3720 = vmatmul.mubr.f32.gmra.mrb[0].mxu0 %v3535
        %v3721 = vpop.f32.mrb[0].mxu0
        %v3722 = vadd.f32 0.0, %v3721
        %v3723 = vpop.f32.mrb[0].mxu0
        %3724 = vmatprep.mubr.f32.mxu0 0.0
        %3725 = vmatmul.mubr.f32.gmra.mrb[0].mxu0 %v3538
        %v3726 = vpop.f32.mrb[0].mxu0
        %v3727 = vadd.f32 0.0, %v3726
        %v3728 = vpop.f32.mrb[0].mxu0
        %3729 = vmatprep.mubr.f32.mxu0 0.0
        %3730 = vmatmul.mubr.f32.gmra.mrb[0].mxu0 %v3541
        %v3731 = vpop.f32.mrb[0].mxu0
        %v3732 = vadd.f32 0.0, %v3731
        %v3733 = vpop.f32.mrb[0].mxu0
        %3734 = vmatprep.mubr.f32.mxu0 0.0
        %3735 = vmatmul.mubr.f32.gmra.mrb[0].mxu0 %v3544
        %v3736 = vpop.f32.mrb[0].mxu0
        %v3737 = vadd.f32 0.0, %v3736
        %v3738 = vpop.f32.mrb[0].mxu0
        %3739 = vmatprep.mubr.f32.mxu0 0.0
        %3740 = vmatmul.mubr.f32.gmra.mrb[0].mxu0 %v3547
        %v3741 = vpop.f32.mrb[0].mxu0
        %v3742 = vadd.f32 0.0, %v3741
        %v3743 = vpop.f32.mrb[0].mxu0
        %3744 = vmatprep.mubr.f32.mxu0 0.0
        %3745 = vmatmul.mubr.f32.gmra.mrb[0].mxu0 %v3550
        %v3746 = vpop.f32.mrb[0].mxu0
        %v3747 = vadd.f32 0.0, %v3746
        %v3748 = vpop.f32.mrb[0].mxu0
        %3749 = vmatprep.mubr.f32.mxu0 0.0
        %3750 = vmatmul.mubr.f32.gmra.mrb[0].mxu0 %v3553
        %v3751 = vpop.f32.mrb[0].mxu0
        %v3752 = vadd.f32 0.0, %v3751
        %v3753 = vpop.f32.mrb[0].mxu0
        %3754 = vmatprep.mubr.f32.mxu0 0.0
        %3755 = vmatmul.mubr.f32.gmra.mrb[0].mxu0 %v3556
        %v3756 = vpop.f32.mrb[0].mxu0
        %v3757 = vadd.f32 0.0, %v3756
        %v3758 = vpop.f32.mrb[0].mxu0
        %3759 = vmatprep.mubr.f32.mxu0 0.0
        %3760 = vmatmul.mubr.f32.gmra.mrb[0].mxu0 %v3559
        %v3761 = vpop.f32.mrb[0].mxu0
        %v3762 = vadd.f32 0.0, %v3761
        %v3763 = vpop.f32.mrb[0].mxu0
        %3764 = vmatprep.mubr.f32.mxu0 0.0
        %3765 = vmatmul.mubr.f32.gmra.mrb[0].mxu0 %v3562
        %v3766 = vpop.f32.mrb[0].mxu0
        %v3767 = vadd.f32 0.0, %v3766
        %v3768 = vpop.f32.mrb[0].mxu0
        %3769 = vmatprep.mubr.f32.mxu0 0.0
        %3770 = vmatmul.mubr.f32.gmra.mrb[0].mxu0 %v3565
        %v3771 = vpop.f32.mrb[0].mxu0
        %v3772 = vadd.f32 0.0, %v3771
        %v3773 = vpop.f32.mrb[0].mxu0
        %3774 = vmatprep.mubr.f32.mxu0 0.0
        %3775 = vmatmul.mubr.f32.gmra.mrb[0].mxu0 %v3568
        %v3776 = vpop.f32.mrb[0].mxu0
        %v3777 = vadd.f32 0.0, %v3776
        %v3778 = vpop.f32.mrb[0].mxu0
        %3779 = vmatprep.mubr.f32.mxu0 0.0
        %3780 = vmatmul.mubr.f32.gmra.mrb[0].mxu0 %v3571
        %v3781 = vpop.f32.mrb[0].mxu0
        %v3782 = vadd.f32 0.0, %v3781
        %v3783 = vpop.f32.mrb[0].mxu0
        %3784 = vmatprep.mubr.f32.mxu0 0.0
        %3785 = vmatmul.mubr.f32.gmra.mrb[0].mxu0 %v3574
        %v3786 = vpop.f32.mrb[0].mxu0
        %v3787 = vadd.f32 0.0, %v3786
        %v3788 = vpop.f32.mrb[0].mxu0
        %3789 = vmatprep.mubr.f32.mxu0 0.0
        %3790 = vmatmul.mubr.f32.gmra.mrb[0].mxu0 %v3577
        %v3791 = vpop.f32.mrb[0].mxu0
        %v3792 = vadd.f32 0.0, %v3791
        %v3793 = vpop.f32.mrb[0].mxu0
        %3794 = vmatprep.mubr.f32.mxu0 0.0
        %3795 = vmatmul.mubr.f32.gmra.mrb[0].mxu0 %v3580
        %v3796 = vpop.f32.mrb[0].mxu0
        %v3797 = vadd.f32 0.0, %v3796
        %v3798 = vpop.f32.mrb[0].mxu0
        %3799 = vmatprep.mubr.f32.mxu0 0.0
        %3800 = vmatmul.mubr.f32.gmra.mrb[0].mxu0 %v3583
        %v3801 = vpop.f32.mrb[0].mxu0
        %v3802 = vadd.f32 0.0, %v3801
        %v3803 = vpop.f32.mrb[0].mxu0
        %3804 = vmatprep.mubr.f32.mxu0 0.0
        %3805 = vmatmul.mubr.f32.gmra.mrb[0].mxu0 %v3586
        %v3806 = vpop.f32.mrb[0].mxu0
        %v3807 = vadd.f32 0.0, %v3806
        %v3808 = vpop.f32.mrb[0].mxu0
        %3809 = vmatprep.mubr.f32.mxu0 0.0
        %3810 = vmatmul.mubr.f32.gmra.mrb[0].mxu0 %v3589
        %v3811 = vpop.f32.mrb[0].mxu0
        %v3812 = vadd.f32 0.0, %v3811
        %v3813 = vpop.f32.mrb[0].mxu0
        %3814 = vmatprep.mubr.f32.mxu0 0.0
        %3815 = vmatmul.mubr.f32.gmra.mrb[0].mxu0 %v3592
        %v3816 = vpop.f32.mrb[0].mxu0
        %v3817 = vadd.f32 0.0, %v3816
        %v3818 = vpop.f32.mrb[0].mxu0
        %3819 = vmatprep.mubr.f32.mxu0 0.0
        %3820 = vmatmul.mubr.f32.gmra.mrb[0].mxu0 %v3595
        %v3821 = vpop.f32.mrb[0].mxu0
        %v3822 = vadd.f32 0.0, %v3821
        %v3823 = vpop.f32.mrb[0].mxu0
        %3824 = vdwg.mxu0
        %v3825 = vadd.f32 %v3467, %v3667
        %v3826 = vadd.f32 %v3468, %v3672
        %v3827 = vadd.f32 %v3469, %v3677
        %v3828 = vadd.f32 %v3470, %v3682
        %v3829 = vadd.f32 %v3471, %v3687
        %v3830 = vadd.f32 %v3472, %v3692
        %v3831 = vadd.f32 %v3473, %v3697
        %v3832 = vadd.f32 %v3474, %v3702
        %v3833 = vadd.f32 %v3475, %v3707
        %v3834 = vadd.f32 %v3476, %v3712
        %v3835 = vadd.f32 %v3477, %v3717
        %v3836 = vadd.f32 %v3478, %v3722
        %v3837 = vadd.f32 %v3479, %v3727
        %v3838 = vadd.f32 %v3480, %v3732
        %v3839 = vadd.f32 %v3481, %v3737
        %v3840 = vadd.f32 %v3482, %v3742
        %v3841 = vadd.f32 %v3483, %v3747
        %v3842 = vadd.f32 %v3484, %v3752
        %v3843 = vadd.f32 %v3485, %v3757
        %v3844 = vadd.f32 %v3486, %v3762
        %v3845 = vadd.f32 %v3487, %v3767
        %v3846 = vadd.f32 %v3488, %v3772
        %v3847 = vadd.f32 %v3489, %v3777
        %v3848 = vadd.f32 %v3490, %v3782
        %v3849 = vadd.f32 %v3491, %v3787
        %v3850 = vadd.f32 %v3492, %v3792
        %v3851 = vadd.f32 %v3493, %v3797
        %v3852 = vadd.f32 %v3494, %v3802
        %v3853 = vadd.f32 %v3495, %v3807
        %v3854 = vadd.f32 %v3496, %v3812
        %v3855 = vadd.f32 %v3497, %v3817
        %v3856 = vadd.f32 %v3498, %v3822
        %3857 = vst [vmem:[#allocation2] sm:$0xff] %v3825
        %3858 = vst [vmem:[#allocation2 + $0x8] sm:$0xff] %v3826
        %3859 = vst [vmem:[#allocation2 + $0x10] sm:$0xff] %v3827
        %3860 = vst [vmem:[#allocation2 + $0x18] sm:$0xff] %v3828
        %3861 = vst [vmem:[#allocation2 + $0x20] sm:$0xff] %v3829
        %3862 = vst [vmem:[#allocation2 + $0x28] sm:$0xff] %v3830
        %3863 = vst [vmem:[#allocation2 + $0x30] sm:$0xff] %v3831
        %3864 = vst [vmem:[#allocation2 + $0x38] sm:$0xff] %v3832
        %3865 = vst [vmem:[#allocation2 + $0x40] sm:$0xff] %v3833
        %3866 = vst [vmem:[#allocation2 + $0x48] sm:$0xff] %v3834
        %3867 = vst [vmem:[#allocation2 + $0x50] sm:$0xff] %v3835
        %3868 = vst [vmem:[#allocation2 + $0x58] sm:$0xff] %v3836
        %3869 = vst [vmem:[#allocation2 + $0x60] sm:$0xff] %v3837
        %3870 = vst [vmem:[#allocation2 + $0x68] sm:$0xff] %v3838
        %3871 = vst [vmem:[#allocation2 + $0x70] sm:$0xff] %v3839
        %3872 = vst [vmem:[#allocation2 + $0x78] sm:$0xff] %v3840
        %3873 = vst [vmem:[#allocation2 + $0x80] sm:$0xff] %v3841
        %3874 = vst [vmem:[#allocation2 + $0x88] sm:$0xff] %v3842
        %3875 = vst [vmem:[#allocation2 + $0x90] sm:$0xff] %v3843
        %3876 = vst [vmem:[#allocation2 + $0x98] sm:$0xff] %v3844
        %3877 = vst [vmem:[#allocation2 + $0xa0] sm:$0xff] %v3845
        %3878 = vst [vmem:[#allocation2 + $0xa8] sm:$0xff] %v3846
        %3879 = vst [vmem:[#allocation2 + $0xb0] sm:$0xff] %v3847
        %3880 = vst [vmem:[#allocation2 + $0xb8] sm:$0xff] %v3848
        %3881 = vst [vmem:[#allocation2 + $0xc0] sm:$0xff] %v3849
        %3882 = vst [vmem:[#allocation2 + $0xc8] sm:$0xff] %v3850
        %3883 = vst [vmem:[#allocation2 + $0xd0] sm:$0xff] %v3851
        %3884 = vst [vmem:[#allocation2 + $0xd8] sm:$0xff] %v3852
        %3885 = vst [vmem:[#allocation2 + $0xe0] sm:$0xff] %v3853
        %3886 = vst [vmem:[#allocation2 + $0xe8] sm:$0xff] %v3854
        %3887 = vst [vmem:[#allocation2 + $0xf0] sm:$0xff] %v3855
        %3888 = vst [vmem:[#allocation2 + $0xf8] sm:$0xff] %v3856
        %v3889 = vld [vmem:[%s2980 + $0x2] sm:$0xff]
        %v3890 = vld [vmem:[%s2980 + $0xa] sm:$0xff]
        %v3891 = vld [vmem:[%s2980 + $0x1a] sm:$0xff]
        %v3892 = vld [vmem:[%s2980 + $0x22] sm:$0xff]
        %v3893 = vld [vmem:[%s2980 + $0x32] sm:$0xff]
        %v3894 = vld [vmem:[%s2980 + $0x3a] sm:$0xff]
        %v3895 = vld [vmem:[%s2980 + $0x4a] sm:$0xff]
        %v3896 = vld [vmem:[%s2980 + $0x52] sm:$0xff]
        %v3897 = vld [vmem:[%s2980 + $0x62] sm:$0xff]
        %v3898 = vld [vmem:[%s2980 + $0x6a] sm:$0xff]
        %v3899 = vld [vmem:[%s2980 + $0x7a] sm:$0xff]
        %v3900 = vld [vmem:[%s2980 + $0x82] sm:$0xff]
        %v3901 = vld [vmem:[%s2980 + $0x92] sm:$0xff]
        %v3902 = vld [vmem:[%s2980 + $0x9a] sm:$0xff]
        %v3903 = vld [vmem:[%s2980 + $0xaa] sm:$0xff]
        %v3904 = vld [vmem:[%s2980 + $0xb2] sm:$0xff]
        %v3905 = vld [vmem:[%s2980 + $0xc2] sm:$0xff]
        %v3906 = vld [vmem:[%s2980 + $0xca] sm:$0xff]
        %v3907 = vld [vmem:[%s2980 + $0xda] sm:$0xff]
        %v3908 = vld [vmem:[%s2980 + $0xe2] sm:$0xff]
        %v3909 = vld [vmem:[%s2980 + $0xf2] sm:$0xff]
        %v3910 = vld [vmem:[%s2980 + $0xfa] sm:$0xff]
        %v3911 = vld [vmem:[%s2980 + $0x10a] sm:$0xff]
        %v3912 = vld [vmem:[%s2980 + $0x112] sm:$0xff]
        %v3913 = vld [vmem:[%s2980 + $0x122] sm:$0xff]
        %v3914 = vld [vmem:[%s2980 + $0x12a] sm:$0xff]
        %v3915 = vld [vmem:[%s2980 + $0x13a] sm:$0xff]
        %v3916 = vld [vmem:[%s2980 + $0x142] sm:$0xff]
        %v3917 = vld [vmem:[%s2980 + $0x152] sm:$0xff]
        %v3918 = vld [vmem:[%s2980 + $0x15a] sm:$0xff]
        %v3919 = vld [vmem:[%s2980 + $0x16a] sm:$0xff]
        %v3920 = vld [vmem:[%s2980 + $0x172] sm:$0xff]
        %v3921 = vld [vmem:[#allocation2] sm:$0xff]
        %v3922 = vld [vmem:[#allocation2 + $0x8] sm:$0xff]
        %v3923 = vld [vmem:[#allocation2 + $0x10] sm:$0xff]
        %v3924 = vld [vmem:[#allocation2 + $0x18] sm:$0xff]
        %v3925 = vld [vmem:[#allocation2 + $0x20] sm:$0xff]
        %v3926 = vld [vmem:[#allocation2 + $0x28] sm:$0xff]
        %v3927 = vld [vmem:[#allocation2 + $0x30] sm:$0xff]
        %v3928 = vld [vmem:[#allocation2 + $0x38] sm:$0xff]
        %v3929 = vld [vmem:[#allocation2 + $0x40] sm:$0xff]
        %v3930 = vld [vmem:[#allocation2 + $0x48] sm:$0xff]
        %v3931 = vld [vmem:[#allocation2 + $0x50] sm:$0xff]
        %v3932 = vld [vmem:[#allocation2 + $0x58] sm:$0xff]
        %v3933 = vld [vmem:[#allocation2 + $0x60] sm:$0xff]
        %v3934 = vld [vmem:[#allocation2 + $0x68] sm:$0xff]
        %v3935 = vld [vmem:[#allocation2 + $0x70] sm:$0xff]
        %v3936 = vld [vmem:[#allocation2 + $0x78] sm:$0xff]
        %v3937 = vld [vmem:[#allocation2 + $0x80] sm:$0xff]
        %v3938 = vld [vmem:[#allocation2 + $0x88] sm:$0xff]
        %v3939 = vld [vmem:[#allocation2 + $0x90] sm:$0xff]
        %v3940 = vld [vmem:[#allocation2 + $0x98] sm:$0xff]
        %v3941 = vld [vmem:[#allocation2 + $0xa0] sm:$0xff]
        %v3942 = vld [vmem:[#allocation2 + $0xa8] sm:$0xff]
        %v3943 = vld [vmem:[#allocation2 + $0xb0] sm:$0xff]
        %v3944 = vld [vmem:[#allocation2 + $0xb8] sm:$0xff]
        %v3945 = vld [vmem:[#allocation2 + $0xc0] sm:$0xff]
        %v3946 = vld [vmem:[#allocation2 + $0xc8] sm:$0xff]
        %v3947 = vld [vmem:[#allocation2 + $0xd0] sm:$0xff]
        %v3948 = vld [vmem:[#allocation2 + $0xd8] sm:$0xff]
        %v3949 = vld [vmem:[#allocation2 + $0xe0] sm:$0xff]
        %v3950 = vld [vmem:[#allocation2 + $0xe8] sm:$0xff]
        %v3951 = vld [vmem:[#allocation2 + $0xf0] sm:$0xff]
        %v3952 = vld [vmem:[#allocation2 + $0xf8] sm:$0xff]
        %s3953 = scalar_lea.vmem %s1, 32
        %v3954 = vld [vmem:[%s3953] sm:$0xf]
        %v3956 = vsel %vm319, %v3889, 0
        %v3959 = vsel %vm319, %v3890, 0
        %v3962 = vsel %vm319, %v3891, 0
        %v3965 = vsel %vm319, %v3892, 0
        %v3968 = vsel %vm319, %v3893, 0
        %v3971 = vsel %vm319, %v3894, 0
        %v3974 = vsel %vm319, %v3895, 0
        %v3977 = vsel %vm319, %v3896, 0
        %v3980 = vsel %vm319, %v3897, 0
        %v3983 = vsel %vm319, %v3898, 0
        %v3986 = vsel %vm319, %v3899, 0
        %v3989 = vsel %vm319, %v3900, 0
        %v3992 = vsel %vm319, %v3901, 0
        %v3995 = vsel %vm319, %v3902, 0
        %v3998 = vsel %vm319, %v3903, 0
        %v4001 = vsel %vm319, %v3904, 0
        %v4004 = vsel %vm319, %v3905, 0
        %v4007 = vsel %vm319, %v3906, 0
        %v4010 = vsel %vm319, %v3907, 0
        %v4013 = vsel %vm319, %v3908, 0
        %v4016 = vsel %vm319, %v3909, 0
        %v4019 = vsel %vm319, %v3910, 0
        %v4022 = vsel %vm319, %v3911, 0
        %v4025 = vsel %vm319, %v3912, 0
        %v4028 = vsel %vm319, %v3913, 0
        %v4031 = vsel %vm319, %v3914, 0
        %v4034 = vsel %vm319, %v3915, 0
        %v4037 = vsel %vm319, %v3916, 0
        %v4040 = vsel %vm319, %v3917, 0
        %v4043 = vsel %vm319, %v3918, 0
        %v4046 = vsel %vm319, %v3919, 0
        %v4049 = vsel %vm319, %v3920, 0
        %v4052 = vsel %vm416, %v3954, 0
        %4054 = vmatprep.subr.mxu0 0.0
        %4055 = vmatpush1.msra.mxu0 %v4052
        %4056 = vmatprep.subr.mxu0 0.0
        %4057 = vmatpush1.msra.mxu0 0.0
        %4058 = vmatprep.subr.mxu0 0.0
        %4059 = vmatpush1.msra.mxu0 0.0
        %4060 = vmatprep.subr.mxu0 0.0
        %4061 = vmatpush1.msra.mxu0 0.0
        %4062 = vmatprep.subr.mxu0 0.0
        %4063 = vmatpush1.msra.mxu0 0.0
        %4064 = vmatprep.subr.mxu0 0.0
        %4065 = vmatpush1.msra.mxu0 0.0
        %4066 = vmatprep.subr.mxu0 0.0
        %4067 = vmatpush1.msra.mxu0 0.0
        %4068 = vmatprep.subr.mxu0 0.0
        %4069 = vmatpush1.msra.mxu0 0.0
        %4070 = vmatprep.subr.mxu0 0.0
        %4071 = vmatpush1.msra.mxu0 0.0
        %4072 = vmatprep.subr.mxu0 0.0
        %4073 = vmatpush1.msra.mxu0 0.0
        %4074 = vmatprep.subr.mxu0 0.0
        %4075 = vmatpush1.msra.mxu0 0.0
        %4076 = vmatprep.subr.mxu0 0.0
        %4077 = vmatpush1.msra.mxu0 0.0
        %4078 = vmatprep.subr.mxu0 0.0
        %4079 = vmatpush1.msra.mxu0 0.0
        %4080 = vmatprep.subr.mxu0 0.0
        %4081 = vmatpush1.msra.mxu0 0.0
        %4082 = vmatprep.subr.mxu0 0.0
        %4083 = vmatpush1.msra.mxu0 0.0
        %4084 = vmatprep.subr.mxu0 0.0
        %4085 = vmatpush1.msra.mxu0 0.0
        %4086 = vmatprep.subr.mxu0 0.0
        %4087 = vmatpush1.msra.mxu0 0.0
        %4088 = vmatprep.subr.mxu0 0.0
        %4089 = vmatpush1.msra.mxu0 0.0
        %4090 = vmatprep.subr.mxu0 0.0
        %4091 = vmatpush1.msra.mxu0 0.0
        %4092 = vmatprep.subr.mxu0 0.0
        %4093 = vmatpush1.msra.mxu0 0.0
        %4094 = vmatprep.subr.mxu0 0.0
        %4095 = vmatpush1.msra.mxu0 0.0
        %4096 = vmatprep.subr.mxu0 0.0
        %4097 = vmatpush1.msra.mxu0 0.0
        %4098 = vmatprep.subr.mxu0 0.0
        %4099 = vmatpush1.msra.mxu0 0.0
        %4100 = vmatprep.subr.mxu0 0.0
        %4101 = vmatpush1.msra.mxu0 0.0
        %4102 = vmatprep.subr.mxu0 0.0
        %4103 = vmatpush1.msra.mxu0 0.0
        %4104 = vmatprep.subr.mxu0 0.0
        %4105 = vmatpush1.msra.mxu0 0.0
        %4106 = vmatprep.subr.mxu0 0.0
        %4107 = vmatpush1.msra.mxu0 0.0
        %4108 = vmatprep.subr.mxu0 0.0
        %4109 = vmatpush1.msra.mxu0 0.0
        %4110 = vmatprep.subr.mxu0 0.0
        %4111 = vmatpush1.msra.mxu0 0.0
        %4112 = vmatprep.subr.mxu0 0.0
        %4113 = vmatpush1.msra.mxu0 0.0
        %4114 = vmatprep.subr.mxu0 0.0
        %4115 = vmatpush1.msra.mxu0 0.0
        %4116 = vmatprep.subr.mxu0 0.0
        %4117 = vmatpush1.msra.mxu0 0.0
        %4118 = vmatprep.mubr.f32.mxu0 0.0
        %4119 = vmatmul.mubr.f32.gmra.mrb[0].mxu0 %v3956
        %v4120 = vpop.f32.mrb[0].mxu0
        %v4121 = vadd.f32 0.0, %v4120
        %v4122 = vpop.f32.mrb[0].mxu0
        %4123 = vmatprep.mubr.f32.mxu0 0.0
        %4124 = vmatmul.mubr.f32.gmra.mrb[0].mxu0 %v3959
        %v4125 = vpop.f32.mrb[0].mxu0
        %v4126 = vadd.f32 0.0, %v4125
        %v4127 = vpop.f32.mrb[0].mxu0
        %4128 = vmatprep.mubr.f32.mxu0 0.0
        %4129 = vmatmul.mubr.f32.gmra.mrb[0].mxu0 %v3962
        %v4130 = vpop.f32.mrb[0].mxu0
        %v4131 = vadd.f32 0.0, %v4130
        %v4132 = vpop.f32.mrb[0].mxu0
        %4133 = vmatprep.mubr.f32.mxu0 0.0
        %4134 = vmatmul.mubr.f32.gmra.mrb[0].mxu0 %v3965
        %v4135 = vpop.f32.mrb[0].mxu0
        %v4136 = vadd.f32 0.0, %v4135
        %v4137 = vpop.f32.mrb[0].mxu0
        %4138 = vmatprep.mubr.f32.mxu0 0.0
        %4139 = vmatmul.mubr.f32.gmra.mrb[0].mxu0 %v3968
        %v4140 = vpop.f32.mrb[0].mxu0
        %v4141 = vadd.f32 0.0, %v4140
        %v4142 = vpop.f32.mrb[0].mxu0
        %4143 = vmatprep.mubr.f32.mxu0 0.0
        %4144 = vmatmul.mubr.f32.gmra.mrb[0].mxu0 %v3971
        %v4145 = vpop.f32.mrb[0].mxu0
        %v4146 = vadd.f32 0.0, %v4145
        %v4147 = vpop.f32.mrb[0].mxu0
        %4148 = vmatprep.mubr.f32.mxu0 0.0
        %4149 = vmatmul.mubr.f32.gmra.mrb[0].mxu0 %v3974
        %v4150 = vpop.f32.mrb[0].mxu0
        %v4151 = vadd.f32 0.0, %v4150
        %v4152 = vpop.f32.mrb[0].mxu0
        %4153 = vmatprep.mubr.f32.mxu0 0.0
        %4154 = vmatmul.mubr.f32.gmra.mrb[0].mxu0 %v3977
        %v4155 = vpop.f32.mrb[0].mxu0
        %v4156 = vadd.f32 0.0, %v4155
        %v4157 = vpop.f32.mrb[0].mxu0
        %4158 = vmatprep.mubr.f32.mxu0 0.0
        %4159 = vmatmul.mubr.f32.gmra.mrb[0].mxu0 %v3980
        %v4160 = vpop.f32.mrb[0].mxu0
        %v4161 = vadd.f32 0.0, %v4160
        %v4162 = vpop.f32.mrb[0].mxu0
        %4163 = vmatprep.mubr.f32.mxu0 0.0
        %4164 = vmatmul.mubr.f32.gmra.mrb[0].mxu0 %v3983
        %v4165 = vpop.f32.mrb[0].mxu0
        %v4166 = vadd.f32 0.0, %v4165
        %v4167 = vpop.f32.mrb[0].mxu0
        %4168 = vmatprep.mubr.f32.mxu0 0.0
        %4169 = vmatmul.mubr.f32.gmra.mrb[0].mxu0 %v3986
        %v4170 = vpop.f32.mrb[0].mxu0
        %v4171 = vadd.f32 0.0, %v4170
        %v4172 = vpop.f32.mrb[0].mxu0
        %4173 = vmatprep.mubr.f32.mxu0 0.0
        %4174 = vmatmul.mubr.f32.gmra.mrb[0].mxu0 %v3989
        %v4175 = vpop.f32.mrb[0].mxu0
        %v4176 = vadd.f32 0.0, %v4175
        %v4177 = vpop.f32.mrb[0].mxu0
        %4178 = vmatprep.mubr.f32.mxu0 0.0
        %4179 = vmatmul.mubr.f32.gmra.mrb[0].mxu0 %v3992
        %v4180 = vpop.f32.mrb[0].mxu0
        %v4181 = vadd.f32 0.0, %v4180
        %v4182 = vpop.f32.mrb[0].mxu0
        %4183 = vmatprep.mubr.f32.mxu0 0.0
        %4184 = vmatmul.mubr.f32.gmra.mrb[0].mxu0 %v3995
        %v4185 = vpop.f32.mrb[0].mxu0
        %v4186 = vadd.f32 0.0, %v4185
        %v4187 = vpop.f32.mrb[0].mxu0
        %4188 = vmatprep.mubr.f32.mxu0 0.0
        %4189 = vmatmul.mubr.f32.gmra.mrb[0].mxu0 %v3998
        %v4190 = vpop.f32.mrb[0].mxu0
        %v4191 = vadd.f32 0.0, %v4190
        %v4192 = vpop.f32.mrb[0].mxu0
        %4193 = vmatprep.mubr.f32.mxu0 0.0
        %4194 = vmatmul.mubr.f32.gmra.mrb[0].mxu0 %v4001
        %v4195 = vpop.f32.mrb[0].mxu0
        %v4196 = vadd.f32 0.0, %v4195
        %v4197 = vpop.f32.mrb[0].mxu0
        %4198 = vmatprep.mubr.f32.mxu0 0.0
        %4199 = vmatmul.mubr.f32.gmra.mrb[0].mxu0 %v4004
        %v4200 = vpop.f32.mrb[0].mxu0
        %v4201 = vadd.f32 0.0, %v4200
        %v4202 = vpop.f32.mrb[0].mxu0
        %4203 = vmatprep.mubr.f32.mxu0 0.0
        %4204 = vmatmul.mubr.f32.gmra.mrb[0].mxu0 %v4007
        %v4205 = vpop.f32.mrb[0].mxu0
        %v4206 = vadd.f32 0.0, %v4205
        %v4207 = vpop.f32.mrb[0].mxu0
        %4208 = vmatprep.mubr.f32.mxu0 0.0
        %4209 = vmatmul.mubr.f32.gmra.mrb[0].mxu0 %v4010
        %v4210 = vpop.f32.mrb[0].mxu0
        %v4211 = vadd.f32 0.0, %v4210
        %v4212 = vpop.f32.mrb[0].mxu0
        %4213 = vmatprep.mubr.f32.mxu0 0.0
        %4214 = vmatmul.mubr.f32.gmra.mrb[0].mxu0 %v4013
        %v4215 = vpop.f32.mrb[0].mxu0
        %v4216 = vadd.f32 0.0, %v4215
        %v4217 = vpop.f32.mrb[0].mxu0
        %4218 = vmatprep.mubr.f32.mxu0 0.0
        %4219 = vmatmul.mubr.f32.gmra.mrb[0].mxu0 %v4016
        %v4220 = vpop.f32.mrb[0].mxu0
        %v4221 = vadd.f32 0.0, %v4220
        %v4222 = vpop.f32.mrb[0].mxu0
        %4223 = vmatprep.mubr.f32.mxu0 0.0
        %4224 = vmatmul.mubr.f32.gmra.mrb[0].mxu0 %v4019
        %v4225 = vpop.f32.mrb[0].mxu0
        %v4226 = vadd.f32 0.0, %v4225
        %v4227 = vpop.f32.mrb[0].mxu0
        %4228 = vmatprep.mubr.f32.mxu0 0.0
        %4229 = vmatmul.mubr.f32.gmra.mrb[0].mxu0 %v4022
        %v4230 = vpop.f32.mrb[0].mxu0
        %v4231 = vadd.f32 0.0, %v4230
        %v4232 = vpop.f32.mrb[0].mxu0
        %4233 = vmatprep.mubr.f32.mxu0 0.0
        %4234 = vmatmul.mubr.f32.gmra.mrb[0].mxu0 %v4025
        %v4235 = vpop.f32.mrb[0].mxu0
        %v4236 = vadd.f32 0.0, %v4235
        %v4237 = vpop.f32.mrb[0].mxu0
        %4238 = vmatprep.mubr.f32.mxu0 0.0
        %4239 = vmatmul.mubr.f32.gmra.mrb[0].mxu0 %v4028
        %v4240 = vpop.f32.mrb[0].mxu0
        %v4241 = vadd.f32 0.0, %v4240
        %v4242 = vpop.f32.mrb[0].mxu0
        %4243 = vmatprep.mubr.f32.mxu0 0.0
        %4244 = vmatmul.mubr.f32.gmra.mrb[0].mxu0 %v4031
        %v4245 = vpop.f32.mrb[0].mxu0
        %v4246 = vadd.f32 0.0, %v4245
        %v4247 = vpop.f32.mrb[0].mxu0
        %4248 = vmatprep.mubr.f32.mxu0 0.0
        %4249 = vmatmul.mubr.f32.gmra.mrb[0].mxu0 %v4034
        %v4250 = vpop.f32.mrb[0].mxu0
        %v4251 = vadd.f32 0.0, %v4250
        %v4252 = vpop.f32.mrb[0].mxu0
        %4253 = vmatprep.mubr.f32.mxu0 0.0
        %4254 = vmatmul.mubr.f32.gmra.mrb[0].mxu0 %v4037
        %v4255 = vpop.f32.mrb[0].mxu0
        %v4256 = vadd.f32 0.0, %v4255
        %v4257 = vpop.f32.mrb[0].mxu0
        %4258 = vmatprep.mubr.f32.mxu0 0.0
        %4259 = vmatmul.mubr.f32.gmra.mrb[0].mxu0 %v4040
        %v4260 = vpop.f32.mrb[0].mxu0
        %v4261 = vadd.f32 0.0, %v4260
        %v4262 = vpop.f32.mrb[0].mxu0
        %4263 = vmatprep.mubr.f32.mxu0 0.0
        %4264 = vmatmul.mubr.f32.gmra.mrb[0].mxu0 %v4043
        %v4265 = vpop.f32.mrb[0].mxu0
        %v4266 = vadd.f32 0.0, %v4265
        %v4267 = vpop.f32.mrb[0].mxu0
        %4268 = vmatprep.mubr.f32.mxu0 0.0
        %4269 = vmatmul.mubr.f32.gmra.mrb[0].mxu0 %v4046
        %v4270 = vpop.f32.mrb[0].mxu0
        %v4271 = vadd.f32 0.0, %v4270
        %v4272 = vpop.f32.mrb[0].mxu0
        %4273 = vmatprep.mubr.f32.mxu0 0.0
        %4274 = vmatmul.mubr.f32.gmra.mrb[0].mxu0 %v4049
        %v4275 = vpop.f32.mrb[0].mxu0
        %v4276 = vadd.f32 0.0, %v4275
        %v4277 = vpop.f32.mrb[0].mxu0
        %4278 = vdwg.mxu0
        %v4279 = vadd.f32 %v3921, %v4121
        %v4280 = vadd.f32 %v3922, %v4126
        %v4281 = vadd.f32 %v3923, %v4131
        %v4282 = vadd.f32 %v3924, %v4136
        %v4283 = vadd.f32 %v3925, %v4141
        %v4284 = vadd.f32 %v3926, %v4146
        %v4285 = vadd.f32 %v3927, %v4151
        %v4286 = vadd.f32 %v3928, %v4156
        %v4287 = vadd.f32 %v3929, %v4161
        %v4288 = vadd.f32 %v3930, %v4166
        %v4289 = vadd.f32 %v3931, %v4171
        %v4290 = vadd.f32 %v3932, %v4176
        %v4291 = vadd.f32 %v3933, %v4181
        %v4292 = vadd.f32 %v3934, %v4186
        %v4293 = vadd.f32 %v3935, %v4191
        %v4294 = vadd.f32 %v3936, %v4196
        %v4295 = vadd.f32 %v3937, %v4201
        %v4296 = vadd.f32 %v3938, %v4206
        %v4297 = vadd.f32 %v3939, %v4211
        %v4298 = vadd.f32 %v3940, %v4216
        %v4299 = vadd.f32 %v3941, %v4221
        %v4300 = vadd.f32 %v3942, %v4226
        %v4301 = vadd.f32 %v3943, %v4231
        %v4302 = vadd.f32 %v3944, %v4236
        %v4303 = vadd.f32 %v3945, %v4241
        %v4304 = vadd.f32 %v3946, %v4246
        %v4305 = vadd.f32 %v3947, %v4251
        %v4306 = vadd.f32 %v3948, %v4256
        %v4307 = vadd.f32 %v3949, %v4261
        %v4308 = vadd.f32 %v3950, %v4266
        %v4309 = vadd.f32 %v3951, %v4271
        %v4310 = vadd.f32 %v3952, %v4276
        %4311 = vst [vmem:[#allocation2] sm:$0xff] %v4279
        %4312 = vst [vmem:[#allocation2 + $0x8] sm:$0xff] %v4280
        %4313 = vst [vmem:[#allocation2 + $0x10] sm:$0xff] %v4281
        %4314 = vst [vmem:[#allocation2 + $0x18] sm:$0xff] %v4282
        %4315 = vst [vmem:[#allocation2 + $0x20] sm:$0xff] %v4283
        %4316 = vst [vmem:[#allocation2 + $0x28] sm:$0xff] %v4284
        %4317 = vst [vmem:[#allocation2 + $0x30] sm:$0xff] %v4285
        %4318 = vst [vmem:[#allocation2 + $0x38] sm:$0xff] %v4286
        %4319 = vst [vmem:[#allocation2 + $0x40] sm:$0xff] %v4287
        %4320 = vst [vmem:[#allocation2 + $0x48] sm:$0xff] %v4288
        %4321 = vst [vmem:[#allocation2 + $0x50] sm:$0xff] %v4289
        %4322 = vst [vmem:[#allocation2 + $0x58] sm:$0xff] %v4290
        %4323 = vst [vmem:[#allocation2 + $0x60] sm:$0xff] %v4291
        %4324 = vst [vmem:[#allocation2 + $0x68] sm:$0xff] %v4292
        %4325 = vst [vmem:[#allocation2 + $0x70] sm:$0xff] %v4293
        %4326 = vst [vmem:[#allocation2 + $0x78] sm:$0xff] %v4294
        %4327 = vst [vmem:[#allocation2 + $0x80] sm:$0xff] %v4295
        %4328 = vst [vmem:[#allocation2 + $0x88] sm:$0xff] %v4296
        %4329 = vst [vmem:[#allocation2 + $0x90] sm:$0xff] %v4297
        %4330 = vst [vmem:[#allocation2 + $0x98] sm:$0xff] %v4298
        %4331 = vst [vmem:[#allocation2 + $0xa0] sm:$0xff] %v4299
        %4332 = vst [vmem:[#allocation2 + $0xa8] sm:$0xff] %v4300
        %4333 = vst [vmem:[#allocation2 + $0xb0] sm:$0xff] %v4301
        %4334 = vst [vmem:[#allocation2 + $0xb8] sm:$0xff] %v4302
        %4335 = vst [vmem:[#allocation2 + $0xc0] sm:$0xff] %v4303
        %4336 = vst [vmem:[#allocation2 + $0xc8] sm:$0xff] %v4304
        %4337 = vst [vmem:[#allocation2 + $0xd0] sm:$0xff] %v4305
        %4338 = vst [vmem:[#allocation2 + $0xd8] sm:$0xff] %v4306
        %4339 = vst [vmem:[#allocation2 + $0xe0] sm:$0xff] %v4307
        %4340 = vst [vmem:[#allocation2 + $0xe8] sm:$0xff] %v4308
        %4341 = vst [vmem:[#allocation2 + $0xf0] sm:$0xff] %v4309
        %4342 = vst [vmem:[#allocation2 + $0xf8] sm:$0xff] %v4310
        %v4343 = vld [vmem:[#allocation2] sm:$0xff]
        %v4344 = vld [vmem:[#allocation2 + $0x8] sm:$0xff]
        %v4345 = vld [vmem:[#allocation2 + $0x10] sm:$0xff]
        %v4346 = vld [vmem:[#allocation2 + $0x18] sm:$0xff]
        %v4347 = vld [vmem:[#allocation2 + $0x20] sm:$0xff]
        %v4348 = vld [vmem:[#allocation2 + $0x28] sm:$0xff]
        %v4349 = vld [vmem:[#allocation2 + $0x30] sm:$0xff]
        %v4350 = vld [vmem:[#allocation2 + $0x38] sm:$0xff]
        %v4351 = vld [vmem:[#allocation2 + $0x40] sm:$0xff]
        %v4352 = vld [vmem:[#allocation2 + $0x48] sm:$0xff]
        %v4353 = vld [vmem:[#allocation2 + $0x50] sm:$0xff]
        %v4354 = vld [vmem:[#allocation2 + $0x58] sm:$0xff]
        %v4355 = vld [vmem:[#allocation2 + $0x60] sm:$0xff]
        %v4356 = vld [vmem:[#allocation2 + $0x68] sm:$0xff]
        %v4357 = vld [vmem:[#allocation2 + $0x70] sm:$0xff]
        %v4358 = vld [vmem:[#allocation2 + $0x78] sm:$0xff]
        %v4359 = vld [vmem:[#allocation2 + $0x80] sm:$0xff]
        %v4360 = vld [vmem:[#allocation2 + $0x88] sm:$0xff]
        %v4361 = vld [vmem:[#allocation2 + $0x90] sm:$0xff]
        %v4362 = vld [vmem:[#allocation2 + $0x98] sm:$0xff]
        %v4363 = vld [vmem:[#allocation2 + $0xa0] sm:$0xff]
        %v4364 = vld [vmem:[#allocation2 + $0xa8] sm:$0xff]
        %v4365 = vld [vmem:[#allocation2 + $0xb0] sm:$0xff]
        %v4366 = vld [vmem:[#allocation2 + $0xb8] sm:$0xff]
        %v4367 = vld [vmem:[#allocation2 + $0xc0] sm:$0xff]
        %v4368 = vld [vmem:[#allocation2 + $0xc8] sm:$0xff]
        %v4369 = vld [vmem:[#allocation2 + $0xd0] sm:$0xff]
        %v4370 = vld [vmem:[#allocation2 + $0xd8] sm:$0xff]
        %v4371 = vld [vmem:[#allocation2 + $0xe0] sm:$0xff]
        %v4372 = vld [vmem:[#allocation2 + $0xe8] sm:$0xff]
        %v4373 = vld [vmem:[#allocation2 + $0xf0] sm:$0xff]
        %v4374 = vld [vmem:[#allocation2 + $0xf8] sm:$0xff]
        %v4375 = vld [vmem:[%s2] sm:$0x1]
        %v4377 = vlaneseq
        %v4378 = vshrl.u32 %v4377, 7
        %v4379 = vsub.s32 0, %v4378
        %v4380 = vrot.slane %v4375, %v4379
        %v4382 = vadd.f32 %v4343, %v4380
        %v4383 = vadd.f32 %v4344, %v4380
        %v4384 = vadd.f32 %v4345, %v4380
        %v4385 = vadd.f32 %v4346, %v4380
        %v4386 = vadd.f32 %v4347, %v4380
        %v4387 = vadd.f32 %v4348, %v4380
        %v4388 = vadd.f32 %v4349, %v4380
        %v4389 = vadd.f32 %v4350, %v4380
        %v4390 = vadd.f32 %v4351, %v4380
        %v4391 = vadd.f32 %v4352, %v4380
        %v4392 = vadd.f32 %v4353, %v4380
        %v4393 = vadd.f32 %v4354, %v4380
        %v4394 = vadd.f32 %v4355, %v4380
        %v4395 = vadd.f32 %v4356, %v4380
        %v4396 = vadd.f32 %v4357, %v4380
        %v4397 = vadd.f32 %v4358, %v4380
        %v4398 = vadd.f32 %v4359, %v4380
        %v4399 = vadd.f32 %v4360, %v4380
        %v4400 = vadd.f32 %v4361, %v4380
        %v4401 = vadd.f32 %v4362, %v4380
        %v4402 = vadd.f32 %v4363, %v4380
        %v4403 = vadd.f32 %v4364, %v4380
        %v4404 = vadd.f32 %v4365, %v4380
        %v4405 = vadd.f32 %v4366, %v4380
        %v4406 = vadd.f32 %v4367, %v4380
        %v4407 = vadd.f32 %v4368, %v4380
        %v4408 = vadd.f32 %v4369, %v4380
        %v4409 = vadd.f32 %v4370, %v4380
        %v4410 = vadd.f32 %v4371, %v4380
        %v4411 = vadd.f32 %v4372, %v4380
        %v4412 = vadd.f32 %v4373, %v4380
        %v4413 = vadd.f32 %v4374, %v4380
        %v4414 = vmax.f32 %v4382, 0.0
        %v4415 = vmax.f32 %v4383, 0.0
        %v4416 = vmax.f32 %v4384, 0.0
        %v4417 = vmax.f32 %v4385, 0.0
        %v4418 = vmax.f32 %v4386, 0.0
        %v4419 = vmax.f32 %v4387, 0.0
        %v4420 = vmax.f32 %v4388, 0.0
        %v4421 = vmax.f32 %v4389, 0.0
        %v4422 = vmax.f32 %v4390, 0.0
        %v4423 = vmax.f32 %v4391, 0.0
        %v4424 = vmax.f32 %v4392, 0.0
        %v4425 = vmax.f32 %v4393, 0.0
        %v4426 = vmax.f32 %v4394, 0.0
        %v4427 = vmax.f32 %v4395, 0.0
        %v4428 = vmax.f32 %v4396, 0.0
        %v4429 = vmax.f32 %v4397, 0.0
        %v4430 = vmax.f32 %v4398, 0.0
        %v4431 = vmax.f32 %v4399, 0.0
        %v4432 = vmax.f32 %v4400, 0.0
        %v4433 = vmax.f32 %v4401, 0.0
        %v4434 = vmax.f32 %v4402, 0.0
        %v4435 = vmax.f32 %v4403, 0.0
        %v4436 = vmax.f32 %v4404, 0.0
        %v4437 = vmax.f32 %v4405, 0.0
        %v4438 = vmax.f32 %v4406, 0.0
        %v4439 = vmax.f32 %v4407, 0.0
        %v4440 = vmax.f32 %v4408, 0.0
        %v4441 = vmax.f32 %v4409, 0.0
        %v4442 = vmax.f32 %v4410, 0.0
        %v4443 = vmax.f32 %v4411, 0.0
        %v4444 = vmax.f32 %v4412, 0.0
        %v4445 = vmax.f32 %v4413, 0.0
        %4446 = vmatprep.subr.mxu0 0.0
        %4447 = vmatpush1.msra.mxu0 %v4414
        %4448 = vmatprep.subr.mxu0 0.0
        %4449 = vmatpush1.msra.mxu0 %v4415
        %4450 = vmatprep.subr.mxu0 0.0
        %4451 = vmatpush1.msra.mxu0 %v4416
        %4452 = vmatprep.subr.mxu0 0.0
        %4453 = vmatpush1.msra.mxu0 %v4417
        %4454 = vmatprep.subr.mxu0 0.0
        %4455 = vmatpush1.msra.mxu0 %v4418
        %4456 = vmatprep.subr.mxu0 0.0
        %4457 = vmatpush1.msra.mxu0 %v4419
        %4458 = vmatprep.subr.mxu0 0.0
        %4459 = vmatpush1.msra.mxu0 %v4420
        %4460 = vmatprep.subr.mxu0 0.0
        %4461 = vmatpush1.msra.mxu0 %v4421
        %4462 = vmatprep.subr.mxu0 0.0
        %4463 = vmatpush1.msra.mxu0 %v4422
        %4464 = vmatprep.subr.mxu0 0.0
        %4465 = vmatpush1.msra.mxu0 %v4423
        %4466 = vmatprep.subr.mxu0 0.0
        %4467 = vmatpush1.msra.mxu0 %v4424
        %4468 = vmatprep.subr.mxu0 0.0
        %4469 = vmatpush1.msra.mxu0 %v4425
        %4470 = vmatprep.subr.mxu0 0.0
        %4471 = vmatpush1.msra.mxu0 %v4426
        %4472 = vmatprep.subr.mxu0 0.0
        %4473 = vmatpush1.msra.mxu0 %v4427
        %4474 = vmatprep.subr.mxu0 0.0
        %4475 = vmatpush1.msra.mxu0 %v4428
        %4476 = vmatprep.subr.mxu0 0.0
        %4477 = vmatpush1.msra.mxu0 %v4429
        %4478 = vmatprep.subr.mxu0 0.0
        %4479 = vmatpush1.msra.mxu0 %v4430
        %4480 = vmatprep.subr.mxu0 0.0
        %4481 = vmatpush1.msra.mxu0 %v4431
        %4482 = vmatprep.subr.mxu0 0.0
        %4483 = vmatpush1.msra.mxu0 %v4432
        %4484 = vmatprep.subr.mxu0 0.0
        %4485 = vmatpush1.msra.mxu0 %v4433
        %4486 = vmatprep.subr.mxu0 0.0
        %4487 = vmatpush1.msra.mxu0 %v4434
        %4488 = vmatprep.subr.mxu0 0.0
        %4489 = vmatpush1.msra.mxu0 %v4435
        %4490 = vmatprep.subr.mxu0 0.0
        %4491 = vmatpush1.msra.mxu0 %v4436
        %4492 = vmatprep.subr.mxu0 0.0
        %4493 = vmatpush1.msra.mxu0 %v4437
        %4494 = vmatprep.subr.mxu0 0.0
        %4495 = vmatpush1.msra.mxu0 %v4438
        %4496 = vmatprep.subr.mxu0 0.0
        %4497 = vmatpush1.msra.mxu0 %v4439
        %4498 = vmatprep.subr.mxu0 0.0
        %4499 = vmatpush1.msra.mxu0 %v4440
        %4500 = vmatprep.subr.mxu0 0.0
        %4501 = vmatpush1.msra.mxu0 %v4441
        %4502 = vmatprep.subr.mxu0 0.0
        %4503 = vmatpush1.msra.mxu0 %v4442
        %4504 = vmatprep.subr.mxu0 0.0
        %4505 = vmatpush1.msra.mxu0 %v4443
        %4506 = vmatprep.subr.mxu0 0.0
        %4507 = vmatpush1.msra.mxu0 %v4444
        %4508 = vmatprep.subr.mxu0 0.0
        %4509 = vmatpush1.msra.mxu0 %v4445
        %4510 = vmatprep.mubr.f32.mxu0 0.00390625
        %4511 = vmatmul.mubr.f32.gmra.mrb[0].mxu0 0.00390625
        %v4512 = vpop.f32.mrb[0].mxu0
        %v4513 = vadd.f32 0.0, %v4512
        %v4514 = vpop.f32.mrb[0].mxu0
        %4515 = vdwg.mxu0
        %v4516 = vld [vmem:[%s3] sm:$0xff]
        %v4517 = vld [vmem:[%s3 + $0x8] sm:$0xff]
        %v4518 = vld [vmem:[%s3 + $0x10] sm:$0xff]
        %v4519 = vld [vmem:[%s3 + $0x18] sm:$0xff]
        %v4520 = vld [vmem:[%s3 + $0x20] sm:$0xff]
        %v4521 = vld [vmem:[%s3 + $0x28] sm:$0xff]
        %v4522 = vld [vmem:[%s3 + $0x30] sm:$0xff]
        %v4523 = vld [vmem:[%s3 + $0x38] sm:$0xff]
        %v4524 = vld [vmem:[%s3 + $0x40] sm:$0xff]
        %v4525 = vld [vmem:[%s3 + $0x48] sm:$0xff]
        %v4526 = vld [vmem:[%s3 + $0x50] sm:$0xff]
        %v4527 = vld [vmem:[%s3 + $0x58] sm:$0xff]
        %v4528 = vld [vmem:[%s3 + $0x60] sm:$0xff]
        %v4529 = vld [vmem:[%s3 + $0x68] sm:$0xff]
        %v4530 = vld [vmem:[%s3 + $0x70] sm:$0xff]
        %v4531 = vld [vmem:[%s3 + $0x78] sm:$0xff]
        %v4532 = vld [vmem:[%s4] sm:$0x1]
        %4533 = vmatprep.subr.mxu0 0.0
        %4534 = vmatpush1.msra.mxu0 %v4516
        %4535 = vmatprep.subr.mxu0 0.0
        %4536 = vmatpush1.msra.mxu0 %v4517
        %4537 = vmatprep.subr.mxu0 0.0
        %4538 = vmatpush1.msra.mxu0 %v4518
        %4539 = vmatprep.subr.mxu0 0.0
        %4540 = vmatpush1.msra.mxu0 %v4519
        %4541 = vmatprep.subr.mxu0 0.0
        %4542 = vmatpush1.msra.mxu0 %v4520
        %4543 = vmatprep.subr.mxu0 0.0
        %4544 = vmatpush1.msra.mxu0 %v4521
        %4545 = vmatprep.subr.mxu0 0.0
        %4546 = vmatpush1.msra.mxu0 %v4522
        %4547 = vmatprep.subr.mxu0 0.0
        %4548 = vmatpush1.msra.mxu0 %v4523
        %4549 = vmatprep.subr.mxu0 0.0
        %4550 = vmatpush1.msra.mxu0 %v4524
        %4551 = vmatprep.subr.mxu0 0.0
        %4552 = vmatpush1.msra.mxu0 %v4525
        %4553 = vmatprep.subr.mxu0 0.0
        %4554 = vmatpush1.msra.mxu0 %v4526
        %4555 = vmatprep.subr.mxu0 0.0
        %4556 = vmatpush1.msra.mxu0 %v4527
        %4557 = vmatprep.subr.mxu0 0.0
        %4558 = vmatpush1.msra.mxu0 %v4528
        %4559 = vmatprep.subr.mxu0 0.0
        %4560 = vmatpush1.msra.mxu0 %v4529
        %4561 = vmatprep.subr.mxu0 0.0
        %4562 = vmatpush1.msra.mxu0 %v4530
        %4563 = vmatprep.subr.mxu0 0.0
        %4564 = vmatpush1.msra.mxu0 %v4531
        %4565 = vmatprep.subr.mxu0 0.0
        %4566 = vmatpush1.msra.mxu0 0.0
        %4567 = vmatprep.subr.mxu0 0.0
        %4568 = vmatpush1.msra.mxu0 0.0
        %4569 = vmatprep.subr.mxu0 0.0
        %4570 = vmatpush1.msra.mxu0 0.0
        %4571 = vmatprep.subr.mxu0 0.0
        %4572 = vmatpush1.msra.mxu0 0.0
        %4573 = vmatprep.subr.mxu0 0.0
        %4574 = vmatpush1.msra.mxu0 0.0
        %4575 = vmatprep.subr.mxu0 0.0
        %4576 = vmatpush1.msra.mxu0 0.0
        %4577 = vmatprep.subr.mxu0 0.0
        %4578 = vmatpush1.msra.mxu0 0.0
        %4579 = vmatprep.subr.mxu0 0.0
        %4580 = vmatpush1.msra.mxu0 0.0
        %4581 = vmatprep.subr.mxu0 0.0
        %4582 = vmatpush1.msra.mxu0 0.0
        %4583 = vmatprep.subr.mxu0 0.0
        %4584 = vmatpush1.msra.mxu0 0.0
        %4585 = vmatprep.subr.mxu0 0.0
        %4586 = vmatpush1.msra.mxu0 0.0
        %4587 = vmatprep.subr.mxu0 0.0
        %4588 = vmatpush1.msra.mxu0 0.0
        %4589 = vmatprep.subr.mxu0 0.0
        %4590 = vmatpush1.msra.mxu0 0.0
        %4591 = vmatprep.subr.mxu0 0.0
        %4592 = vmatpush1.msra.mxu0 0.0
        %4593 = vmatprep.subr.mxu0 0.0
        %4594 = vmatpush1.msra.mxu0 0.0
        %4595 = vmatprep.subr.mxu0 0.0
        %4596 = vmatpush1.msra.mxu0 0.0
        %4597 = vmatprep.mubr.f32.mxu0 0.0
        %4598 = vmatmul.mubr.f32.gmra.mrb[0].mxu0 %v4513
        %v4599 = vpop.f32.mrb[0].mxu0
        %v4600 = vadd.f32 %v4532, %v4599
        %v4601 = vpop.f32.mrb[0].mxu0
        %4602 = vdwg.mxu0
        %4603 = vst [vmem:[%s216] sm:$0x1] %v4600
        %s4604 = sand.u32 %s137, 1
        %s4605 = scalar_lea.sflag [#allocation4], %s4604
        %s4606 = sand.u32 %s137, 1
        %s4607 = scalar_lea.vmem [#allocation3], %s4606
        // Predicated region
        $region41: #{backbone_forward.1} parent=39 // pred_check
          %p4608 = pneg %p147
        $region42: #{backbone_forward.1} parent=39 // pred_check_branch
          %4610 = sbr.rel (%p4608) target = $region44
        $region43: #{backbone_forward.1} parent=39 // pred_region
          %s4612 = ssub.s32 16, 16
          %4613 = vsyncadd %s4605, %s4612
          %s4614 = smul.addr %s19, 16
          %s4615 = scalar_lea.hbm %s5, %s4614
          %s4617 = sshll.u32 %s4607, 4
          %s4618 = int_to_ptr.vmem [resolvable:$true] %s4617
          %4620 = dma.vmem_to_hbm [thread:$0]  %s4618, 16, %s4615, %s4605
        $region44: #{backbone_forward.1} parent=39 // pred_fallthru
          _
      $region40: #{backbone_forward.1} parent=5 // pred_fallthru
        _
      %p4621 = scmp.le.s32.totalorder 2, %s14
      // Predicated region
      $region45: #{backbone_forward.1} parent=5 // pred_check
        %p4622 = pneg %p4621
      $region46: #{backbone_forward.1} parent=5 // pred_check_branch
        %4624 = sbr.rel (%p4622) target = $region48
      $region47: #{backbone_forward.1} parent=5 // pred_region
        %s4625 = ssub.s32 %s14, 2
        // Predicated region
        $region49: #{backbone_forward.1} parent=47 // pred_check
          %p4626 = pneg %p153
        $region50: #{backbone_forward.1} parent=47 // pred_check_branch
          %4628 = sbr.rel (%p4626) target = $region52
        $region51: #{backbone_forward.1} parent=47 // pred_region
          %s4629 = sand.u32 %s138, 1
          %s4630 = scalar_lea.sflag [#allocation4], %s4629
          %s4631 = sand.u32 %s138, 1
          %s4632 = scalar_lea.vmem [#allocation3], %s4631
          %4633 = dma.done %s4630, 16
        $region52: #{backbone_forward.1} parent=47 // pred_fallthru
          _
      $region48: #{backbone_forward.1} parent=5 // pred_fallthru
        _
    $region6: #{backbone_forward.1} parent=1 // loop_footer
      %s18 = sadd.s32 1, %s14
    $region7: #{backbone_forward.1} parent=1 // loop_footer_branch
      %13 = sbr.rel target = $region3
    $region8: #{backbone_forward.1} parent=1 // loop_exit
      _
    %4634 = vsyncpa [#allocation4], 1
    %s4635 = scalar_lea.sflag [#allocation4], 1
    %4636 = vsyncpa %s4635, 1

</llo_original>
